<compile_context>
chip_gen: v6e
topology: v6e:2x2x1
jax: 0.10.0
libtpu: 0.0.40
codegen_flags: <defaults>
</compile_context>

<pallas_src>
import functools

import jax
import jax.numpy as jnp
from jax.experimental import pallas as pl
from jax.experimental.pallas import tpu as pltpu


# ----------------------------------------------------------------------------
# Small helpers
# ----------------------------------------------------------------------------
_BF16_MXU_MIN_K = 256  # bf16 MXU operands only pay off at real AGSR sizes


def _mm(a, b):
    """MXU matmul with f32 accumulation; bf16 operands at large contraction dims."""
    if a.shape[-1] >= _BF16_MXU_MIN_K:
        a = a.astype(jnp.bfloat16)
        b = b.astype(jnp.bfloat16)
    return jnp.dot(a, b, preferred_element_type=jnp.float32)


def _vmem_spec():
    return pl.BlockSpec(memory_space=pltpu.MemorySpace.VMEM)


def _call(kernel, inputs, out_shapes):
    """Single-invocation pallas_call: no grid, whole arrays resident in VMEM."""
    out_shape = tuple(jax.ShapeDtypeStruct(tuple(s), jnp.float32) for s in out_shapes)
    fn = pl.pallas_call(
        kernel,
        in_specs=[_vmem_spec() for _ in inputs],
        out_specs=tuple(_vmem_spec() for _ in out_shapes),
        out_shape=out_shape,
    )
    return fn(*inputs)


def _round_up(n, m):
    return ((n + m - 1) // m) * m


def _pad2(x, rows, cols):
    r, c = x.shape
    if r == rows and c == cols:
        return x
    return jnp.pad(x, ((0, rows - r), (0, cols - c)))


def _diag_mask(n):
    r = jax.lax.broadcasted_iota(jnp.int32, (n, n), 0)
    c = jax.lax.broadcasted_iota(jnp.int32, (n, n), 1)
    return r == c


def _select_topk(scores, mask, kk):
    """In-kernel top-k selection as a rank threshold (tie-break = lower index,
    matching jax.lax.top_k).  scores, mask: (N, 1) f32.
    Returns (selected 0/1 mask, selected-score values)."""
    n = scores.shape[0]
    s = jnp.where(mask > 0.0, scores, -1e30)       # inactive nodes can never win
    s_row = s.T                                     # (1, N)
    ri = jax.lax.broadcasted_iota(jnp.int32, (n, n), 0)
    ci = jax.lax.broadcasted_iota(jnp.int32, (n, n), 1)
    beats = (s_row > s) | ((s_row == s) & (ci < ri))   # [i, j]: node j outranks node i
    rank = jnp.sum(beats.astype(jnp.float32), axis=1, keepdims=True)
    sel = (rank < kk).astype(jnp.float32)
    return sel, sel * scores


# ----------------------------------------------------------------------------
# Kernel 1: normalize_adj + start GCN + full GraphUnet (down/pool/bottom/up/end)
# ----------------------------------------------------------------------------
def _unet_kernel(*args, n_levels, lr_dim, level_sizes):
    n_in = 3 + 4 * n_levels + 2 + 2 * n_levels + 3
    a_out, net_out, start_out = args[n_in:]
    it = iter(args[:n_in])
    lr_ref, sw_ref, sb_ref = next(it), next(it), next(it)
    down = [(next(it), next(it), next(it), next(it)) for _ in range(n_levels)]
    bw_ref, bb_ref = next(it), next(it)
    up = [(next(it), next(it)) for _ in range(n_levels)]
    ewx_ref, ewo_ref, eb_ref = next(it), next(it), next(it)

    lr = lr_ref[...]
    np_dim = lr.shape[0]

    # normalize_adj_torch: A = D^{-1/2} lr^T D^{-1/2}.  lr is a symmetric
    # connectome adjacency (module contract, enforced by the driver), so the
    # in-kernel transpose is dropped.  Zero (padding) rows -> 0 columns/rows.
    rowsum = jnp.sum(lr, axis=1, keepdims=True)
    r = jax.lax.rsqrt(rowsum)
    r = jnp.where(jnp.isinf(r), 0.0, r)
    adj = lr * r * r.T
    a_out[...] = adj

    # start GCN with X = I:  A @ (I @ W) + b  ==  A @ W + b
    x = _mm(adj, sw_ref[...]) + sb_ref[...]
    start_out[...] = x
    org_x = x

    # active-node mask (padded rows inactive)
    row_id = jax.lax.broadcasted_iota(jnp.int32, (np_dim, 1), 0)
    masks = [(row_id < lr_dim).astype(jnp.float32)]

    # ---- down path: GCN + pool score + in-kernel top-k selection ----
    down_outs = []
    for i in range(n_levels):
        dw, db, pw, pb = down[i]
        xg = _mm(_mm(adj, x), dw[...]) + db[...]
        down_outs.append(xg)
        s = jax.nn.sigmoid((_mm(xg, pw[...]) + pb[...]) / 100.0)
        sel, vals = _select_topk(s, masks[i], level_sizes[i + 1])
        masks.append(sel)
        x = xg * vals                      # gather + score-scale == mask + scale

    # ---- bottom GCN ----
    x = _mm(_mm(adj, x), bw_ref[...]) + bb_ref[...]

    # ---- up path: unpool (re-mask) + GCN + fused residual add ----
    for i in range(n_levels):
        up_idx = n_levels - 1 - i
        uw, ub = up[i]
        x = x * masks[up_idx + 1]          # unpool scatter == re-mask
        x = _mm(_mm(adj, x), uw[...]) + ub[...] + down_outs[up_idx]

    # ---- end GCN on concat([X, org_X], axis=1): concat folded into 2 matmuls
    net_out[...] = (
        _mm(_mm(adj, x), ewx_ref[...])
        + _mm(_mm(adj, org_x), ewo_ref[...])
        + eb_ref[...]
    )


# ----------------------------------------------------------------------------
# Kernel 2: GSRLayer + gc1 + gc2 + final symmetrize / fill-diag / abs
# ----------------------------------------------------------------------------
def _tail_kernel(w_ref, ut_ref, f_ref, g1_ref, g2_ref, adj_ref, z_ref, *, lr_dim):
    w = w_ref[...]
    # a = W @ [I; I]  ==  W[:, :lr] + W[:, lr:]   (requires hr_dim == 2 * lr_dim)
    a = w[:, :lr_dim] + w[:, lr_dim:]
    b = _mm(a, ut_ref[...])                    # U passed pre-transposed by wrapper
    fd = jnp.abs(_mm(b, f_ref[...]))

    hr = fd.shape[0]
    diag = _diag_mask(hr)                      # computed once, reused 3x
    adj = jnp.where(diag, 1.0, fd)             # fill_diagonal_(1)
    adj_ref[...] = adj

    # Z = |fill_diag(adj @ adj^T, 1)|   ((X + X^T)/2 dropped: already symmetric)
    zz = jax.lax.dot_general(
        adj, adj, (((1,), (1,)), ((), ())), preferred_element_type=jnp.float32
    )
    zz = jnp.abs(jnp.where(diag, 1.0, zz))

    h1 = jnp.maximum(_mm(adj, _mm(zz, g1_ref[...])), 0.0)   # gc1: relu(adj @ (Z @ W1))
    h2 = jnp.maximum(_mm(adj, _mm(h1, g2_ref[...])), 0.0)   # gc2: relu(adj @ (h1 @ W2))
    z = (h2 + h2.T) * 0.5
    z_ref[...] = jnp.abs(jnp.where(diag, 1.0, z))


# ----------------------------------------------------------------------------
# Forward pass
# ----------------------------------------------------------------------------
def agsr_net_forward(lr, params, ks, lr_dim, hr_dim, hidden_dim):
    assert hr_dim == 2 * lr_dim, "GSRLayer algebra requires hr_dim == 2 * lr_dim"
    unet = params["unet"]
    n_levels = len(ks)
    unet_dim = unet["start_w"].shape[1]

    # Static per-level node counts (same rule as the reference top_k).
    level_sizes = [lr_dim]
    for k in ks:
        level_sizes.append(max(2, int(k * level_sizes[-1])))

    np_dim = _round_up(max(lr_dim, 8), 8)        # node axis -> sublane multiple
    lr_p = _pad2(lr, np_dim, np_dim)
    start_w_p = _pad2(unet["start_w"], np_dim, unet_dim)

    inputs = [lr_p, start_w_p, unet["start_b"]]
    for i in range(n_levels):
        inputs += [unet["down_w"][i], unet["down_b"][i],
                   unet["pool_w"][i], unet["pool_b"][i]]
    inputs += [unet["bottom_w"], unet["bottom_b"]]
    for i in range(n_levels):
        inputs += [unet["up_w"][i], unet["up_b"][i]]
    inputs += [unet["end_w_x"], unet["end_w_org"], unet["end_b"]]

    kern = functools.partial(_unet_kernel, n_levels=n_levels, lr_dim=lr_dim,
                             level_sizes=tuple(level_sizes))
    a_pad, net_pad, start_pad = _call(
        kern, inputs,
        [(np_dim, np_dim), (np_dim, hr_dim), (np_dim, unet_dim)])

    if np_dim != lr_dim:
        A = a_pad[:lr_dim, :lr_dim]
        net_outs = net_pad[:lr_dim]
        start_gcn_outs = start_pad[:lr_dim]
    else:
        A, net_outs, start_gcn_outs = a_pad, net_pad, start_pad

    # TODO(synk): eigendecomposition (torch.symeig) has no Pallas equivalent; jnp.linalg.eigh in XLA.
    _eig_val, u = jnp.linalg.eigh(A)
    u_t = u.T                                    # pre-transposed in XLA (free)

    tail = functools.partial(_tail_kernel, lr_dim=lr_dim)
    outputs, z = _call(
        tail,
        [params["gsr_w"], u_t, net_outs, params["gc1_w"], params["gc2_w"]],
        [(hr_dim, hr_dim), (hr_dim, hr_dim)])
    # z already has symmetrize / fill-diag / abs applied inside the fused tail.
    return z, net_outs, start_gcn_outs, outputs


# ----------------------------------------------------------------------------
# Deterministic parameter initialization (weights stored pre-transposed (in, out))
# ----------------------------------------------------------------------------
def init_params(key, lr_dim, hr_dim, hidden_dim, unet_dim, n_levels):
    def glorot(k, shape):
        limit = (6.0 / (shape[0] + shape[1])) ** 0.5
        return jax.random.uniform(k, shape, jnp.float32, -limit, limit)

    keys = iter(jax.random.split(key, 8 + 6 * n_levels))

    end_w = glorot(next(keys), (2 * unet_dim, hr_dim))
    unet = {
        "start_w": glorot(next(keys), (lr_dim, unet_dim)),
        "start_b": jnp.zeros((1, unet_dim), jnp.float32),
        "bottom_w": glorot(next(keys), (unet_dim, unet_dim)),
        "bottom_b": jnp.zeros((1, unet_dim), jnp.float32),
        # end-GCN weight pre-split so the in-kernel concat becomes two matmuls
        "end_w_x": end_w[:unet_dim],
        "end_w_org": end_w[unet_dim:],
        "end_b": jnp.zeros((1, hr_dim), jnp.float32),
        "down_w": [glorot(next(keys), (unet_dim, unet_dim)) for _ in range(n_levels)],
        "down_b": [jnp.zeros((1, unet_dim), jnp.float32) for _ in range(n_levels)],
        "up_w": [glorot(next(keys), (unet_dim, unet_dim)) for _ in range(n_levels)],
        "up_b": [jnp.zeros((1, unet_dim), jnp.float32) for _ in range(n_levels)],
        "pool_w": [glorot(next(keys), (unet_dim, 1)) for _ in range(n_levels)],
        "pool_b": [jnp.zeros((1, 1), jnp.float32) for _ in range(n_levels)],
    }
    return {
        "unet": unet,
        "gsr_w": glorot(next(keys), (hr_dim, hr_dim)),
        "gc1_w": glorot(next(keys), (hr_dim, hidden_dim)),
        "gc2_w": glorot(next(keys), (hidden_dim, hr_dim)),
    }


if __name__ == "__main__":
    # Small shapes consistent with the model: hr_dim must equal 2 * lr_dim
    # (GSRLayer requires it); GraphUnet hidden dim kept small (=32) for the
    # synthetic run (original code hard-codes 320).
    lr_dim, hr_dim, hidden_dim, unet_dim = 16, 32, 32, 32
    ks = [0.9, 0.7, 0.6, 0.5]

    key = jax.random.PRNGKey(0)
    k_in, k_par = jax.random.split(key)

    raw = jax.random.uniform(k_in, (lr_dim, lr_dim), jnp.float32)
    lr = (raw + raw.T) * 0.5          # symmetric non-negative LR connectome

    params = init_params(k_par, lr_dim, hr_dim, hidden_dim, unet_dim, len(ks))

    fwd = jax.jit(functools.partial(
        agsr_net_forward, ks=ks, lr_dim=lr_dim, hr_dim=hr_dim, hidden_dim=hidden_dim))
    z, net_outs, start_gcn_outs, outputs = fwd(lr, params)
    jax.block_until_ready((z, net_outs, start_gcn_outs, outputs))

    assert z.shape == (hr_dim, hr_dim)
    assert net_outs.shape == (lr_dim, hr_dim)
    assert start_gcn_outs.shape == (lr_dim, unet_dim)
    assert outputs.shape == (hr_dim, hr_dim)
    assert bool(jnp.all(jnp.isfinite(z)))

    print("KERNEL_OK")
</pallas_src>

<mosaic_0001>
module attributes {stable_mosaic.version = 11 : i64} {
  func.func @_unet_kernel(%arg0: memref<16x16xf32, #tpu.memory_space<vmem>>, %arg1: memref<16x32xf32, #tpu.memory_space<vmem>>, %arg2: memref<1x32xf32, #tpu.memory_space<vmem>>, %arg3: memref<32x32xf32, #tpu.memory_space<vmem>>, %arg4: memref<1x32xf32, #tpu.memory_space<vmem>>, %arg5: memref<32x1xf32, #tpu.memory_space<vmem>>, %arg6: memref<1x1xf32, #tpu.memory_space<vmem>>, %arg7: memref<32x32xf32, #tpu.memory_space<vmem>>, %arg8: memref<1x32xf32, #tpu.memory_space<vmem>>, %arg9: memref<32x1xf32, #tpu.memory_space<vmem>>, %arg10: memref<1x1xf32, #tpu.memory_space<vmem>>, %arg11: memref<32x32xf32, #tpu.memory_space<vmem>>, %arg12: memref<1x32xf32, #tpu.memory_space<vmem>>, %arg13: memref<32x1xf32, #tpu.memory_space<vmem>>, %arg14: memref<1x1xf32, #tpu.memory_space<vmem>>, %arg15: memref<32x32xf32, #tpu.memory_space<vmem>>, %arg16: memref<1x32xf32, #tpu.memory_space<vmem>>, %arg17: memref<32x1xf32, #tpu.memory_space<vmem>>, %arg18: memref<1x1xf32, #tpu.memory_space<vmem>>, %arg19: memref<32x32xf32, #tpu.memory_space<vmem>>, %arg20: memref<1x32xf32, #tpu.memory_space<vmem>>, %arg21: memref<32x32xf32, #tpu.memory_space<vmem>>, %arg22: memref<1x32xf32, #tpu.memory_space<vmem>>, %arg23: memref<32x32xf32, #tpu.memory_space<vmem>>, %arg24: memref<1x32xf32, #tpu.memory_space<vmem>>, %arg25: memref<32x32xf32, #tpu.memory_space<vmem>>, %arg26: memref<1x32xf32, #tpu.memory_space<vmem>>, %arg27: memref<32x32xf32, #tpu.memory_space<vmem>>, %arg28: memref<1x32xf32, #tpu.memory_space<vmem>>, %arg29: memref<32x32xf32, #tpu.memory_space<vmem>>, %arg30: memref<32x32xf32, #tpu.memory_space<vmem>>, %arg31: memref<1x32xf32, #tpu.memory_space<vmem>>, %arg32: memref<16x16xf32, #tpu.memory_space<vmem>>, %arg33: memref<16x32xf32, #tpu.memory_space<vmem>>, %arg34: memref<16x32xf32, #tpu.memory_space<vmem>>) attributes {dimension_semantics = [], scalar_prefetch = 0 : i64, scratch_operands = 0 : i64, tpu.core_type = #tpu.core_type<tc>} {
    %c0 = arith.constant 0 : index
    %c0_0 = arith.constant 0 : index
    %0 = vector.load %arg0[%c0, %c0_0] : memref<16x16xf32, #tpu.memory_space<vmem>>, vector<16x16xf32>
    %cst = arith.constant dense<0.000000e+00> : vector<16xf32>
    %1 = vector.multi_reduction <add>, %0, %cst [1] : vector<16x16xf32> to vector<16xf32>
    %2 = vector.shape_cast %1 : vector<16xf32> to vector<16x1xf32>
    %3 = math.rsqrt %2 : vector<16x1xf32>
    %4 = math.absf %3 : vector<16x1xf32>
    %cst_1 = arith.constant 0x7F800000 : f32
    %5 = vector.broadcast %cst_1 : f32 to vector<16x1xf32>
    %6 = arith.cmpf oeq, %4, %5 : vector<16x1xf32>
    %cst_2 = arith.constant 0.000000e+00 : f32
    %7 = vector.broadcast %cst_2 : f32 to vector<16x1xf32>
    %8 = arith.select %6, %7, %3 : vector<16x1xi1>, vector<16x1xf32>
    %9 = vector.broadcast %8 : vector<16x1xf32> to vector<16x16xf32>
    %10 = arith.mulf %0, %9 : vector<16x16xf32>
    %11 = tpu.transpose %8, [1, 0] : vector<16x1xf32> -> vector<1x16xf32>
    %12 = vector.broadcast %11 : vector<1x16xf32> to vector<16x16xf32>
    %13 = arith.mulf %10, %12 : vector<16x16xf32>
    %c0_3 = arith.constant 0 : index
    %c0_4 = arith.constant 0 : index
    %14 = vector.load %arg32[%c0_3, %c0_4] : memref<16x16xf32, #tpu.memory_space<vmem>>, vector<16x16xf32>
    tpu.vector_store %arg32[%c0_3, %c0_4], %13 {strides = array<i32>} : memref<16x16xf32, #tpu.memory_space<vmem>>, vector<16x16xf32>,
    %c0_5 = arith.constant 0 : index
    %c0_6 = arith.constant 0 : index
    %15 = vector.load %arg1[%c0_5, %c0_6] : memref<16x32xf32, #tpu.memory_space<vmem>>, vector<16x32xf32>
    %cst_7 = arith.constant dense<0.000000e+00> : vector<16x32xf32>
    %16 = tpu.matmul %13, %15, %cst_7 {dimension_numbers = #tpu.dot_dimension_numbers<[1], [0], [0], [1], [0, 0, 1, 1], [], []>} : vector<16x16xf32>, vector<16x32xf32>, vector<16x32xf32> -> vector<16x32xf32>
    %c0_8 = arith.constant 0 : index
    %c0_9 = arith.constant 0 : index
    %17 = vector.load %arg2[%c0_8, %c0_9] : memref<1x32xf32, #tpu.memory_space<vmem>>, vector<1x32xf32>
    %18 = vector.broadcast %17 : vector<1x32xf32> to vector<16x32xf32>
    %19 = arith.addf %16, %18 : vector<16x32xf32>
    %c0_10 = arith.constant 0 : index
    %c0_11 = arith.constant 0 : index
    %20 = vector.load %arg34[%c0_10, %c0_11] : memref<16x32xf32, #tpu.memory_space<vmem>>, vector<16x32xf32>
    tpu.vector_store %arg34[%c0_10, %c0_11], %19 {strides = array<i32>} : memref<16x32xf32, #tpu.memory_space<vmem>>, vector<16x32xf32>,
    %21 = tpu.iota {dimensions = array<i32: 0>} : vector<16x1xi32>
    %c16_i32 = arith.constant 16 : i32
    %22 = vector.broadcast %c16_i32 : i32 to vector<16x1xi32>
    %23 = arith.cmpi slt, %21, %22 : vector<16x1xi32>
    %24 = arith.extui %23 : vector<16x1xi1> to vector<16x1xi32>
    %25 = arith.sitofp %24 : vector<16x1xi32> to vector<16x1xf32>
    %cst_12 = arith.constant dense<0.000000e+00> : vector<16x32xf32>
    %26 = tpu.matmul %13, %19, %cst_12 {dimension_numbers = #tpu.dot_dimension_numbers<[1], [0], [0], [1], [0, 0, 1, 1], [], []>} : vector<16x16xf32>, vector<16x32xf32>, vector<16x32xf32> -> vector<16x32xf32>
    %c0_13 = arith.constant 0 : index
    %c0_14 = arith.constant 0 : index
    %27 = vector.load %arg3[%c0_13, %c0_14] : memref<32x32xf32, #tpu.memory_space<vmem>>, vector<32x32xf32>
    %cst_15 = arith.constant dense<0.000000e+00> : vector<16x32xf32>
    %28 = tpu.matmul %26, %27, %cst_15 {dimension_numbers = #tpu.dot_dimension_numbers<[1], [0], [0], [1], [0, 0, 1, 1], [], []>} : vector<16x32xf32>, vector<32x32xf32>, vector<16x32xf32> -> vector<16x32xf32>
    %c0_16 = arith.constant 0 : index
    %c0_17 = arith.constant 0 : index
    %29 = vector.load %arg4[%c0_16, %c0_17] : memref<1x32xf32, #tpu.memory_space<vmem>>, vector<1x32xf32>
    %30 = vector.broadcast %29 : vector<1x32xf32> to vector<16x32xf32>
    %31 = arith.addf %28, %30 : vector<16x32xf32>
    %c0_18 = arith.constant 0 : index
    %c0_19 = arith.constant 0 : index
    %32 = vector.load %arg5[%c0_18, %c0_19] : memref<32x1xf32, #tpu.memory_space<vmem>>, vector<32x1xf32>
    %cst_20 = arith.constant dense<0.000000e+00> : vector<16x1xf32>
    %33 = tpu.matmul %31, %32, %cst_20 {dimension_numbers = #tpu.dot_dimension_numbers<[1], [0], [0], [1], [0, 0, 1, 1], [], []>} : vector<16x32xf32>, vector<32x1xf32>, vector<16x1xf32> -> vector<16x1xf32>
    %c0_21 = arith.constant 0 : index
    %c0_22 = arith.constant 0 : index
    %34 = vector.load %arg6[%c0_21, %c0_22] : memref<1x1xf32, #tpu.memory_space<vmem>>, vector<1x1xf32>
    %35 = vector.broadcast %34 : vector<1x1xf32> to vector<16x1xf32>
    %36 = arith.addf %33, %35 : vector<16x1xf32>
    %cst_23 = arith.constant 1.000000e+02 : f32
    %37 = vector.broadcast %cst_23 : f32 to vector<16x1xf32>
    %38 = arith.divf %36, %37 : vector<16x1xf32>
    %39 = arith.negf %38 : vector<16x1xf32>
    %40 = math.exp %39 : vector<16x1xf32>
    %cst_24 = arith.constant 1.000000e+00 : f32
    %41 = vector.broadcast %cst_24 : f32 to vector<16x1xf32>
    %42 = arith.addf %41, %40 : vector<16x1xf32>
    %43 = arith.divf %41, %42 : vector<16x1xf32>
    %cst_25 = arith.constant 0.000000e+00 : f32
    %44 = vector.broadcast %cst_25 : f32 to vector<16x1xf32>
    %45 = arith.cmpf ogt, %25, %44 : vector<16x1xf32>
    %cst_26 = arith.constant -1.000000e+30 : f32
    %46 = vector.broadcast %cst_26 : f32 to vector<16x1xf32>
    %47 = arith.select %45, %43, %46 : vector<16x1xi1>, vector<16x1xf32>
    %48 = tpu.transpose %47, [1, 0] : vector<16x1xf32> -> vector<1x16xf32>
    %49 = tpu.iota {dimensions = array<i32: 0>} : vector<16x16xi32>
    %50 = tpu.iota {dimensions = array<i32: 1>} : vector<16x16xi32>
    %51 = vector.broadcast %48 : vector<1x16xf32> to vector<16x16xf32>
    %52 = vector.broadcast %47 : vector<16x1xf32> to vector<16x16xf32>
    %53 = arith.cmpf ogt, %51, %52 : vector<16x16xf32>
    %54 = vector.broadcast %48 : vector<1x16xf32> to vector<16x16xf32>
    %55 = vector.broadcast %47 : vector<16x1xf32> to vector<16x16xf32>
    %56 = arith.cmpf oeq, %54, %55 : vector<16x16xf32>
    %57 = arith.cmpi slt, %50, %49 : vector<16x16xi32>
    %58 = arith.andi %56, %57 : vector<16x16xi1>
    %59 = arith.ori %53, %58 : vector<16x16xi1>
    %60 = arith.extui %59 : vector<16x16xi1> to vector<16x16xi32>
    %61 = arith.sitofp %60 : vector<16x16xi32> to vector<16x16xf32>
    %cst_27 = arith.constant dense<0.000000e+00> : vector<16xf32>
    %62 = vector.multi_reduction <add>, %61, %cst_27 [1] : vector<16x16xf32> to vector<16xf32>
    %63 = vector.shape_cast %62 : vector<16xf32> to vector<16x1xf32>
    %cst_28 = arith.constant 1.400000e+01 : f32
    %64 = vector.broadcast %cst_28 : f32 to vector<16x1xf32>
    %65 = arith.cmpf olt, %63, %64 : vector<16x1xf32>
    %66 = arith.extui %65 : vector<16x1xi1> to vector<16x1xi32>
    %67 = arith.sitofp %66 : vector<16x1xi32> to vector<16x1xf32>
    %68 = arith.mulf %67, %43 : vector<16x1xf32>
    %69 = vector.broadcast %68 : vector<16x1xf32> to vector<16x32xf32>
    %70 = arith.mulf %31, %69 : vector<16x32xf32>
    %cst_29 = arith.constant dense<0.000000e+00> : vector<16x32xf32>
    %71 = tpu.matmul %13, %70, %cst_29 {dimension_numbers = #tpu.dot_dimension_numbers<[1], [0], [0], [1], [0, 0, 1, 1], [], []>} : vector<16x16xf32>, vector<16x32xf32>, vector<16x32xf32> -> vector<16x32xf32>
    %c0_30 = arith.constant 0 : index
    %c0_31 = arith.constant 0 : index
    %72 = vector.load %arg7[%c0_30, %c0_31] : memref<32x32xf32, #tpu.memory_space<vmem>>, vector<32x32xf32>
    %cst_32 = arith.constant dense<0.000000e+00> : vector<16x32xf32>
    %73 = tpu.matmul %71, %72, %cst_32 {dimension_numbers = #tpu.dot_dimension_numbers<[1], [0], [0], [1], [0, 0, 1, 1], [], []>} : vector<16x32xf32>, vector<32x32xf32>, vector<16x32xf32> -> vector<16x32xf32>
    %c0_33 = arith.constant 0 : index
    %c0_34 = arith.constant 0 : index
    %74 = vector.load %arg8[%c0_33, %c0_34] : memref<1x32xf32, #tpu.memory_space<vmem>>, vector<1x32xf32>
    %75 = vector.broadcast %74 : vector<1x32xf32> to vector<16x32xf32>
    %76 = arith.addf %73, %75 : vector<16x32xf32>
    %c0_35 = arith.constant 0 : index
    %c0_36 = arith.constant 0 : index
    %77 = vector.load %arg9[%c0_35, %c0_36] : memref<32x1xf32, #tpu.memory_space<vmem>>, vector<32x1xf32>
    %cst_37 = arith.constant dense<0.000000e+00> : vector<16x1xf32>
    %78 = tpu.matmul %76, %77, %cst_37 {dimension_numbers = #tpu.dot_dimension_numbers<[1], [0], [0], [1], [0, 0, 1, 1], [], []>} : vector<16x32xf32>, vector<32x1xf32>, vector<16x1xf32> -> vector<16x1xf32>
    %c0_38 = arith.constant 0 : index
    %c0_39 = arith.constant 0 : index
    %79 = vector.load %arg10[%c0_38, %c0_39] : memref<1x1xf32, #tpu.memory_space<vmem>>, vector<1x1xf32>
    %80 = vector.broadcast %79 : vector<1x1xf32> to vector<16x1xf32>
    %81 = arith.addf %78, %80 : vector<16x1xf32>
    %cst_40 = arith.constant 1.000000e+02 : f32
    %82 = vector.broadcast %cst_40 : f32 to vector<16x1xf32>
    %83 = arith.divf %81, %82 : vector<16x1xf32>
    %84 = arith.negf %83 : vector<16x1xf32>
    %85 = math.exp %84 : vector<16x1xf32>
    %cst_41 = arith.constant 1.000000e+00 : f32
    %86 = vector.broadcast %cst_41 : f32 to vector<16x1xf32>
    %87 = arith.addf %86, %85 : vector<16x1xf32>
    %88 = arith.divf %86, %87 : vector<16x1xf32>
    %cst_42 = arith.constant 0.000000e+00 : f32
    %89 = vector.broadcast %cst_42 : f32 to vector<16x1xf32>
    %90 = arith.cmpf ogt, %67, %89 : vector<16x1xf32>
    %cst_43 = arith.constant -1.000000e+30 : f32
    %91 = vector.broadcast %cst_43 : f32 to vector<16x1xf32>
    %92 = arith.select %90, %88, %91 : vector<16x1xi1>, vector<16x1xf32>
    %93 = tpu.transpose %92, [1, 0] : vector<16x1xf32> -> vector<1x16xf32>
    %94 = tpu.iota {dimensions = array<i32: 0>} : vector<16x16xi32>
    %95 = tpu.iota {dimensions = array<i32: 1>} : vector<16x16xi32>
    %96 = vector.broadcast %93 : vector<1x16xf32> to vector<16x16xf32>
    %97 = vector.broadcast %92 : vector<16x1xf32> to vector<16x16xf32>
    %98 = arith.cmpf ogt, %96, %97 : vector<16x16xf32>
    %99 = vector.broadcast %93 : vector<1x16xf32> to vector<16x16xf32>
    %100 = vector.broadcast %92 : vector<16x1xf32> to vector<16x16xf32>
    %101 = arith.cmpf oeq, %99, %100 : vector<16x16xf32>
    %102 = arith.cmpi slt, %95, %94 : vector<16x16xi32>
    %103 = arith.andi %101, %102 : vector<16x16xi1>
    %104 = arith.ori %98, %103 : vector<16x16xi1>
    %105 = arith.extui %104 : vector<16x16xi1> to vector<16x16xi32>
    %106 = arith.sitofp %105 : vector<16x16xi32> to vector<16x16xf32>
    %cst_44 = arith.constant dense<0.000000e+00> : vector<16xf32>
    %107 = vector.multi_reduction <add>, %106, %cst_44 [1] : vector<16x16xf32> to vector<16xf32>
    %108 = vector.shape_cast %107 : vector<16xf32> to vector<16x1xf32>
    %cst_45 = arith.constant 9.000000e+00 : f32
    %109 = vector.broadcast %cst_45 : f32 to vector<16x1xf32>
    %110 = arith.cmpf olt, %108, %109 : vector<16x1xf32>
    %111 = arith.extui %110 : vector<16x1xi1> to vector<16x1xi32>
    %112 = arith.sitofp %111 : vector<16x1xi32> to vector<16x1xf32>
    %113 = arith.mulf %112, %88 : vector<16x1xf32>
    %114 = vector.broadcast %113 : vector<16x1xf32> to vector<16x32xf32>
    %115 = arith.mulf %76, %114 : vector<16x32xf32>
    %cst_46 = arith.constant dense<0.000000e+00> : vector<16x32xf32>
    %116 = tpu.matmul %13, %115, %cst_46 {dimension_numbers = #tpu.dot_dimension_numbers<[1], [0], [0], [1], [0, 0, 1, 1], [], []>} : vector<16x16xf32>, vector<16x32xf32>, vector<16x32xf32> -> vector<16x32xf32>
    %c0_47 = arith.constant 0 : index
    %c0_48 = arith.constant 0 : index
    %117 = vector.load %arg11[%c0_47, %c0_48] : memref<32x32xf32, #tpu.memory_space<vmem>>, vector<32x32xf32>
    %cst_49 = arith.constant dense<0.000000e+00> : vector<16x32xf32>
    %118 = tpu.matmul %116, %117, %cst_49 {dimension_numbers = #tpu.dot_dimension_numbers<[1], [0], [0], [1], [0, 0, 1, 1], [], []>} : vector<16x32xf32>, vector<32x32xf32>, vector<16x32xf32> -> vector<16x32xf32>
    %c0_50 = arith.constant 0 : index
    %c0_51 = arith.constant 0 : index
    %119 = vector.load %arg12[%c0_50, %c0_51] : memref<1x32xf32, #tpu.memory_space<vmem>>, vector<1x32xf32>
    %120 = vector.broadcast %119 : vector<1x32xf32> to vector<16x32xf32>
    %121 = arith.addf %118, %120 : vector<16x32xf32>
    %c0_52 = arith.constant 0 : index
    %c0_53 = arith.constant 0 : index
    %122 = vector.load %arg13[%c0_52, %c0_53] : memref<32x1xf32, #tpu.memory_space<vmem>>, vector<32x1xf32>
    %cst_54 = arith.constant dense<0.000000e+00> : vector<16x1xf32>
    %123 = tpu.matmul %121, %122, %cst_54 {dimension_numbers = #tpu.dot_dimension_numbers<[1], [0], [0], [1], [0, 0, 1, 1], [], []>} : vector<16x32xf32>, vector<32x1xf32>, vector<16x1xf32> -> vector<16x1xf32>
    %c0_55 = arith.constant 0 : index
    %c0_56 = arith.constant 0 : index
    %124 = vector.load %arg14[%c0_55, %c0_56] : memref<1x1xf32, #tpu.memory_space<vmem>>, vector<1x1xf32>
    %125 = vector.broadcast %124 : vector<1x1xf32> to vector<16x1xf32>
    %126 = arith.addf %123, %125 : vector<16x1xf32>
    %cst_57 = arith.constant 1.000000e+02 : f32
    %127 = vector.broadcast %cst_57 : f32 to vector<16x1xf32>
    %128 = arith.divf %126, %127 : vector<16x1xf32>
    %129 = arith.negf %128 : vector<16x1xf32>
    %130 = math.exp %129 : vector<16x1xf32>
    %cst_58 = arith.constant 1.000000e+00 : f32
    %131 = vector.broadcast %cst_58 : f32 to vector<16x1xf32>
    %132 = arith.addf %131, %130 : vector<16x1xf32>
    %133 = arith.divf %131, %132 : vector<16x1xf32>
    %cst_59 = arith.constant 0.000000e+00 : f32
    %134 = vector.broadcast %cst_59 : f32 to vector<16x1xf32>
    %135 = arith.cmpf ogt, %112, %134 : vector<16x1xf32>
    %cst_60 = arith.constant -1.000000e+30 : f32
    %136 = vector.broadcast %cst_60 : f32 to vector<16x1xf32>
    %137 = arith.select %135, %133, %136 : vector<16x1xi1>, vector<16x1xf32>
    %138 = tpu.transpose %137, [1, 0] : vector<16x1xf32> -> vector<1x16xf32>
    %139 = tpu.iota {dimensions = array<i32: 0>} : vector<16x16xi32>
    %140 = tpu.iota {dimensions = array<i32: 1>} : vector<16x16xi32>
    %141 = vector.broadcast %138 : vector<1x16xf32> to vector<16x16xf32>
    %142 = vector.broadcast %137 : vector<16x1xf32> to vector<16x16xf32>
    %143 = arith.cmpf ogt, %141, %142 : vector<16x16xf32>
    %144 = vector.broadcast %138 : vector<1x16xf32> to vector<16x16xf32>
    %145 = vector.broadcast %137 : vector<16x1xf32> to vector<16x16xf32>
    %146 = arith.cmpf oeq, %144, %145 : vector<16x16xf32>
    %147 = arith.cmpi slt, %140, %139 : vector<16x16xi32>
    %148 = arith.andi %146, %147 : vector<16x16xi1>
    %149 = arith.ori %143, %148 : vector<16x16xi1>
    %150 = arith.extui %149 : vector<16x16xi1> to vector<16x16xi32>
    %151 = arith.sitofp %150 : vector<16x16xi32> to vector<16x16xf32>
    %cst_61 = arith.constant dense<0.000000e+00> : vector<16xf32>
    %152 = vector.multi_reduction <add>, %151, %cst_61 [1] : vector<16x16xf32> to vector<16xf32>
    %153 = vector.shape_cast %152 : vector<16xf32> to vector<16x1xf32>
    %cst_62 = arith.constant 5.000000e+00 : f32
    %154 = vector.broadcast %cst_62 : f32 to vector<16x1xf32>
    %155 = arith.cmpf olt, %153, %154 : vector<16x1xf32>
    %156 = arith.extui %155 : vector<16x1xi1> to vector<16x1xi32>
    %157 = arith.sitofp %156 : vector<16x1xi32> to vector<16x1xf32>
    %158 = arith.mulf %157, %133 : vector<16x1xf32>
    %159 = vector.broadcast %158 : vector<16x1xf32> to vector<16x32xf32>
    %160 = arith.mulf %121, %159 : vector<16x32xf32>
    %cst_63 = arith.constant dense<0.000000e+00> : vector<16x32xf32>
    %161 = tpu.matmul %13, %160, %cst_63 {dimension_numbers = #tpu.dot_dimension_numbers<[1], [0], [0], [1], [0, 0, 1, 1], [], []>} : vector<16x16xf32>, vector<16x32xf32>, vector<16x32xf32> -> vector<16x32xf32>
    %c0_64 = arith.constant 0 : index
    %c0_65 = arith.constant 0 : index
    %162 = vector.load %arg15[%c0_64, %c0_65] : memref<32x32xf32, #tpu.memory_space<vmem>>, vector<32x32xf32>
    %cst_66 = arith.constant dense<0.000000e+00> : vector<16x32xf32>
    %163 = tpu.matmul %161, %162, %cst_66 {dimension_numbers = #tpu.dot_dimension_numbers<[1], [0], [0], [1], [0, 0, 1, 1], [], []>} : vector<16x32xf32>, vector<32x32xf32>, vector<16x32xf32> -> vector<16x32xf32>
    %c0_67 = arith.constant 0 : index
    %c0_68 = arith.constant 0 : index
    %164 = vector.load %arg16[%c0_67, %c0_68] : memref<1x32xf32, #tpu.memory_space<vmem>>, vector<1x32xf32>
    %165 = vector.broadcast %164 : vector<1x32xf32> to vector<16x32xf32>
    %166 = arith.addf %163, %165 : vector<16x32xf32>
    %c0_69 = arith.constant 0 : index
    %c0_70 = arith.constant 0 : index
    %167 = vector.load %arg17[%c0_69, %c0_70] : memref<32x1xf32, #tpu.memory_space<vmem>>, vector<32x1xf32>
    %cst_71 = arith.constant dense<0.000000e+00> : vector<16x1xf32>
    %168 = tpu.matmul %166, %167, %cst_71 {dimension_numbers = #tpu.dot_dimension_numbers<[1], [0], [0], [1], [0, 0, 1, 1], [], []>} : vector<16x32xf32>, vector<32x1xf32>, vector<16x1xf32> -> vector<16x1xf32>
    %c0_72 = arith.constant 0 : index
    %c0_73 = arith.constant 0 : index
    %169 = vector.load %arg18[%c0_72, %c0_73] : memref<1x1xf32, #tpu.memory_space<vmem>>, vector<1x1xf32>
    %170 = vector.broadcast %169 : vector<1x1xf32> to vector<16x1xf32>
    %171 = arith.addf %168, %170 : vector<16x1xf32>
    %cst_74 = arith.constant 1.000000e+02 : f32
    %172 = vector.broadcast %cst_74 : f32 to vector<16x1xf32>
    %173 = arith.divf %171, %172 : vector<16x1xf32>
    %174 = arith.negf %173 : vector<16x1xf32>
    %175 = math.exp %174 : vector<16x1xf32>
    %cst_75 = arith.constant 1.000000e+00 : f32
    %176 = vector.broadcast %cst_75 : f32 to vector<16x1xf32>
    %177 = arith.addf %176, %175 : vector<16x1xf32>
    %178 = arith.divf %176, %177 : vector<16x1xf32>
    %cst_76 = arith.constant 0.000000e+00 : f32
    %179 = vector.broadcast %cst_76 : f32 to vector<16x1xf32>
    %180 = arith.cmpf ogt, %157, %179 : vector<16x1xf32>
    %cst_77 = arith.constant -1.000000e+30 : f32
    %181 = vector.broadcast %cst_77 : f32 to vector<16x1xf32>
    %182 = arith.select %180, %178, %181 : vector<16x1xi1>, vector<16x1xf32>
    %183 = tpu.transpose %182, [1, 0] : vector<16x1xf32> -> vector<1x16xf32>
    %184 = tpu.iota {dimensions = array<i32: 0>} : vector<16x16xi32>
    %185 = tpu.iota {dimensions = array<i32: 1>} : vector<16x16xi32>
    %186 = vector.broadcast %183 : vector<1x16xf32> to vector<16x16xf32>
    %187 = vector.broadcast %182 : vector<16x1xf32> to vector<16x16xf32>
    %188 = arith.cmpf ogt, %186, %187 : vector<16x16xf32>
    %189 = vector.broadcast %183 : vector<1x16xf32> to vector<16x16xf32>
    %190 = vector.broadcast %182 : vector<16x1xf32> to vector<16x16xf32>
    %191 = arith.cmpf oeq, %189, %190 : vector<16x16xf32>
    %192 = arith.cmpi slt, %185, %184 : vector<16x16xi32>
    %193 = arith.andi %191, %192 : vector<16x16xi1>
    %194 = arith.ori %188, %193 : vector<16x16xi1>
    %195 = arith.extui %194 : vector<16x16xi1> to vector<16x16xi32>
    %196 = arith.sitofp %195 : vector<16x16xi32> to vector<16x16xf32>
    %cst_78 = arith.constant dense<0.000000e+00> : vector<16xf32>
    %197 = vector.multi_reduction <add>, %196, %cst_78 [1] : vector<16x16xf32> to vector<16xf32>
    %198 = vector.shape_cast %197 : vector<16xf32> to vector<16x1xf32>
    %cst_79 = arith.constant 2.000000e+00 : f32
    %199 = vector.broadcast %cst_79 : f32 to vector<16x1xf32>
    %200 = arith.cmpf olt, %198, %199 : vector<16x1xf32>
    %201 = arith.extui %200 : vector<16x1xi1> to vector<16x1xi32>
    %202 = arith.sitofp %201 : vector<16x1xi32> to vector<16x1xf32>
    %203 = arith.mulf %202, %178 : vector<16x1xf32>
    %204 = vector.broadcast %203 : vector<16x1xf32> to vector<16x32xf32>
    %205 = arith.mulf %166, %204 : vector<16x32xf32>
    %cst_80 = arith.constant dense<0.000000e+00> : vector<16x32xf32>
    %206 = tpu.matmul %13, %205, %cst_80 {dimension_numbers = #tpu.dot_dimension_numbers<[1], [0], [0], [1], [0, 0, 1, 1], [], []>} : vector<16x16xf32>, vector<16x32xf32>, vector<16x32xf32> -> vector<16x32xf32>
    %c0_81 = arith.constant 0 : index
    %c0_82 = arith.constant 0 : index
    %207 = vector.load %arg19[%c0_81, %c0_82] : memref<32x32xf32, #tpu.memory_space<vmem>>, vector<32x32xf32>
    %cst_83 = arith.constant dense<0.000000e+00> : vector<16x32xf32>
    %208 = tpu.matmul %206, %207, %cst_83 {dimension_numbers = #tpu.dot_dimension_numbers<[1], [0], [0], [1], [0, 0, 1, 1], [], []>} : vector<16x32xf32>, vector<32x32xf32>, vector<16x32xf32> -> vector<16x32xf32>
    %c0_84 = arith.constant 0 : index
    %c0_85 = arith.constant 0 : index
    %209 = vector.load %arg20[%c0_84, %c0_85] : memref<1x32xf32, #tpu.memory_space<vmem>>, vector<1x32xf32>
    %210 = vector.broadcast %209 : vector<1x32xf32> to vector<16x32xf32>
    %211 = arith.addf %208, %210 : vector<16x32xf32>
    %212 = vector.broadcast %202 : vector<16x1xf32> to vector<16x32xf32>
    %213 = arith.mulf %211, %212 : vector<16x32xf32>
    %cst_86 = arith.constant dense<0.000000e+00> : vector<16x32xf32>
    %214 = tpu.matmul %13, %213, %cst_86 {dimension_numbers = #tpu.dot_dimension_numbers<[1], [0], [0], [1], [0, 0, 1, 1], [], []>} : vector<16x16xf32>, vector<16x32xf32>, vector<16x32xf32> -> vector<16x32xf32>
    %c0_87 = arith.constant 0 : index
    %c0_88 = arith.constant 0 : index
    %215 = vector.load %arg21[%c0_87, %c0_88] : memref<32x32xf32, #tpu.memory_space<vmem>>, vector<32x32xf32>
    %cst_89 = arith.constant dense<0.000000e+00> : vector<16x32xf32>
    %216 = tpu.matmul %214, %215, %cst_89 {dimension_numbers = #tpu.dot_dimension_numbers<[1], [0], [0], [1], [0, 0, 1, 1], [], []>} : vector<16x32xf32>, vector<32x32xf32>, vector<16x32xf32> -> vector<16x32xf32>
    %c0_90 = arith.constant 0 : index
    %c0_91 = arith.constant 0 : index
    %217 = vector.load %arg22[%c0_90, %c0_91] : memref<1x32xf32, #tpu.memory_space<vmem>>, vector<1x32xf32>
    %218 = vector.broadcast %217 : vector<1x32xf32> to vector<16x32xf32>
    %219 = arith.addf %216, %218 : vector<16x32xf32>
    %220 = arith.addf %219, %166 : vector<16x32xf32>
    %221 = vector.broadcast %157 : vector<16x1xf32> to vector<16x32xf32>
    %222 = arith.mulf %220, %221 : vector<16x32xf32>
    %cst_92 = arith.constant dense<0.000000e+00> : vector<16x32xf32>
    %223 = tpu.matmul %13, %222, %cst_92 {dimension_numbers = #tpu.dot_dimension_numbers<[1], [0], [0], [1], [0, 0, 1, 1], [], []>} : vector<16x16xf32>, vector<16x32xf32>, vector<16x32xf32> -> vector<16x32xf32>
    %c0_93 = arith.constant 0 : index
    %c0_94 = arith.constant 0 : index
    %224 = vector.load %arg23[%c0_93, %c0_94] : memref<32x32xf32, #tpu.memory_space<vmem>>, vector<32x32xf32>
    %cst_95 = arith.constant dense<0.000000e+00> : vector<16x32xf32>
    %225 = tpu.matmul %223, %224, %cst_95 {dimension_numbers = #tpu.dot_dimension_numbers<[1], [0], [0], [1], [0, 0, 1, 1], [], []>} : vector<16x32xf32>, vector<32x32xf32>, vector<16x32xf32> -> vector<16x32xf32>
    %c0_96 = arith.constant 0 : index
    %c0_97 = arith.constant 0 : index
    %226 = vector.load %arg24[%c0_96, %c0_97] : memref<1x32xf32, #tpu.memory_space<vmem>>, vector<1x32xf32>
    %227 = vector.broadcast %226 : vector<1x32xf32> to vector<16x32xf32>
    %228 = arith.addf %225, %227 : vector<16x32xf32>
    %229 = arith.addf %228, %121 : vector<16x32xf32>
    %230 = vector.broadcast %112 : vector<16x1xf32> to vector<16x32xf32>
    %231 = arith.mulf %229, %230 : vector<16x32xf32>
    %cst_98 = arith.constant dense<0.000000e+00> : vector<16x32xf32>
    %232 = tpu.matmul %13, %231, %cst_98 {dimension_numbers = #tpu.dot_dimension_numbers<[1], [0], [0], [1], [0, 0, 1, 1], [], []>} : vector<16x16xf32>, vector<16x32xf32>, vector<16x32xf32> -> vector<16x32xf32>
    %c0_99 = arith.constant 0 : index
    %c0_100 = arith.constant 0 : index
    %233 = vector.load %arg25[%c0_99, %c0_100] : memref<32x32xf32, #tpu.memory_space<vmem>>, vector<32x32xf32>
    %cst_101 = arith.constant dense<0.000000e+00> : vector<16x32xf32>
    %234 = tpu.matmul %232, %233, %cst_101 {dimension_numbers = #tpu.dot_dimension_numbers<[1], [0], [0], [1], [0, 0, 1, 1], [], []>} : vector<16x32xf32>, vector<32x32xf32>, vector<16x32xf32> -> vector<16x32xf32>
    %c0_102 = arith.constant 0 : index
    %c0_103 = arith.constant 0 : index
    %235 = vector.load %arg26[%c0_102, %c0_103] : memref<1x32xf32, #tpu.memory_space<vmem>>, vector<1x32xf32>
    %236 = vector.broadcast %235 : vector<1x32xf32> to vector<16x32xf32>
    %237 = arith.addf %234, %236 : vector<16x32xf32>
    %238 = arith.addf %237, %76 : vector<16x32xf32>
    %239 = vector.broadcast %67 : vector<16x1xf32> to vector<16x32xf32>
    %240 = arith.mulf %238, %239 : vector<16x32xf32>
    %cst_104 = arith.constant dense<0.000000e+00> : vector<16x32xf32>
    %241 = tpu.matmul %13, %240, %cst_104 {dimension_numbers = #tpu.dot_dimension_numbers<[1], [0], [0], [1], [0, 0, 1, 1], [], []>} : vector<16x16xf32>, vector<16x32xf32>, vector<16x32xf32> -> vector<16x32xf32>
    %c0_105 = arith.constant 0 : index
    %c0_106 = arith.constant 0 : index
    %242 = vector.load %arg27[%c0_105, %c0_106] : memref<32x32xf32, #tpu.memory_space<vmem>>, vector<32x32xf32>
    %cst_107 = arith.constant dense<0.000000e+00> : vector<16x32xf32>
    %243 = tpu.matmul %241, %242, %cst_107 {dimension_numbers = #tpu.dot_dimension_numbers<[1], [0], [0], [1], [0, 0, 1, 1], [], []>} : vector<16x32xf32>, vector<32x32xf32>, vector<16x32xf32> -> vector<16x32xf32>
    %c0_108 = arith.constant 0 : index
    %c0_109 = arith.constant 0 : index
    %244 = vector.load %arg28[%c0_108, %c0_109] : memref<1x32xf32, #tpu.memory_space<vmem>>, vector<1x32xf32>
    %245 = vector.broadcast %244 : vector<1x32xf32> to vector<16x32xf32>
    %246 = arith.addf %243, %245 : vector<16x32xf32>
    %247 = arith.addf %246, %31 : vector<16x32xf32>
    %cst_110 = arith.constant dense<0.000000e+00> : vector<16x32xf32>
    %248 = tpu.matmul %13, %247, %cst_110 {dimension_numbers = #tpu.dot_dimension_numbers<[1], [0], [0], [1], [0, 0, 1, 1], [], []>} : vector<16x16xf32>, vector<16x32xf32>, vector<16x32xf32> -> vector<16x32xf32>
    %c0_111 = arith.constant 0 : index
    %c0_112 = arith.constant 0 : index
    %249 = vector.load %arg29[%c0_111, %c0_112] : memref<32x32xf32, #tpu.memory_space<vmem>>, vector<32x32xf32>
    %cst_113 = arith.constant dense<0.000000e+00> : vector<16x32xf32>
    %250 = tpu.matmul %248, %249, %cst_113 {dimension_numbers = #tpu.dot_dimension_numbers<[1], [0], [0], [1], [0, 0, 1, 1], [], []>} : vector<16x32xf32>, vector<32x32xf32>, vector<16x32xf32> -> vector<16x32xf32>
    %cst_114 = arith.constant dense<0.000000e+00> : vector<16x32xf32>
    %251 = tpu.matmul %13, %19, %cst_114 {dimension_numbers = #tpu.dot_dimension_numbers<[1], [0], [0], [1], [0, 0, 1, 1], [], []>} : vector<16x16xf32>, vector<16x32xf32>, vector<16x32xf32> -> vector<16x32xf32>
    %c0_115 = arith.constant 0 : index
    %c0_116 = arith.constant 0 : index
    %252 = vector.load %arg30[%c0_115, %c0_116] : memref<32x32xf32, #tpu.memory_space<vmem>>, vector<32x32xf32>
    %cst_117 = arith.constant dense<0.000000e+00> : vector<16x32xf32>
    %253 = tpu.matmul %251, %252, %cst_117 {dimension_numbers = #tpu.dot_dimension_numbers<[1], [0], [0], [1], [0, 0, 1, 1], [], []>} : vector<16x32xf32>, vector<32x32xf32>, vector<16x32xf32> -> vector<16x32xf32>
    %254 = arith.addf %250, %253 : vector<16x32xf32>
    %c0_118 = arith.constant 0 : index
    %c0_119 = arith.constant 0 : index
    %255 = vector.load %arg31[%c0_118, %c0_119] : memref<1x32xf32, #tpu.memory_space<vmem>>, vector<1x32xf32>
    %256 = vector.broadcast %255 : vector<1x32xf32> to vector<16x32xf32>
    %257 = arith.addf %254, %256 : vector<16x32xf32>
    %c0_120 = arith.constant 0 : index
    %c0_121 = arith.constant 0 : index
    %258 = vector.load %arg33[%c0_120, %c0_121] : memref<16x32xf32, #tpu.memory_space<vmem>>, vector<16x32xf32>
    tpu.vector_store %arg33[%c0_120, %c0_121], %257 {strides = array<i32>} : memref<16x32xf32, #tpu.memory_space<vmem>>, vector<16x32xf32>,
    return
  }
}

module attributes {stable_mosaic.version = 11 : i64} {
  func.func @_tail_kernel(%arg0: memref<32x32xf32, #tpu.memory_space<vmem>>, %arg1: memref<16x16xf32, #tpu.memory_space<vmem>>, %arg2: memref<16x32xf32, #tpu.memory_space<vmem>>, %arg3: memref<32x32xf32, #tpu.memory_space<vmem>>, %arg4: memref<32x32xf32, #tpu.memory_space<vmem>>, %arg5: memref<32x32xf32, #tpu.memory_space<vmem>>, %arg6: memref<32x32xf32, #tpu.memory_space<vmem>>) attributes {dimension_semantics = [], scalar_prefetch = 0 : i64, scratch_operands = 0 : i64, tpu.core_type = #tpu.core_type<tc>} {
    %c0 = arith.constant 0 : index
    %c0_0 = arith.constant 0 : index
    %0 = vector.load %arg0[%c0, %c0_0] : memref<32x32xf32, #tpu.memory_space<vmem>>, vector<32x32xf32>
    %1 = vector.extract_strided_slice %0 {offsets = [0, 0], sizes = [32, 16], strides = [1, 1]} : vector<32x32xf32> to vector<32x16xf32>
    %2 = vector.extract_strided_slice %0 {offsets = [0, 16], sizes = [32, 16], strides = [1, 1]} : vector<32x32xf32> to vector<32x16xf32>
    %3 = arith.addf %1, %2 : vector<32x16xf32>
    %c0_1 = arith.constant 0 : index
    %c0_2 = arith.constant 0 : index
    %4 = vector.load %arg1[%c0_1, %c0_2] : memref<16x16xf32, #tpu.memory_space<vmem>>, vector<16x16xf32>
    %cst = arith.constant dense<0.000000e+00> : vector<32x16xf32>
    %5 = tpu.matmul %3, %4, %cst {dimension_numbers = #tpu.dot_dimension_numbers<[1], [0], [0], [1], [0, 0, 1, 1], [], []>} : vector<32x16xf32>, vector<16x16xf32>, vector<32x16xf32> -> vector<32x16xf32>
    %c0_3 = arith.constant 0 : index
    %c0_4 = arith.constant 0 : index
    %6 = vector.load %arg2[%c0_3, %c0_4] : memref<16x32xf32, #tpu.memory_space<vmem>>, vector<16x32xf32>
    %cst_5 = arith.constant dense<0.000000e+00> : vector<32x32xf32>
    %7 = tpu.matmul %5, %6, %cst_5 {dimension_numbers = #tpu.dot_dimension_numbers<[1], [0], [0], [1], [0, 0, 1, 1], [], []>} : vector<32x16xf32>, vector<16x32xf32>, vector<32x32xf32> -> vector<32x32xf32>
    %8 = math.absf %7 : vector<32x32xf32>
    %9 = tpu.iota {dimensions = array<i32: 0>} : vector<32x32xi32>
    %10 = tpu.iota {dimensions = array<i32: 1>} : vector<32x32xi32>
    %11 = arith.cmpi eq, %9, %10 : vector<32x32xi32>
    %cst_6 = arith.constant 1.000000e+00 : f32
    %12 = vector.broadcast %cst_6 : f32 to vector<32x32xf32>
    %13 = arith.select %11, %12, %8 : vector<32x32xi1>, vector<32x32xf32>
    %c0_7 = arith.constant 0 : index
    %c0_8 = arith.constant 0 : index
    %14 = vector.load %arg5[%c0_7, %c0_8] : memref<32x32xf32, #tpu.memory_space<vmem>>, vector<32x32xf32>
    tpu.vector_store %arg5[%c0_7, %c0_8], %13 {strides = array<i32>} : memref<32x32xf32, #tpu.memory_space<vmem>>, vector<32x32xf32>,
    %cst_9 = arith.constant dense<0.000000e+00> : vector<32x32xf32>
    %15 = tpu.matmul %13, %13, %cst_9 {dimension_numbers = #tpu.dot_dimension_numbers<[1], [1], [0], [0], [0, 0, 1, 0], [], []>} : vector<32x32xf32>, vector<32x32xf32>, vector<32x32xf32> -> vector<32x32xf32>
    %cst_10 = arith.constant 1.000000e+00 : f32
    %16 = vector.broadcast %cst_10 : f32 to vector<32x32xf32>
    %17 = arith.select %11, %16, %15 : vector<32x32xi1>, vector<32x32xf32>
    %18 = math.absf %17 : vector<32x32xf32>
    %c0_11 = arith.constant 0 : index
    %c0_12 = arith.constant 0 : index
    %19 = vector.load %arg3[%c0_11, %c0_12] : memref<32x32xf32, #tpu.memory_space<vmem>>, vector<32x32xf32>
    %cst_13 = arith.constant dense<0.000000e+00> : vector<32x32xf32>
    %20 = tpu.matmul %18, %19, %cst_13 {dimension_numbers = #tpu.dot_dimension_numbers<[1], [0], [0], [1], [0, 0, 1, 1], [], []>} : vector<32x32xf32>, vector<32x32xf32>, vector<32x32xf32> -> vector<32x32xf32>
    %cst_14 = arith.constant dense<0.000000e+00> : vector<32x32xf32>
    %21 = tpu.matmul %13, %20, %cst_14 {dimension_numbers = #tpu.dot_dimension_numbers<[1], [0], [0], [1], [0, 0, 1, 1], [], []>} : vector<32x32xf32>, vector<32x32xf32>, vector<32x32xf32> -> vector<32x32xf32>
    %cst_15 = arith.constant 0.000000e+00 : f32
    %22 = vector.broadcast %cst_15 : f32 to vector<32x32xf32>
    %23 = arith.maximumf %21, %22 : vector<32x32xf32>
    %c0_16 = arith.constant 0 : index
    %c0_17 = arith.constant 0 : index
    %24 = vector.load %arg4[%c0_16, %c0_17] : memref<32x32xf32, #tpu.memory_space<vmem>>, vector<32x32xf32>
    %cst_18 = arith.constant dense<0.000000e+00> : vector<32x32xf32>
    %25 = tpu.matmul %23, %24, %cst_18 {dimension_numbers = #tpu.dot_dimension_numbers<[1], [0], [0], [1], [0, 0, 1, 1], [], []>} : vector<32x32xf32>, vector<32x32xf32>, vector<32x32xf32> -> vector<32x32xf32>
    %cst_19 = arith.constant dense<0.000000e+00> : vector<32x32xf32>
    %26 = tpu.matmul %13, %25, %cst_19 {dimension_numbers = #tpu.dot_dimension_numbers<[1], [0], [0], [1], [0, 0, 1, 1], [], []>} : vector<32x32xf32>, vector<32x32xf32>, vector<32x32xf32> -> vector<32x32xf32>
    %cst_20 = arith.constant 0.000000e+00 : f32
    %27 = vector.broadcast %cst_20 : f32 to vector<32x32xf32>
    %28 = arith.maximumf %26, %27 : vector<32x32xf32>
    %29 = tpu.transpose %28, [1, 0] : vector<32x32xf32> -> vector<32x32xf32>
    %30 = arith.addf %28, %29 : vector<32x32xf32>
    %cst_21 = arith.constant 5.000000e-01 : f32
    %31 = vector.broadcast %cst_21 : f32 to vector<32x32xf32>
    %32 = arith.mulf %30, %31 : vector<32x32xf32>
    %cst_22 = arith.constant 1.000000e+00 : f32
    %33 = vector.broadcast %cst_22 : f32 to vector<32x32xf32>
    %34 = arith.select %11, %33, %32 : vector<32x32xi1>, vector<32x32xf32>
    %35 = math.absf %34 : vector<32x32xf32>
    %c0_23 = arith.constant 0 : index
    %c0_24 = arith.constant 0 : index
    %36 = vector.load %arg6[%c0_23, %c0_24] : memref<32x32xf32, #tpu.memory_space<vmem>>, vector<32x32xf32>
    tpu.vector_store %arg6[%c0_23, %c0_24], %35 {strides = array<i32>} : memref<32x32xf32, #tpu.memory_space<vmem>>, vector<32x32xf32>,
    return
  }
}

</mosaic_0001>

<llo_original>
// kernel: custom-call.2
$region0: #{custom-call.2}
  %s0 = inlined_call_operand.vmem [shape: f32[8,8], index: 0, kind: input, shape index: {}]
  %s1 = inlined_call_operand.vmem [shape: f32[8,8], index: 1, kind: input, shape index: {}]
  %s2 = inlined_call_operand.vmem [shape: f32[8,8], index: 2, kind: input, shape index: {}]
  %s3 = inlined_call_operand.vmem [shape: f32[8,8], index: 3, kind: input, shape index: {}]
  %s4 = inlined_call_operand.vmem [shape: f32[8], index: 4, kind: output, shape index: {0}]
  %s5 = inlined_call_operand.vmem [shape: f32[8], index: 5, kind: output, shape index: {1}]
  %s6 = inlined_call_operand.vmem [shape: f32[8,8], index: 6, kind: output, shape index: {2}]
  %s7 = inlined_call_operand.vmem [shape: f32[8,8], index: 7, kind: output, shape index: {3}]
  %s8 = inlined_call_operand.vmem [shape: f32[8,8], index: 8, kind: output, shape index: {4}]
  %s9 = inlined_call_operand.vmem [shape: f32[8,8], index: 9, kind: output, shape index: {5}]
  %10 = xla_tuple %s4, %s5, %s6, %s7, %s8, %s9
  $region1: #{custom-call.2} parent=0
    #allocation0 [shape = 'u8[4096]{0}', space=vmem, size = 0x1000, scoped, tag = 'operand span for operand 0']
    #allocation1 [shape = 'u8[4096]{0}', space=vmem, size = 0x1000, scoped, tag = 'operand span for operand 1']
    #allocation2 [shape = 'u8[4096]{0}', space=vmem, size = 0x1000, scoped, tag = 'operand span for operand 2']
    #allocation3 [shape = 'u8[4096]{0}', space=vmem, size = 0x1000, scoped, tag = 'operand span for operand 3']
    #allocation4 [shape = 'u8[4096]{0}', space=vmem, size = 0x1000, scoped, tag = 'operand span for operand 4']
    #allocation5 [shape = 'u8[512]{0}', space=vmem, size = 0x400, scoped, tag = 'packed  for operand 4']
    #allocation6 [shape = 'u8[4096]{0}', space=vmem, size = 0x1000, scoped, tag = 'operand span for operand 5']
    #allocation7 [shape = 'u8[512]{0}', space=vmem, size = 0x400, scoped, tag = 'packed  for operand 5']
    #allocation8 [shape = 'u8[4096]{0}', space=vmem, size = 0x1000, scoped, tag = 'operand span for operand 6']
    #allocation9 [shape = 'u8[4096]{0}', space=vmem, size = 0x1000, scoped, tag = 'operand span for operand 7']
    #allocation10 [shape = 'u8[4096]{0}', space=vmem, size = 0x1000, scoped, tag = 'operand span for operand 8']
    #allocation11 [shape = 'u8[4096]{0}', space=vmem, size = 0x1000, scoped, tag = 'operand span for operand 9']
    #allocation12 [shape = 'f32[8,8]{1,0}', space=vmem, size = 0x1000, scoped, tag = 'a top-left matrix']
    #allocation13 [shape = 'f32[8,8]{1,0}', space=vmem, size = 0x1000, scoped, tag = 'a top-right matrix']
    #allocation14 [shape = 'f32[8,8]{1,0}', space=vmem, size = 0x1000, scoped, tag = 'a bottom-left matrix']
    #allocation15 [shape = 'f32[8,8]{1,0}', space=vmem, size = 0x1000, scoped, tag = 'a bottom-right matrix']
    %p12 = scmp.gt.s32.totalorder 8, 0
    // Predicated region
    $region2: #{custom-call.2} parent=1 // pred_check
      %p13 = pneg %p12
    $region3: #{custom-call.2} parent=1 // pred_check_branch
      %15 = sbr.rel (%p13) target = $region5
    $region4: #{custom-call.2} parent=1 // pred_region
      %s16 = sshra.s32 8, 3
      %p17 = scmp.gt.s32.totalorder %s16, 0
      // Predicated region
      $region6: #{custom-call.2} parent=4 // pred_check
        %p18 = pneg %p17
      $region7: #{custom-call.2} parent=4 // pred_check_branch
        %20 = sbr.rel (%p18) target = $region9
      $region8: #{custom-call.2} parent=4 // pred_region
        %s21 = ssub.s32 %s16, 1
        %s22 = smul.u32 %s21, 128
        %s23 = sshra.s32 %s22, 4
        %s24 = scalar_lea.vmem %s0, %s23
        %v25 = vld [vmem:[%s0] sm:$0xff]
        // While loop
        $region10: #{custom-call.2} parent=8 // loop_pre_header
          _
        $region11: #{custom-call.2} parent=8 // loop_header
          %s26 = sphi %s0, %s48
          %s27 = sphi [#allocation0], %s49
          %v28 = vphi %v25, %v50
          %s29 = ssub.s32 %s24, 64
          %p30 = scmp.gt.s32.totalorder %s26, %s29
        $region12: #{custom-call.2} parent=8 // loop_header_branch
          %32 = sbr.rel (%p30) target = $region16
        $region13: #{custom-call.2} parent=8 // loop_body
          %33 = vst [vmem:[%s27] sm:$0xff] %v28
          %v34 = vld [vmem:[%s26 + $0x8] sm:$0xff]
          %35 = vst [vmem:[%s27 + $0x8] sm:$0xff] %v34
          %v36 = vld [vmem:[%s26 + $0x10] sm:$0xff]
          %37 = vst [vmem:[%s27 + $0x10] sm:$0xff] %v36
          %v38 = vld [vmem:[%s26 + $0x18] sm:$0xff]
          %39 = vst [vmem:[%s27 + $0x18] sm:$0xff] %v38
          %v40 = vld [vmem:[%s26 + $0x20] sm:$0xff]
          %41 = vst [vmem:[%s27 + $0x20] sm:$0xff] %v40
          %v42 = vld [vmem:[%s26 + $0x28] sm:$0xff]
          %43 = vst [vmem:[%s27 + $0x28] sm:$0xff] %v42
          %v44 = vld [vmem:[%s26 + $0x30] sm:$0xff]
          %45 = vst [vmem:[%s27 + $0x30] sm:$0xff] %v44
          %v46 = vld [vmem:[%s26 + $0x38] sm:$0xff]
          %47 = vst [vmem:[%s27 + $0x38] sm:$0xff] %v46
        $region14: #{custom-call.2} parent=8 // loop_footer
          %s48 = scalar_lea.vmem %s26, 64
          %s49 = scalar_lea.vmem %s27, 64
          %v50 = vld [vmem:[%s26 + $0x40] sm:$0xff]
        $region15: #{custom-call.2} parent=8 // loop_footer_branch
          %51 = sbr.rel target = $region11
        $region16: #{custom-call.2} parent=8 // loop_exit
          _
        // While loop
        $region17: #{custom-call.2} parent=8 // loop_pre_header
          _
        $region18: #{custom-call.2} parent=8 // loop_header
          %s52 = sphi %s26, %s60
          %s53 = sphi %s27, %s61
          %v54 = vphi %v28, %v54
          %p55 = scmp.gt.s32.totalorder %s52, %s24
        $region19: #{custom-call.2} parent=8 // loop_header_branch
          %57 = sbr.rel (%p55) target = $region23
        $region20: #{custom-call.2} parent=8 // loop_body
          %v58 = vld [vmem:[%s52] sm:$0xff]
          %59 = vst [vmem:[%s53] sm:$0xff] %v58
        $region21: #{custom-call.2} parent=8 // loop_footer
          %s60 = scalar_lea.vmem %s52, 8
          %s61 = scalar_lea.vmem %s53, 8
        $region22: #{custom-call.2} parent=8 // loop_footer_branch
          %62 = sbr.rel target = $region18
        $region23: #{custom-call.2} parent=8 // loop_exit
          _
      $region9: #{custom-call.2} parent=4 // pred_fallthru
        _
      %s63 = sand.u32 8, 7
      %s64 = sshll.u32 1, %s63
      %s65 = ssub.s32 %s64, 1
      %s66 = smul.u32 %s16, 128
      %s67 = sshra.s32 %s66, 4
      %s68 = scalar_lea.vmem [#allocation0], %s67
      %s69 = smul.u32 %s16, 128
      %s70 = sshra.s32 %s69, 4
      %s71 = scalar_lea.vmem %s0, %s70
      %v72 = vld [vmem:[%s71] sm:%s65]
      %73 = vst [vmem:[%s68] sm:%s65] %v72
    $region5: #{custom-call.2} parent=1 // pred_fallthru
      _
    %p75 = scmp.gt.s32.totalorder 8, 0
    // Predicated region
    $region24: #{custom-call.2} parent=1 // pred_check
      %p76 = pneg %p75
    $region25: #{custom-call.2} parent=1 // pred_check_branch
      %78 = sbr.rel (%p76) target = $region27
    $region26: #{custom-call.2} parent=1 // pred_region
      %s79 = sshra.s32 8, 3
      %p80 = scmp.gt.s32.totalorder %s79, 0
      // Predicated region
      $region28: #{custom-call.2} parent=26 // pred_check
        %p81 = pneg %p80
      $region29: #{custom-call.2} parent=26 // pred_check_branch
        %83 = sbr.rel (%p81) target = $region31
      $region30: #{custom-call.2} parent=26 // pred_region
        %s84 = ssub.s32 %s79, 1
        %s85 = smul.u32 %s84, 128
        %s86 = sshra.s32 %s85, 4
        %s87 = scalar_lea.vmem %s1, %s86
        %v88 = vld [vmem:[%s1] sm:$0xff]
        // While loop
        $region32: #{custom-call.2} parent=30 // loop_pre_header
          _
        $region33: #{custom-call.2} parent=30 // loop_header
          %s89 = sphi %s1, %s111
          %s90 = sphi [#allocation1], %s112
          %v91 = vphi %v88, %v113
          %s92 = ssub.s32 %s87, 64
          %p93 = scmp.gt.s32.totalorder %s89, %s92
        $region34: #{custom-call.2} parent=30 // loop_header_branch
          %95 = sbr.rel (%p93) target = $region38
        $region35: #{custom-call.2} parent=30 // loop_body
          %96 = vst [vmem:[%s90] sm:$0xff] %v91
          %v97 = vld [vmem:[%s89 + $0x8] sm:$0xff]
          %98 = vst [vmem:[%s90 + $0x8] sm:$0xff] %v97
          %v99 = vld [vmem:[%s89 + $0x10] sm:$0xff]
          %100 = vst [vmem:[%s90 + $0x10] sm:$0xff] %v99
          %v101 = vld [vmem:[%s89 + $0x18] sm:$0xff]
          %102 = vst [vmem:[%s90 + $0x18] sm:$0xff] %v101
          %v103 = vld [vmem:[%s89 + $0x20] sm:$0xff]
          %104 = vst [vmem:[%s90 + $0x20] sm:$0xff] %v103
          %v105 = vld [vmem:[%s89 + $0x28] sm:$0xff]
          %106 = vst [vmem:[%s90 + $0x28] sm:$0xff] %v105
          %v107 = vld [vmem:[%s89 + $0x30] sm:$0xff]
          %108 = vst [vmem:[%s90 + $0x30] sm:$0xff] %v107
          %v109 = vld [vmem:[%s89 + $0x38] sm:$0xff]
          %110 = vst [vmem:[%s90 + $0x38] sm:$0xff] %v109
        $region36: #{custom-call.2} parent=30 // loop_footer
          %s111 = scalar_lea.vmem %s89, 64
          %s112 = scalar_lea.vmem %s90, 64
          %v113 = vld [vmem:[%s89 + $0x40] sm:$0xff]
        $region37: #{custom-call.2} parent=30 // loop_footer_branch
          %114 = sbr.rel target = $region33
        $region38: #{custom-call.2} parent=30 // loop_exit
          _
        // While loop
        $region39: #{custom-call.2} parent=30 // loop_pre_header
          _
        $region40: #{custom-call.2} parent=30 // loop_header
          %s115 = sphi %s89, %s123
          %s116 = sphi %s90, %s124
          %v117 = vphi %v91, %v117
          %p118 = scmp.gt.s32.totalorder %s115, %s87
        $region41: #{custom-call.2} parent=30 // loop_header_branch
          %120 = sbr.rel (%p118) target = $region45
        $region42: #{custom-call.2} parent=30 // loop_body
          %v121 = vld [vmem:[%s115] sm:$0xff]
          %122 = vst [vmem:[%s116] sm:$0xff] %v121
        $region43: #{custom-call.2} parent=30 // loop_footer
          %s123 = scalar_lea.vmem %s115, 8
          %s124 = scalar_lea.vmem %s116, 8
        $region44: #{custom-call.2} parent=30 // loop_footer_branch
          %125 = sbr.rel target = $region40
        $region45: #{custom-call.2} parent=30 // loop_exit
          _
      $region31: #{custom-call.2} parent=26 // pred_fallthru
        _
      %s126 = sand.u32 8, 7
      %s127 = sshll.u32 1, %s126
      %s128 = ssub.s32 %s127, 1
      %s129 = smul.u32 %s79, 128
      %s130 = sshra.s32 %s129, 4
      %s131 = scalar_lea.vmem [#allocation1], %s130
      %s132 = smul.u32 %s79, 128
      %s133 = sshra.s32 %s132, 4
      %s134 = scalar_lea.vmem %s1, %s133
      %v135 = vld [vmem:[%s134] sm:%s128]
      %136 = vst [vmem:[%s131] sm:%s128] %v135
    $region27: #{custom-call.2} parent=1 // pred_fallthru
      _
    %p138 = scmp.gt.s32.totalorder 8, 0
    // Predicated region
    $region46: #{custom-call.2} parent=1 // pred_check
      %p139 = pneg %p138
    $region47: #{custom-call.2} parent=1 // pred_check_branch
      %141 = sbr.rel (%p139) target = $region49
    $region48: #{custom-call.2} parent=1 // pred_region
      %s142 = sshra.s32 8, 3
      %p143 = scmp.gt.s32.totalorder %s142, 0
      // Predicated region
      $region50: #{custom-call.2} parent=48 // pred_check
        %p144 = pneg %p143
      $region51: #{custom-call.2} parent=48 // pred_check_branch
        %146 = sbr.rel (%p144) target = $region53
      $region52: #{custom-call.2} parent=48 // pred_region
        %s147 = ssub.s32 %s142, 1
        %s148 = smul.u32 %s147, 128
        %s149 = sshra.s32 %s148, 4
        %s150 = scalar_lea.vmem %s2, %s149
        %v151 = vld [vmem:[%s2] sm:$0xff]
        // While loop
        $region54: #{custom-call.2} parent=52 // loop_pre_header
          _
        $region55: #{custom-call.2} parent=52 // loop_header
          %s152 = sphi %s2, %s174
          %s153 = sphi [#allocation2], %s175
          %v154 = vphi %v151, %v176
          %s155 = ssub.s32 %s150, 64
          %p156 = scmp.gt.s32.totalorder %s152, %s155
        $region56: #{custom-call.2} parent=52 // loop_header_branch
          %158 = sbr.rel (%p156) target = $region60
        $region57: #{custom-call.2} parent=52 // loop_body
          %159 = vst [vmem:[%s153] sm:$0xff] %v154
          %v160 = vld [vmem:[%s152 + $0x8] sm:$0xff]
          %161 = vst [vmem:[%s153 + $0x8] sm:$0xff] %v160
          %v162 = vld [vmem:[%s152 + $0x10] sm:$0xff]
          %163 = vst [vmem:[%s153 + $0x10] sm:$0xff] %v162
          %v164 = vld [vmem:[%s152 + $0x18] sm:$0xff]
          %165 = vst [vmem:[%s153 + $0x18] sm:$0xff] %v164
          %v166 = vld [vmem:[%s152 + $0x20] sm:$0xff]
          %167 = vst [vmem:[%s153 + $0x20] sm:$0xff] %v166
          %v168 = vld [vmem:[%s152 + $0x28] sm:$0xff]
          %169 = vst [vmem:[%s153 + $0x28] sm:$0xff] %v168
          %v170 = vld [vmem:[%s152 + $0x30] sm:$0xff]
          %171 = vst [vmem:[%s153 + $0x30] sm:$0xff] %v170
          %v172 = vld [vmem:[%s152 + $0x38] sm:$0xff]
          %173 = vst [vmem:[%s153 + $0x38] sm:$0xff] %v172
        $region58: #{custom-call.2} parent=52 // loop_footer
          %s174 = scalar_lea.vmem %s152, 64
          %s175 = scalar_lea.vmem %s153, 64
          %v176 = vld [vmem:[%s152 + $0x40] sm:$0xff]
        $region59: #{custom-call.2} parent=52 // loop_footer_branch
          %177 = sbr.rel target = $region55
        $region60: #{custom-call.2} parent=52 // loop_exit
          _
        // While loop
        $region61: #{custom-call.2} parent=52 // loop_pre_header
          _
        $region62: #{custom-call.2} parent=52 // loop_header
          %s178 = sphi %s152, %s186
          %s179 = sphi %s153, %s187
          %v180 = vphi %v154, %v180
          %p181 = scmp.gt.s32.totalorder %s178, %s150
        $region63: #{custom-call.2} parent=52 // loop_header_branch
          %183 = sbr.rel (%p181) target = $region67
        $region64: #{custom-call.2} parent=52 // loop_body
          %v184 = vld [vmem:[%s178] sm:$0xff]
          %185 = vst [vmem:[%s179] sm:$0xff] %v184
        $region65: #{custom-call.2} parent=52 // loop_footer
          %s186 = scalar_lea.vmem %s178, 8
          %s187 = scalar_lea.vmem %s179, 8
        $region66: #{custom-call.2} parent=52 // loop_footer_branch
          %188 = sbr.rel target = $region62
        $region67: #{custom-call.2} parent=52 // loop_exit
          _
      $region53: #{custom-call.2} parent=48 // pred_fallthru
        _
      %s189 = sand.u32 8, 7
      %s190 = sshll.u32 1, %s189
      %s191 = ssub.s32 %s190, 1
      %s192 = smul.u32 %s142, 128
      %s193 = sshra.s32 %s192, 4
      %s194 = scalar_lea.vmem [#allocation2], %s193
      %s195 = smul.u32 %s142, 128
      %s196 = sshra.s32 %s195, 4
      %s197 = scalar_lea.vmem %s2, %s196
      %v198 = vld [vmem:[%s197] sm:%s191]
      %199 = vst [vmem:[%s194] sm:%s191] %v198
    $region49: #{custom-call.2} parent=1 // pred_fallthru
      _
    %p201 = scmp.gt.s32.totalorder 8, 0
    // Predicated region
    $region68: #{custom-call.2} parent=1 // pred_check
      %p202 = pneg %p201
    $region69: #{custom-call.2} parent=1 // pred_check_branch
      %204 = sbr.rel (%p202) target = $region71
    $region70: #{custom-call.2} parent=1 // pred_region
      %s205 = sshra.s32 8, 3
      %p206 = scmp.gt.s32.totalorder %s205, 0
      // Predicated region
      $region72: #{custom-call.2} parent=70 // pred_check
        %p207 = pneg %p206
      $region73: #{custom-call.2} parent=70 // pred_check_branch
        %209 = sbr.rel (%p207) target = $region75
      $region74: #{custom-call.2} parent=70 // pred_region
        %s210 = ssub.s32 %s205, 1
        %s211 = smul.u32 %s210, 128
        %s212 = sshra.s32 %s211, 4
        %s213 = scalar_lea.vmem %s3, %s212
        %v214 = vld [vmem:[%s3] sm:$0xff]
        // While loop
        $region76: #{custom-call.2} parent=74 // loop_pre_header
          _
        $region77: #{custom-call.2} parent=74 // loop_header
          %s215 = sphi %s3, %s237
          %s216 = sphi [#allocation3], %s238
          %v217 = vphi %v214, %v239
          %s218 = ssub.s32 %s213, 64
          %p219 = scmp.gt.s32.totalorder %s215, %s218
        $region78: #{custom-call.2} parent=74 // loop_header_branch
          %221 = sbr.rel (%p219) target = $region82
        $region79: #{custom-call.2} parent=74 // loop_body
          %222 = vst [vmem:[%s216] sm:$0xff] %v217
          %v223 = vld [vmem:[%s215 + $0x8] sm:$0xff]
          %224 = vst [vmem:[%s216 + $0x8] sm:$0xff] %v223
          %v225 = vld [vmem:[%s215 + $0x10] sm:$0xff]
          %226 = vst [vmem:[%s216 + $0x10] sm:$0xff] %v225
          %v227 = vld [vmem:[%s215 + $0x18] sm:$0xff]
          %228 = vst [vmem:[%s216 + $0x18] sm:$0xff] %v227
          %v229 = vld [vmem:[%s215 + $0x20] sm:$0xff]
          %230 = vst [vmem:[%s216 + $0x20] sm:$0xff] %v229
          %v231 = vld [vmem:[%s215 + $0x28] sm:$0xff]
          %232 = vst [vmem:[%s216 + $0x28] sm:$0xff] %v231
          %v233 = vld [vmem:[%s215 + $0x30] sm:$0xff]
          %234 = vst [vmem:[%s216 + $0x30] sm:$0xff] %v233
          %v235 = vld [vmem:[%s215 + $0x38] sm:$0xff]
          %236 = vst [vmem:[%s216 + $0x38] sm:$0xff] %v235
        $region80: #{custom-call.2} parent=74 // loop_footer
          %s237 = scalar_lea.vmem %s215, 64
          %s238 = scalar_lea.vmem %s216, 64
          %v239 = vld [vmem:[%s215 + $0x40] sm:$0xff]
        $region81: #{custom-call.2} parent=74 // loop_footer_branch
          %240 = sbr.rel target = $region77
        $region82: #{custom-call.2} parent=74 // loop_exit
          _
        // While loop
        $region83: #{custom-call.2} parent=74 // loop_pre_header
          _
        $region84: #{custom-call.2} parent=74 // loop_header
          %s241 = sphi %s215, %s249
          %s242 = sphi %s216, %s250
          %v243 = vphi %v217, %v243
          %p244 = scmp.gt.s32.totalorder %s241, %s213
        $region85: #{custom-call.2} parent=74 // loop_header_branch
          %246 = sbr.rel (%p244) target = $region89
        $region86: #{custom-call.2} parent=74 // loop_body
          %v247 = vld [vmem:[%s241] sm:$0xff]
          %248 = vst [vmem:[%s242] sm:$0xff] %v247
        $region87: #{custom-call.2} parent=74 // loop_footer
          %s249 = scalar_lea.vmem %s241, 8
          %s250 = scalar_lea.vmem %s242, 8
        $region88: #{custom-call.2} parent=74 // loop_footer_branch
          %251 = sbr.rel target = $region84
        $region89: #{custom-call.2} parent=74 // loop_exit
          _
      $region75: #{custom-call.2} parent=70 // pred_fallthru
        _
      %s252 = sand.u32 8, 7
      %s253 = sshll.u32 1, %s252
      %s254 = ssub.s32 %s253, 1
      %s255 = smul.u32 %s205, 128
      %s256 = sshra.s32 %s255, 4
      %s257 = scalar_lea.vmem [#allocation3], %s256
      %s258 = smul.u32 %s205, 128
      %s259 = sshra.s32 %s258, 4
      %s260 = scalar_lea.vmem %s3, %s259
      %v261 = vld [vmem:[%s260] sm:%s254]
      %262 = vst [vmem:[%s257] sm:%s254] %v261
    $region71: #{custom-call.2} parent=1 // pred_fallthru
      _
    %s263 = smov [#allocation12]
    %v264 = vld [vmem:[#allocation0] sm:$0xff]
    %265 = vst [vmem:[%s263] sm:$0xff] %v264
    %s266 = smov [#allocation13]
    %v267 = vld [vmem:[#allocation1] sm:$0xff]
    %268 = vst [vmem:[%s266] sm:$0xff] %v267
    %s269 = smov [#allocation14]
    %v270 = vld [vmem:[#allocation2] sm:$0xff]
    %271 = vst [vmem:[%s269] sm:$0xff] %v270
    %s272 = smov [#allocation15]
    %v273 = vld [vmem:[#allocation3] sm:$0xff]
    %274 = vst [vmem:[%s272] sm:$0xff] %v273
    %275 = vst [vmem:[#allocation8] sm:$0xff] 0.0
    %276 = vst [vmem:[#allocation9] sm:$0xff] 0.0
    %277 = vst [vmem:[#allocation10] sm:$0xff] 0.0
    %278 = vst [vmem:[#allocation11] sm:$0xff] 0.0
    %s279 = smov [#allocation8]
    %v280 = vlaneseq
    %v281 = vand.u32 %v280, 127
    %v282 = vmov %v281
    %v283 = vlaneseq
    %v284 = vshrl.u32 %v283, 7
    %v285 = vmov %v284
    %v286 = vld [vmem:[%s279] sm:$0xff]
    %vm289 = vcmp.eq.s32.totalorder %v285, %v282
    %v290 = vsel %vm289, 1.0, %v286
    %291 = vst [vmem:[%s279] sm:$0xff] %v290
    %s292 = smov [#allocation11]
    %v293 = vlaneseq
    %v294 = vand.u32 %v293, 127
    %v295 = vmov %v294
    %v296 = vlaneseq
    %v297 = vshrl.u32 %v296, 7
    %v298 = vmov %v297
    %v299 = vld [vmem:[%s292] sm:$0xff]
    %vm302 = vcmp.eq.s32.totalorder %v298, %v295
    %v303 = vsel %vm302, 1.0, %v299
    %304 = vst [vmem:[%s292] sm:$0xff] %v303
    // While loop
    $region90: #{custom-call.2} parent=1 // loop_pre_header
      _
    $region91: #{custom-call.2} parent=1 // loop_header
      %s306 = sphi 0, %s848
      %v307 = vlaneseq
      %v308 = vand.u32 %v307, 127
      %v309 = vmov %v308
      %v310 = vlaneseq
      %v311 = vshrl.u32 %v310, 7
      %v312 = vmov %v311
      %s313 = smov [#allocation12]
      %v314 = vlaneseq
      %v315 = vand.u32 %v314, 127
      %vm316 = vcmp.ge.s32.totalorder %v315, 0
      %vm317 = vcmp.lt.s32.totalorder %v315, 8
      %vm318 = vmand %vm316, %vm317
      %v319 = vld [vmem:[%s313] sm:$0xff]
      %v320 = vsel %vm318, %v319, 0.0
      %v321 = vmul.f32 %v320, %v320
      %vm324 = vcmp.eq.s32.totalorder %v312, %v309
      %v325 = vsel %vm324, 0.0, %v321
      %v326 = vlaneseq
      %v327 = vand.u32 %v326, 127
      %v328 = vmov %v327
      %v329 = vlaneseq
      %v330 = vshrl.u32 %v329, 7
      %v331 = vmov %v330
      %s332 = smov [#allocation13]
      %v333 = vlaneseq
      %v334 = vand.u32 %v333, 127
      %vm335 = vcmp.ge.s32.totalorder %v334, 0
      %vm336 = vcmp.lt.s32.totalorder %v334, 8
      %vm337 = vmand %vm335, %vm336
      %v338 = vld [vmem:[%s332] sm:$0xff]
      %v339 = vsel %vm337, %v338, 0.0
      %v340 = vmul.f32 %v339, %v339
      %v341 = vadd.f32 %v325, %v340
      %v342 = vadd.f32 %v321, %v340
      %v343 = vlaneseq
      %v344 = vand.u32 %v343, 127
      %v345 = vmov %v344
      %v346 = vlaneseq
      %v347 = vshrl.u32 %v346, 7
      %v348 = vmov %v347
      %s349 = smov [#allocation14]
      %v350 = vlaneseq
      %v351 = vand.u32 %v350, 127
      %vm352 = vcmp.ge.s32.totalorder %v351, 0
      %vm353 = vcmp.lt.s32.totalorder %v351, 8
      %vm354 = vmand %vm352, %vm353
      %v355 = vld [vmem:[%s349] sm:$0xff]
      %v356 = vsel %vm354, %v355, 0.0
      %v357 = vmul.f32 %v356, %v356
      %v358 = vadd.f32 %v341, %v357
      %v359 = vadd.f32 %v342, %v357
      %v360 = vlaneseq
      %v361 = vand.u32 %v360, 127
      %v362 = vmov %v361
      %v363 = vlaneseq
      %v364 = vshrl.u32 %v363, 7
      %v365 = vmov %v364
      %s366 = smov [#allocation15]
      %v367 = vlaneseq
      %v368 = vand.u32 %v367, 127
      %vm369 = vcmp.ge.s32.totalorder %v368, 0
      %vm370 = vcmp.lt.s32.totalorder %v368, 8
      %vm371 = vmand %vm369, %vm370
      %v372 = vld [vmem:[%s366] sm:$0xff]
      %v373 = vsel %vm371, %v372, 0.0
      %v374 = vmul.f32 %v373, %v373
      %vm377 = vcmp.eq.s32.totalorder %v365, %v362
      %v378 = vsel %vm377, 0.0, %v374
      %v379 = vadd.f32 %v358, %v378
      %v380 = vadd.f32 %v359, %v374
      %381 = vadd.xlane.f32.xlu0 %v380
      %v382 = vpop.xlane.xlu0 %381
      %v383 = vrot.slane %v382, 4
      %v384 = vadd.f32 %v382, %v383
      %v385 = vrot.slane %v384, 2
      %v386 = vadd.f32 %v384, %v385
      %v387 = vrot.slane %v386, 1
      %v388 = vadd.f32 %v386, %v387
      %389 = vadd.xlane.f32.xlu0 %v379
      %v390 = vpop.xlane.xlu0 %389
      %v391 = vrot.slane %v390, 4
      %v392 = vadd.f32 %v390, %v391
      %v393 = vrot.slane %v392, 2
      %v394 = vadd.f32 %v392, %v393
      %v395 = vrot.slane %v394, 1
      %v396 = vadd.f32 %v394, %v395
      %s397 = vtos %v396
      %s398 = vtos %v388
      %s399 = smul.f32 1e-10, %s398
      %p400 = scmp.le.f32.partialorder %s397, %s399
      %p401 = scmp.ge.s32.totalorder %s306, 15
      %p402 = por %p400, %p401
    $region92: #{custom-call.2} parent=1 // loop_header_branch
      %850 = sbr.rel (%p402) target = $region96
    $region93: #{custom-call.2} parent=1 // loop_body
      loop: start=0, step=1, limit=15
      $region97: #{custom-call.2} parent=93 // loop_pre_header
        _
      $region98: #{custom-call.2} parent=93 // loop_header
        %s404 = sphi 0, %s408
        %p405 = scmp.ge.s32.totalorder %s404, 15
      $region99: #{custom-call.2} parent=93 // loop_header_branch
        %407 = sbr.rel (%p405) target = $region103
      $region100: #{custom-call.2} parent=93 // loop_body
        #allocation16 [shape = 'f32[1024]{0}', space=vmem, size = 0x1000, scoped, tag = 'a_tl_diag vmem']
        #allocation17 [shape = 'f32[1024]{0}', space=vmem, size = 0x1000, scoped, tag = 'a_tr_diag vmem']
        #allocation18 [shape = 'f32[1024]{0}', space=vmem, size = 0x1000, scoped, tag = 'a_br_diag vmem']
        #allocation19 [shape = 'f32[1024]{0}', space=vmem, size = 0x1000, scoped, tag = 'rt1 vmem']
        #allocation20 [shape = 'f32[1024]{0}', space=vmem, size = 0x1000, scoped, tag = 'rt2 vmem']
        #allocation21 [shape = 'f32[1024]{0}', space=vmem, size = 0x1000, scoped, tag = 'c vmem']
        #allocation22 [shape = 'f32[1024]{0}', space=vmem, size = 0x1000, scoped, tag = 's vmem']
        #allocation23 [shape = 'f32[4096]{0}', space=vmem, size = 0x4000, scoped, tag = 'c broadcast']
        #allocation24 [shape = 'f32[4096]{0}', space=vmem, size = 0x4000, scoped, tag = 's broadcast']
        %s409 = smov [#allocation12]
        %s410 = smov [#allocation16]
        %v411 = vlaneseq
        %v412 = vand.u32 %v411, 127
        %v413 = vmov %v412
        %v414 = vlaneseq
        %v415 = vshrl.u32 %v414, 7
        %v416 = vmov %v415
        %v417 = vld [vmem:[%s409] sm:$0xff]
        %vm420 = vcmp.eq.s32.totalorder %v416, %v413
        %v421 = vsel %vm420, %v417, 0.0
        %v422 = vrot.slane %v421, 4
        %v423 = vadd.f32 %v421, %v422
        %v424 = vrot.slane %v423, 2
        %v425 = vadd.f32 %v423, %v424
        %v426 = vrot.slane %v425, 1
        %v427 = vadd.f32 %v425, %v426
        %428 = vst [vmem:[%s410] sm:$0x1] %v427
        %s429 = smov [#allocation13]
        %s430 = smov [#allocation17]
        %v431 = vlaneseq
        %v432 = vand.u32 %v431, 127
        %v433 = vmov %v432
        %v434 = vlaneseq
        %v435 = vshrl.u32 %v434, 7
        %v436 = vmov %v435
        %v437 = vld [vmem:[%s429] sm:$0xff]
        %vm440 = vcmp.eq.s32.totalorder %v436, %v433
        %v441 = vsel %vm440, %v437, 0.0
        %v442 = vrot.slane %v441, 4
        %v443 = vadd.f32 %v441, %v442
        %v444 = vrot.slane %v443, 2
        %v445 = vadd.f32 %v443, %v444
        %v446 = vrot.slane %v445, 1
        %v447 = vadd.f32 %v445, %v446
        %448 = vst [vmem:[%s430] sm:$0x1] %v447
        %s449 = smov [#allocation15]
        %s450 = smov [#allocation18]
        %v451 = vlaneseq
        %v452 = vand.u32 %v451, 127
        %v453 = vmov %v452
        %v454 = vlaneseq
        %v455 = vshrl.u32 %v454, 7
        %v456 = vmov %v455
        %v457 = vld [vmem:[%s449] sm:$0xff]
        %vm460 = vcmp.eq.s32.totalorder %v456, %v453
        %v461 = vsel %vm460, %v457, 0.0
        %v462 = vrot.slane %v461, 4
        %v463 = vadd.f32 %v461, %v462
        %v464 = vrot.slane %v463, 2
        %v465 = vadd.f32 %v463, %v464
        %v466 = vrot.slane %v465, 1
        %v467 = vadd.f32 %v465, %v466
        %468 = vst [vmem:[%s450] sm:$0x1] %v467
        %s469 = smov [#allocation21]
        %s470 = smov [#allocation22]
        %s471 = smov [#allocation16]
        %v472 = vld [vmem:[%s471] sm:$0xff]
        %s473 = smov [#allocation17]
        %v474 = vld [vmem:[%s473] sm:$0xff]
        %s475 = smov [#allocation18]
        %v476 = vld [vmem:[%s475] sm:$0xff]
        %v477 = vsub.f32 %v476, %v472
        %v478 = vmul.f32 2.0, %v474
        %v479 = vrcp.pop %v478
        %v480 = vmul.f32 %v477, %v479
        %vm481 = vcmp.ge.f32.partialorder %v480, 0.0
        %v482 = vmul.f32 %v480, %v480
        %v483 = vadd.f32 1.0, %v482
        %v484 = vrsqrt.pop %v483
        %v485 = vmul.f32 %v483, %v484
        %vm486 = vcmp.eq.f32.partialorder %v483, inf
        %v487 = vsel %vm486, %v483, %v485
        %vm488 = vcmp.eq.f32.partialorder %v483, 0.0
        %v489 = vand.u32 %v483, 2147483648
        %v490 = vsel %vm488, %v489, %v487
        %v491 = vxor.u32 %v490, 2147483648
        %v492 = vsel %vm481, %v490, %v491
        %v493 = vadd.f32 %v480, %v492
        %v494 = vrcp.pop %v493
        %v495 = vand.u32 2147483647, %v472
        %v496 = vand.u32 2147483647, %v474
        %v497 = vand.u32 2147483647, %v476
        %v498 = vmin.f32 %v495, %v497
        %v499 = vmul.f32 1.1920929e-08, %v498
        %vm500 = vcmp.le.f32.partialorder %v496, %v499
        %v501 = vsel %vm500, 0.0, %v494
        %v502 = vmul.f32 %v501, %v501
        %v503 = vadd.f32 1.0, %v502
        %v504 = vrsqrt.pop %v503
        %v505 = vmul.f32 %v501, %v504
        %v506 = vmul.f32 %v501, %v474
        %v507 = vsub.f32 %v472, %v506
        %v508 = vmul.f32 %v501, %v474
        %v509 = vadd.f32 %v476, %v508
        %s510 = smov [#allocation19]
        %511 = vst [vmem:[%s510] sm:$0xff] %v507
        %s512 = smov [#allocation20]
        %513 = vst [vmem:[%s512] sm:$0xff] %v509
        %s514 = smov %s469
        %515 = vst [vmem:[%s514] sm:$0xff] %v504
        %s516 = smov %s470
        %517 = vst [vmem:[%s516] sm:$0xff] %v505
        %s518 = smov [#allocation21]
        %v519 = vld [vmem:[%s518] ss:$0 sm:$0xff]
        %v520 = vlaneseq
        %v521 = vand.u32 %v520, 127
        %v522 = vmov %v521
        %v523 = vlaneseq
        %v524 = vshrl.u32 %v523, 7
        %v525 = vmov %v524
        %vm527 = vcmp.eq.s32.totalorder %v525, %v522
        %v528 = vsel %vm527, %v519, 0.0
        %529 = vadd.xlane.f32.xlu0 %v528
        %v530 = vpop.xlane.xlu0 %529
        %s531 = smov [#allocation23]
        %532 = vst [vmem:[%s531] sm:$0xff] %v530
        %s533 = smov [#allocation22]
        %v534 = vld [vmem:[%s533] ss:$0 sm:$0xff]
        %v535 = vlaneseq
        %v536 = vand.u32 %v535, 127
        %v537 = vmov %v536
        %v538 = vlaneseq
        %v539 = vshrl.u32 %v538, 7
        %v540 = vmov %v539
        %vm542 = vcmp.eq.s32.totalorder %v540, %v537
        %v543 = vsel %vm542, %v534, 0.0
        %544 = vadd.xlane.f32.xlu0 %v543
        %v545 = vpop.xlane.xlu0 %544
        %s546 = smov [#allocation24]
        %547 = vst [vmem:[%s546] sm:$0xff] %v545
        %s548 = smov [#allocation23]
        %v549 = vld [vmem:[%s548] sm:$0xff]
        %s550 = smov [#allocation24]
        %v551 = vld [vmem:[%s550] sm:$0xff]
        %s552 = smov [#allocation12]
        %s553 = smov [#allocation13]
        %s554 = smov [#allocation14]
        %s555 = smov [#allocation15]
        %v556 = vld [vmem:[%s552] sm:$0xff]
        %v557 = vld [vmem:[%s553] sm:$0xff]
        %v558 = vld [vmem:[%s554] sm:$0xff]
        %v559 = vld [vmem:[%s555] sm:$0xff]
        %v560 = vmul.f32 %v549, %v556
        %v561 = vmul.f32 %v551, %v558
        %v562 = vsub.f32 %v560, %v561
        %v563 = vmul.f32 %v549, %v557
        %v564 = vmul.f32 %v551, %v559
        %v565 = vsub.f32 %v563, %v564
        %v566 = vmul.f32 %v551, %v556
        %v567 = vmul.f32 %v549, %v558
        %v568 = vadd.f32 %v566, %v567
        %v569 = vmul.f32 %v551, %v557
        %v570 = vmul.f32 %v549, %v559
        %v571 = vadd.f32 %v569, %v570
        %572 = vst [vmem:[%s552] sm:$0xff] %v562
        %573 = vst [vmem:[%s553] sm:$0xff] %v565
        %574 = vst [vmem:[%s554] sm:$0xff] %v568
        %575 = vst [vmem:[%s555] sm:$0xff] %v571
        %s576 = smov [#allocation21]
        %v577 = vld [vmem:[%s576] ss:$0 sm:$0xff]
        %s578 = smov [#allocation22]
        %v579 = vld [vmem:[%s578] ss:$0 sm:$0xff]
        %s580 = smov [#allocation12]
        %s581 = smov [#allocation13]
        %s582 = smov [#allocation14]
        %s583 = smov [#allocation15]
        %v584 = vld [vmem:[%s580] sm:$0xff]
        %v585 = vld [vmem:[%s581] sm:$0xff]
        %v586 = vld [vmem:[%s582] sm:$0xff]
        %v587 = vld [vmem:[%s583] sm:$0xff]
        %v588 = vmul.f32 %v577, %v584
        %v589 = vmul.f32 %v579, %v585
        %v590 = vsub.f32 %v588, %v589
        %v591 = vmul.f32 %v579, %v584
        %v592 = vmul.f32 %v577, %v585
        %v593 = vadd.f32 %v591, %v592
        %v594 = vmul.f32 %v577, %v586
        %v595 = vmul.f32 %v579, %v587
        %v596 = vsub.f32 %v594, %v595
        %v597 = vmul.f32 %v579, %v586
        %v598 = vmul.f32 %v577, %v587
        %v599 = vadd.f32 %v597, %v598
        %600 = vst [vmem:[%s580] sm:$0xff] %v590
        %601 = vst [vmem:[%s581] sm:$0xff] %v593
        %602 = vst [vmem:[%s582] sm:$0xff] %v596
        %603 = vst [vmem:[%s583] sm:$0xff] %v599
        %s604 = smov [#allocation12]
        %s605 = smov [#allocation19]
        %v606 = vlaneseq
        %v607 = vand.u32 %v606, 127
        %v608 = vmov %v607
        %v609 = vlaneseq
        %v610 = vshrl.u32 %v609, 7
        %v611 = vmov %v610
        %v612 = vld [vmem:[%s605] ss:$0 sm:$0xff]
        %v613 = vld [vmem:[%s604] sm:$0xff]
        %vm616 = vcmp.eq.s32.totalorder %v611, %v608
        %v617 = vsel %vm616, %v612, %v613
        %618 = vst [vmem:[%s604] sm:$0xff] %v617
        %s619 = smov [#allocation13]
        %v620 = vlaneseq
        %v621 = vand.u32 %v620, 127
        %v622 = vmov %v621
        %v623 = vlaneseq
        %v624 = vshrl.u32 %v623, 7
        %v625 = vmov %v624
        %v626 = vld [vmem:[%s619] sm:$0xff]
        %vm629 = vcmp.eq.s32.totalorder %v625, %v622
        %v630 = vsel %vm629, 0.0, %v626
        %631 = vst [vmem:[%s619] sm:$0xff] %v630
        %s632 = smov [#allocation14]
        %v633 = vlaneseq
        %v634 = vand.u32 %v633, 127
        %v635 = vmov %v634
        %v636 = vlaneseq
        %v637 = vshrl.u32 %v636, 7
        %v638 = vmov %v637
        %v639 = vld [vmem:[%s632] sm:$0xff]
        %vm642 = vcmp.eq.s32.totalorder %v638, %v635
        %v643 = vsel %vm642, 0.0, %v639
        %644 = vst [vmem:[%s632] sm:$0xff] %v643
        %s645 = smov [#allocation15]
        %s646 = smov [#allocation20]
        %v647 = vlaneseq
        %v648 = vand.u32 %v647, 127
        %v649 = vmov %v648
        %v650 = vlaneseq
        %v651 = vshrl.u32 %v650, 7
        %v652 = vmov %v651
        %v653 = vld [vmem:[%s646] ss:$0 sm:$0xff]
        %v654 = vld [vmem:[%s645] sm:$0xff]
        %vm657 = vcmp.eq.s32.totalorder %v652, %v649
        %v658 = vsel %vm657, %v653, %v654
        %659 = vst [vmem:[%s645] sm:$0xff] %v658
        %s660 = smov [#allocation12]
        %s661 = smov [#allocation13]
        %v662 = vld [vmem:[%s661] sm:$0xff]
        %663 = vrot.lane.b32.xlu0 %v662, 1
        %v664 = vpop.permute.xlu0 %663
        %v665 = vld [vmem:[%s660] sm:$0xff]
        %v666 = vld [vmem:[%s660] sm:$0xff]
        %667 = vrot.lane.b32.xlu0 %v666, 1
        %v668 = vpop.permute.xlu0 %667
        %v669 = vlaneseq
        %v670 = vand.u32 %v669, 127
        %vm671 = vcmp.eq.s32.totalorder %v670, 0
        %v672 = vsel %vm671, %v666, %v668
        %v673 = vlaneseq
        %v674 = vand.u32 %v673, 127
        %vm675 = vcmp.eq.s32.totalorder %v674, 1
        %v676 = vsel %vm675, %v664, %v672
        %v677 = vlaneseq
        %v678 = vand.u32 %v677, 127
        %vm679 = vcmp.ge.s32.totalorder %v678, 0
        %vm680 = vcmp.lt.s32.totalorder %v678, 8
        %vm681 = vmand %vm679, %vm680
        %v682 = vsel %vm681, %v676, 0.0
        %v683 = vld [vmem:[%s661] sm:$0xff]
        %684 = vrot.lane.b32.xlu0 %v683, 127
        %v685 = vpop.permute.xlu0 %684
        %v686 = vlaneseq
        %v687 = vand.u32 %v686, 127
        %vm688 = vcmp.eq.s32.totalorder %v687, 7
        %v689 = vsel %vm688, %v665, %v685
        %690 = vst [vmem:[%s660] sm:$0xff] %v682
        %691 = vst [vmem:[%s661] sm:$0xff] %v689
        %s692 = smov [#allocation14]
        %s693 = smov [#allocation15]
        %v694 = vld [vmem:[%s693] sm:$0xff]
        %695 = vrot.lane.b32.xlu0 %v694, 1
        %v696 = vpop.permute.xlu0 %695
        %v697 = vld [vmem:[%s692] sm:$0xff]
        %v698 = vld [vmem:[%s692] sm:$0xff]
        %699 = vrot.lane.b32.xlu0 %v698, 1
        %v700 = vpop.permute.xlu0 %699
        %v701 = vlaneseq
        %v702 = vand.u32 %v701, 127
        %vm703 = vcmp.eq.s32.totalorder %v702, 0
        %v704 = vsel %vm703, %v698, %v700
        %v705 = vlaneseq
        %v706 = vand.u32 %v705, 127
        %vm707 = vcmp.eq.s32.totalorder %v706, 1
        %v708 = vsel %vm707, %v696, %v704
        %v709 = vlaneseq
        %v710 = vand.u32 %v709, 127
        %vm711 = vcmp.ge.s32.totalorder %v710, 0
        %vm712 = vcmp.lt.s32.totalorder %v710, 8
        %vm713 = vmand %vm711, %vm712
        %v714 = vsel %vm713, %v708, 0.0
        %v715 = vld [vmem:[%s693] sm:$0xff]
        %716 = vrot.lane.b32.xlu0 %v715, 127
        %v717 = vpop.permute.xlu0 %716
        %v718 = vlaneseq
        %v719 = vand.u32 %v718, 127
        %vm720 = vcmp.eq.s32.totalorder %v719, 7
        %v721 = vsel %vm720, %v697, %v717
        %722 = vst [vmem:[%s692] sm:$0xff] %v714
        %723 = vst [vmem:[%s693] sm:$0xff] %v721
        %s724 = smov [#allocation12]
        %s725 = smov [#allocation14]
        %v726 = vld [vmem:[%s724] ss:$0 sm:$0xff]
        %s728 = scalar_lea.vmem %s724, 4294967295
        %v729 = vld [vmem:[%s728] sm:$0xfe]
        %v730 = vlaneseq
        %v731 = vshrl.u32 %v730, 7
        %vm732 = vcmp.eq.s32.totalorder %v731, 0
        %v733 = vsel %vm732, %v726, %v729
        %s734 = scalar_lea.vmem %s724, 7
        %v735 = vld [vmem:[%s734] ss:$0 sm:$0xff]
        %736 = vst [vmem:[%s724] sm:$0xff] %v733
        %v737 = vld [vmem:[%s725] ss:$0 sm:$0xff]
        %s738 = scalar_lea.vmem %s724, 1
        %739 = vst [vmem:[%s738] sm:$0x1] %v737
        %s740 = scalar_lea.vmem %s725, 1
        %v741 = vld [vmem:[%s740] sm:$0x7f]
        %v742 = vlaneseq
        %v743 = vshrl.u32 %v742, 7
        %vm744 = vcmp.eq.s32.totalorder %v743, 7
        %v745 = vsel %vm744, %v735, %v741
        %v746 = vld [vmem:[%s725] ss:$0 sm:$0xff]
        %747 = vst [vmem:[%s725] sm:$0xff] %v745
        %s748 = smov [#allocation13]
        %s749 = smov [#allocation15]
        %v750 = vld [vmem:[%s748] ss:$0 sm:$0xff]
        %s752 = scalar_lea.vmem %s748, 4294967295
        %v753 = vld [vmem:[%s752] sm:$0xfe]
        %v754 = vlaneseq
        %v755 = vshrl.u32 %v754, 7
        %vm756 = vcmp.eq.s32.totalorder %v755, 0
        %v757 = vsel %vm756, %v750, %v753
        %s758 = scalar_lea.vmem %s748, 7
        %v759 = vld [vmem:[%s758] ss:$0 sm:$0xff]
        %760 = vst [vmem:[%s748] sm:$0xff] %v757
        %v761 = vld [vmem:[%s749] ss:$0 sm:$0xff]
        %s762 = scalar_lea.vmem %s748, 1
        %763 = vst [vmem:[%s762] sm:$0x1] %v761
        %s764 = scalar_lea.vmem %s749, 1
        %v765 = vld [vmem:[%s764] sm:$0x7f]
        %v766 = vlaneseq
        %v767 = vshrl.u32 %v766, 7
        %vm768 = vcmp.eq.s32.totalorder %v767, 7
        %v769 = vsel %vm768, %v759, %v765
        %v770 = vld [vmem:[%s749] ss:$0 sm:$0xff]
        %771 = vst [vmem:[%s749] sm:$0xff] %v769
        %s772 = smov [#allocation23]
        %v773 = vld [vmem:[%s772] sm:$0xff]
        %s774 = smov [#allocation24]
        %v775 = vld [vmem:[%s774] sm:$0xff]
        %s776 = smov [#allocation8]
        %s777 = smov [#allocation9]
        %s778 = smov [#allocation10]
        %s779 = smov [#allocation11]
        %v780 = vld [vmem:[%s776] sm:$0xff]
        %v781 = vld [vmem:[%s777] sm:$0xff]
        %v782 = vld [vmem:[%s778] sm:$0xff]
        %v783 = vld [vmem:[%s779] sm:$0xff]
        %v784 = vmul.f32 %v773, %v780
        %v785 = vmul.f32 %v775, %v782
        %v786 = vsub.f32 %v784, %v785
        %v787 = vmul.f32 %v773, %v781
        %v788 = vmul.f32 %v775, %v783
        %v789 = vsub.f32 %v787, %v788
        %v790 = vmul.f32 %v775, %v780
        %v791 = vmul.f32 %v773, %v782
        %v792 = vadd.f32 %v790, %v791
        %v793 = vmul.f32 %v775, %v781
        %v794 = vmul.f32 %v773, %v783
        %v795 = vadd.f32 %v793, %v794
        %796 = vst [vmem:[%s776] sm:$0xff] %v786
        %797 = vst [vmem:[%s777] sm:$0xff] %v789
        %798 = vst [vmem:[%s778] sm:$0xff] %v792
        %799 = vst [vmem:[%s779] sm:$0xff] %v795
        %s800 = smov [#allocation8]
        %s801 = smov [#allocation10]
        %v802 = vld [vmem:[%s800] ss:$0 sm:$0xff]
        %s804 = scalar_lea.vmem %s800, 4294967295
        %v805 = vld [vmem:[%s804] sm:$0xfe]
        %v806 = vlaneseq
        %v807 = vshrl.u32 %v806, 7
        %vm808 = vcmp.eq.s32.totalorder %v807, 0
        %v809 = vsel %vm808, %v802, %v805
        %s810 = scalar_lea.vmem %s800, 7
        %v811 = vld [vmem:[%s810] ss:$0 sm:$0xff]
        %812 = vst [vmem:[%s800] sm:$0xff] %v809
        %v813 = vld [vmem:[%s801] ss:$0 sm:$0xff]
        %s814 = scalar_lea.vmem %s800, 1
        %815 = vst [vmem:[%s814] sm:$0x1] %v813
        %s816 = scalar_lea.vmem %s801, 1
        %v817 = vld [vmem:[%s816] sm:$0x7f]
        %v818 = vlaneseq
        %v819 = vshrl.u32 %v818, 7
        %vm820 = vcmp.eq.s32.totalorder %v819, 7
        %v821 = vsel %vm820, %v811, %v817
        %v822 = vld [vmem:[%s801] ss:$0 sm:$0xff]
        %823 = vst [vmem:[%s801] sm:$0xff] %v821
        %s824 = smov [#allocation9]
        %s825 = smov [#allocation11]
        %v826 = vld [vmem:[%s824] ss:$0 sm:$0xff]
        %s828 = scalar_lea.vmem %s824, 4294967295
        %v829 = vld [vmem:[%s828] sm:$0xfe]
        %v830 = vlaneseq
        %v831 = vshrl.u32 %v830, 7
        %vm832 = vcmp.eq.s32.totalorder %v831, 0
        %v833 = vsel %vm832, %v826, %v829
        %s834 = scalar_lea.vmem %s824, 7
        %v835 = vld [vmem:[%s834] ss:$0 sm:$0xff]
        %836 = vst [vmem:[%s824] sm:$0xff] %v833
        %v837 = vld [vmem:[%s825] ss:$0 sm:$0xff]
        %s838 = scalar_lea.vmem %s824, 1
        %839 = vst [vmem:[%s838] sm:$0x1] %v837
        %s840 = scalar_lea.vmem %s825, 1
        %v841 = vld [vmem:[%s840] sm:$0x7f]
        %v842 = vlaneseq
        %v843 = vshrl.u32 %v842, 7
        %vm844 = vcmp.eq.s32.totalorder %v843, 7
        %v845 = vsel %vm844, %v835, %v841
        %v846 = vld [vmem:[%s825] ss:$0 sm:$0xff]
        %847 = vst [vmem:[%s825] sm:$0xff] %v845
      $region101: #{custom-call.2} parent=93 // loop_footer
        %s408 = sadd.s32 1, %s404
      $region102: #{custom-call.2} parent=93 // loop_footer_branch
        %403 = sbr.rel target = $region98
      $region103: #{custom-call.2} parent=93 // loop_exit
        _
      %s848 = sadd.s32 %s306, 1
    $region94: #{custom-call.2} parent=1 // loop_footer
      _
    $region95: #{custom-call.2} parent=1 // loop_footer_branch
      %305 = sbr.rel target = $region91
    $region96: #{custom-call.2} parent=1 // loop_exit
      _
    %s851 = smov [#allocation12]
    %s852 = smov [#allocation4]
    %v853 = vlaneseq
    %v854 = vand.u32 %v853, 127
    %v855 = vmov %v854
    %v856 = vlaneseq
    %v857 = vshrl.u32 %v856, 7
    %v858 = vmov %v857
    %v859 = vld [vmem:[%s851] sm:$0xff]
    %vm862 = vcmp.eq.s32.totalorder %v858, %v855
    %v863 = vsel %vm862, %v859, 0.0
    %v864 = vrot.slane %v863, 4
    %v865 = vadd.f32 %v863, %v864
    %v866 = vrot.slane %v865, 2
    %v867 = vadd.f32 %v865, %v866
    %v868 = vrot.slane %v867, 1
    %v869 = vadd.f32 %v867, %v868
    %870 = vst [vmem:[%s852] sm:$0x1] %v869
    %s871 = smov [#allocation15]
    %s872 = smov [#allocation6]
    %v873 = vlaneseq
    %v874 = vand.u32 %v873, 127
    %v875 = vmov %v874
    %v876 = vlaneseq
    %v877 = vshrl.u32 %v876, 7
    %v878 = vmov %v877
    %v879 = vld [vmem:[%s871] sm:$0xff]
    %vm882 = vcmp.eq.s32.totalorder %v878, %v875
    %v883 = vsel %vm882, %v879, 0.0
    %v884 = vrot.slane %v883, 4
    %v885 = vadd.f32 %v883, %v884
    %v886 = vrot.slane %v885, 2
    %v887 = vadd.f32 %v885, %v886
    %v888 = vrot.slane %v887, 1
    %v889 = vadd.f32 %v887, %v888
    %890 = vst [vmem:[%s872] sm:$0x1] %v889
    %s892 = sshll.u32 1, 1
    %s893 = ssub.s32 %s892, 1
    %v895 = vld [vmem:[#allocation4] sm:%s893]
    %s896 = sshll.u32 1, 1
    %s897 = ssub.s32 %s896, 1
    %898 = vst [vmem:[#allocation5] sm:%s897] %v895
    %s900 = sshll.u32 1, 1
    %s901 = ssub.s32 %s900, 1
    %v903 = vld [vmem:[#allocation6] sm:%s901]
    %s904 = sshll.u32 1, 1
    %s905 = ssub.s32 %s904, 1
    %906 = vst [vmem:[#allocation7] sm:%s905] %v903
    // Predicated region
    $region104: #{custom-call.2} parent=1 // pred_check
      _
    $region105: #{custom-call.2} parent=1 // pred_check_branch
      %908 = sbr.rel (0) target = $region107
    $region106: #{custom-call.2} parent=1 // pred_region
      %p910 = scmp.gt.s32.totalorder 1, 0
      // Predicated region
      $region108: #{custom-call.2} parent=106 // pred_check
        %p911 = pneg %p910
      $region109: #{custom-call.2} parent=106 // pred_check_branch
        %913 = sbr.rel (%p911) target = $region111
      $region110: #{custom-call.2} parent=106 // pred_region
        %s914 = sshra.s32 1, 3
        %p915 = scmp.gt.s32.totalorder %s914, 0
        // Predicated region
        $region112: #{custom-call.2} parent=110 // pred_check
          %p916 = pneg %p915
        $region113: #{custom-call.2} parent=110 // pred_check_branch
          %918 = sbr.rel (%p916) target = $region115
        $region114: #{custom-call.2} parent=110 // pred_region
          %s919 = ssub.s32 %s914, 1
          %s920 = smul.u32 %s919, 128
          %s921 = sshra.s32 %s920, 4
          %s922 = scalar_lea.vmem [#allocation5], %s921
          %v923 = vld [vmem:[#allocation5] sm:$0xff]
          // While loop
          $region116: #{custom-call.2} parent=114 // loop_pre_header
            _
          $region117: #{custom-call.2} parent=114 // loop_header
            %s924 = sphi [#allocation5], %s946
            %s925 = sphi %s4, %s947
            %v926 = vphi %v923, %v948
            %s927 = ssub.s32 %s922, 64
            %p928 = scmp.gt.s32.totalorder %s924, %s927
          $region118: #{custom-call.2} parent=114 // loop_header_branch
            %930 = sbr.rel (%p928) target = $region122
          $region119: #{custom-call.2} parent=114 // loop_body
            %931 = vst [vmem:[%s925] sm:$0xff] %v926
            %v932 = vld [vmem:[%s924 + $0x8] sm:$0xff]
            %933 = vst [vmem:[%s925 + $0x8] sm:$0xff] %v932
            %v934 = vld [vmem:[%s924 + $0x10] sm:$0xff]
            %935 = vst [vmem:[%s925 + $0x10] sm:$0xff] %v934
            %v936 = vld [vmem:[%s924 + $0x18] sm:$0xff]
            %937 = vst [vmem:[%s925 + $0x18] sm:$0xff] %v936
            %v938 = vld [vmem:[%s924 + $0x20] sm:$0xff]
            %939 = vst [vmem:[%s925 + $0x20] sm:$0xff] %v938
            %v940 = vld [vmem:[%s924 + $0x28] sm:$0xff]
            %941 = vst [vmem:[%s925 + $0x28] sm:$0xff] %v940
            %v942 = vld [vmem:[%s924 + $0x30] sm:$0xff]
            %943 = vst [vmem:[%s925 + $0x30] sm:$0xff] %v942
            %v944 = vld [vmem:[%s924 + $0x38] sm:$0xff]
            %945 = vst [vmem:[%s925 + $0x38] sm:$0xff] %v944
          $region120: #{custom-call.2} parent=114 // loop_footer
            %s946 = scalar_lea.vmem %s924, 64
            %s947 = scalar_lea.vmem %s925, 64
            %v948 = vld [vmem:[%s924 + $0x40] sm:$0xff]
          $region121: #{custom-call.2} parent=114 // loop_footer_branch
            %949 = sbr.rel target = $region117
          $region122: #{custom-call.2} parent=114 // loop_exit
            _
          // While loop
          $region123: #{custom-call.2} parent=114 // loop_pre_header
            _
          $region124: #{custom-call.2} parent=114 // loop_header
            %s950 = sphi %s924, %s958
            %s951 = sphi %s925, %s959
            %v952 = vphi %v926, %v952
            %p953 = scmp.gt.s32.totalorder %s950, %s922
          $region125: #{custom-call.2} parent=114 // loop_header_branch
            %955 = sbr.rel (%p953) target = $region129
          $region126: #{custom-call.2} parent=114 // loop_body
            %v956 = vld [vmem:[%s950] sm:$0xff]
            %957 = vst [vmem:[%s951] sm:$0xff] %v956
          $region127: #{custom-call.2} parent=114 // loop_footer
            %s958 = scalar_lea.vmem %s950, 8
            %s959 = scalar_lea.vmem %s951, 8
          $region128: #{custom-call.2} parent=114 // loop_footer_branch
            %960 = sbr.rel target = $region124
          $region129: #{custom-call.2} parent=114 // loop_exit
            _
        $region115: #{custom-call.2} parent=110 // pred_fallthru
          _
        %s961 = sand.u32 1, 7
        %s962 = sshll.u32 1, %s961
        %s963 = ssub.s32 %s962, 1
        %s964 = smul.u32 %s914, 128
        %s965 = sshra.s32 %s964, 4
        %s966 = scalar_lea.vmem %s4, %s965
        %s967 = smul.u32 %s914, 128
        %s968 = sshra.s32 %s967, 4
        %s969 = scalar_lea.vmem [#allocation5], %s968
        %v970 = vld [vmem:[%s969] sm:%s963]
        %971 = vst [vmem:[%s966] sm:%s963] %v970
      $region111: #{custom-call.2} parent=106 // pred_fallthru
        _
    $region107: #{custom-call.2} parent=1 // pred_fallthru
      _
    // Predicated region
    $region130: #{custom-call.2} parent=1 // pred_check
      _
    $region131: #{custom-call.2} parent=1 // pred_check_branch
      %973 = sbr.rel (0) target = $region133
    $region132: #{custom-call.2} parent=1 // pred_region
      %p975 = scmp.gt.s32.totalorder 1, 0
      // Predicated region
      $region134: #{custom-call.2} parent=132 // pred_check
        %p976 = pneg %p975
      $region135: #{custom-call.2} parent=132 // pred_check_branch
        %978 = sbr.rel (%p976) target = $region137
      $region136: #{custom-call.2} parent=132 // pred_region
        %s979 = sshra.s32 1, 3
        %p980 = scmp.gt.s32.totalorder %s979, 0
        // Predicated region
        $region138: #{custom-call.2} parent=136 // pred_check
          %p981 = pneg %p980
        $region139: #{custom-call.2} parent=136 // pred_check_branch
          %983 = sbr.rel (%p981) target = $region141
        $region140: #{custom-call.2} parent=136 // pred_region
          %s984 = ssub.s32 %s979, 1
          %s985 = smul.u32 %s984, 128
          %s986 = sshra.s32 %s985, 4
          %s987 = scalar_lea.vmem [#allocation7], %s986
          %v988 = vld [vmem:[#allocation7] sm:$0xff]
          // While loop
          $region142: #{custom-call.2} parent=140 // loop_pre_header
            _
          $region143: #{custom-call.2} parent=140 // loop_header
            %s989 = sphi [#allocation7], %s1011
            %s990 = sphi %s5, %s1012
            %v991 = vphi %v988, %v1013
            %s992 = ssub.s32 %s987, 64
            %p993 = scmp.gt.s32.totalorder %s989, %s992
          $region144: #{custom-call.2} parent=140 // loop_header_branch
            %995 = sbr.rel (%p993) target = $region148
          $region145: #{custom-call.2} parent=140 // loop_body
            %996 = vst [vmem:[%s990] sm:$0xff] %v991
            %v997 = vld [vmem:[%s989 + $0x8] sm:$0xff]
            %998 = vst [vmem:[%s990 + $0x8] sm:$0xff] %v997
            %v999 = vld [vmem:[%s989 + $0x10] sm:$0xff]
            %1000 = vst [vmem:[%s990 + $0x10] sm:$0xff] %v999
            %v1001 = vld [vmem:[%s989 + $0x18] sm:$0xff]
            %1002 = vst [vmem:[%s990 + $0x18] sm:$0xff] %v1001
            %v1003 = vld [vmem:[%s989 + $0x20] sm:$0xff]
            %1004 = vst [vmem:[%s990 + $0x20] sm:$0xff] %v1003
            %v1005 = vld [vmem:[%s989 + $0x28] sm:$0xff]
            %1006 = vst [vmem:[%s990 + $0x28] sm:$0xff] %v1005
            %v1007 = vld [vmem:[%s989 + $0x30] sm:$0xff]
            %1008 = vst [vmem:[%s990 + $0x30] sm:$0xff] %v1007
            %v1009 = vld [vmem:[%s989 + $0x38] sm:$0xff]
            %1010 = vst [vmem:[%s990 + $0x38] sm:$0xff] %v1009
          $region146: #{custom-call.2} parent=140 // loop_footer
            %s1011 = scalar_lea.vmem %s989, 64
            %s1012 = scalar_lea.vmem %s990, 64
            %v1013 = vld [vmem:[%s989 + $0x40] sm:$0xff]
          $region147: #{custom-call.2} parent=140 // loop_footer_branch
            %1014 = sbr.rel target = $region143
          $region148: #{custom-call.2} parent=140 // loop_exit
            _
          // While loop
          $region149: #{custom-call.2} parent=140 // loop_pre_header
            _
          $region150: #{custom-call.2} parent=140 // loop_header
            %s1015 = sphi %s989, %s1023
            %s1016 = sphi %s990, %s1024
            %v1017 = vphi %v991, %v1017
            %p1018 = scmp.gt.s32.totalorder %s1015, %s987
          $region151: #{custom-call.2} parent=140 // loop_header_branch
            %1020 = sbr.rel (%p1018) target = $region155
          $region152: #{custom-call.2} parent=140 // loop_body
            %v1021 = vld [vmem:[%s1015] sm:$0xff]
            %1022 = vst [vmem:[%s1016] sm:$0xff] %v1021
          $region153: #{custom-call.2} parent=140 // loop_footer
            %s1023 = scalar_lea.vmem %s1015, 8
            %s1024 = scalar_lea.vmem %s1016, 8
          $region154: #{custom-call.2} parent=140 // loop_footer_branch
            %1025 = sbr.rel target = $region150
          $region155: #{custom-call.2} parent=140 // loop_exit
            _
        $region141: #{custom-call.2} parent=136 // pred_fallthru
          _
        %s1026 = sand.u32 1, 7
        %s1027 = sshll.u32 1, %s1026
        %s1028 = ssub.s32 %s1027, 1
        %s1029 = smul.u32 %s979, 128
        %s1030 = sshra.s32 %s1029, 4
        %s1031 = scalar_lea.vmem %s5, %s1030
        %s1032 = smul.u32 %s979, 128
        %s1033 = sshra.s32 %s1032, 4
        %s1034 = scalar_lea.vmem [#allocation7], %s1033
        %v1035 = vld [vmem:[%s1034] sm:%s1028]
        %1036 = vst [vmem:[%s1031] sm:%s1028] %v1035
      $region137: #{custom-call.2} parent=132 // pred_fallthru
        _
    $region133: #{custom-call.2} parent=1 // pred_fallthru
      _
    %p1038 = scmp.gt.s32.totalorder 8, 0
    // Predicated region
    $region156: #{custom-call.2} parent=1 // pred_check
      %p1039 = pneg %p1038
    $region157: #{custom-call.2} parent=1 // pred_check_branch
      %1041 = sbr.rel (%p1039) target = $region159
    $region158: #{custom-call.2} parent=1 // pred_region
      %s1042 = sshra.s32 8, 3
      %p1043 = scmp.gt.s32.totalorder %s1042, 0
      // Predicated region
      $region160: #{custom-call.2} parent=158 // pred_check
        %p1044 = pneg %p1043
      $region161: #{custom-call.2} parent=158 // pred_check_branch
        %1046 = sbr.rel (%p1044) target = $region163
      $region162: #{custom-call.2} parent=158 // pred_region
        %s1047 = ssub.s32 %s1042, 1
        %s1048 = smul.u32 %s1047, 128
        %s1049 = sshra.s32 %s1048, 4
        %s1050 = scalar_lea.vmem [#allocation8], %s1049
        %v1051 = vld [vmem:[#allocation8] sm:$0xff]
        // While loop
        $region164: #{custom-call.2} parent=162 // loop_pre_header
          _
        $region165: #{custom-call.2} parent=162 // loop_header
          %s1052 = sphi [#allocation8], %s1074
          %s1053 = sphi %s6, %s1075
          %v1054 = vphi %v1051, %v1076
          %s1055 = ssub.s32 %s1050, 64
          %p1056 = scmp.gt.s32.totalorder %s1052, %s1055
        $region166: #{custom-call.2} parent=162 // loop_header_branch
          %1058 = sbr.rel (%p1056) target = $region170
        $region167: #{custom-call.2} parent=162 // loop_body
          %1059 = vst [vmem:[%s1053] sm:$0xff] %v1054
          %v1060 = vld [vmem:[%s1052 + $0x8] sm:$0xff]
          %1061 = vst [vmem:[%s1053 + $0x8] sm:$0xff] %v1060
          %v1062 = vld [vmem:[%s1052 + $0x10] sm:$0xff]
          %1063 = vst [vmem:[%s1053 + $0x10] sm:$0xff] %v1062
          %v1064 = vld [vmem:[%s1052 + $0x18] sm:$0xff]
          %1065 = vst [vmem:[%s1053 + $0x18] sm:$0xff] %v1064
          %v1066 = vld [vmem:[%s1052 + $0x20] sm:$0xff]
          %1067 = vst [vmem:[%s1053 + $0x20] sm:$0xff] %v1066
          %v1068 = vld [vmem:[%s1052 + $0x28] sm:$0xff]
          %1069 = vst [vmem:[%s1053 + $0x28] sm:$0xff] %v1068
          %v1070 = vld [vmem:[%s1052 + $0x30] sm:$0xff]
          %1071 = vst [vmem:[%s1053 + $0x30] sm:$0xff] %v1070
          %v1072 = vld [vmem:[%s1052 + $0x38] sm:$0xff]
          %1073 = vst [vmem:[%s1053 + $0x38] sm:$0xff] %v1072
        $region168: #{custom-call.2} parent=162 // loop_footer
          %s1074 = scalar_lea.vmem %s1052, 64
          %s1075 = scalar_lea.vmem %s1053, 64
          %v1076 = vld [vmem:[%s1052 + $0x40] sm:$0xff]
        $region169: #{custom-call.2} parent=162 // loop_footer_branch
          %1077 = sbr.rel target = $region165
        $region170: #{custom-call.2} parent=162 // loop_exit
          _
        // While loop
        $region171: #{custom-call.2} parent=162 // loop_pre_header
          _
        $region172: #{custom-call.2} parent=162 // loop_header
          %s1078 = sphi %s1052, %s1086
          %s1079 = sphi %s1053, %s1087
          %v1080 = vphi %v1054, %v1080
          %p1081 = scmp.gt.s32.totalorder %s1078, %s1050
        $region173: #{custom-call.2} parent=162 // loop_header_branch
          %1083 = sbr.rel (%p1081) target = $region177
        $region174: #{custom-call.2} parent=162 // loop_body
          %v1084 = vld [vmem:[%s1078] sm:$0xff]
          %1085 = vst [vmem:[%s1079] sm:$0xff] %v1084
        $region175: #{custom-call.2} parent=162 // loop_footer
          %s1086 = scalar_lea.vmem %s1078, 8
          %s1087 = scalar_lea.vmem %s1079, 8
        $region176: #{custom-call.2} parent=162 // loop_footer_branch
          %1088 = sbr.rel target = $region172
        $region177: #{custom-call.2} parent=162 // loop_exit
          _
      $region163: #{custom-call.2} parent=158 // pred_fallthru
        _
      %s1089 = sand.u32 8, 7
      %s1090 = sshll.u32 1, %s1089
      %s1091 = ssub.s32 %s1090, 1
      %s1092 = smul.u32 %s1042, 128
      %s1093 = sshra.s32 %s1092, 4
      %s1094 = scalar_lea.vmem %s6, %s1093
      %s1095 = smul.u32 %s1042, 128
      %s1096 = sshra.s32 %s1095, 4
      %s1097 = scalar_lea.vmem [#allocation8], %s1096
      %v1098 = vld [vmem:[%s1097] sm:%s1091]
      %1099 = vst [vmem:[%s1094] sm:%s1091] %v1098
    $region159: #{custom-call.2} parent=1 // pred_fallthru
      _
    %p1101 = scmp.gt.s32.totalorder 8, 0
    // Predicated region
    $region178: #{custom-call.2} parent=1 // pred_check
      %p1102 = pneg %p1101
    $region179: #{custom-call.2} parent=1 // pred_check_branch
      %1104 = sbr.rel (%p1102) target = $region181
    $region180: #{custom-call.2} parent=1 // pred_region
      %s1105 = sshra.s32 8, 3
      %p1106 = scmp.gt.s32.totalorder %s1105, 0
      // Predicated region
      $region182: #{custom-call.2} parent=180 // pred_check
        %p1107 = pneg %p1106
      $region183: #{custom-call.2} parent=180 // pred_check_branch
        %1109 = sbr.rel (%p1107) target = $region185
      $region184: #{custom-call.2} parent=180 // pred_region
        %s1110 = ssub.s32 %s1105, 1
        %s1111 = smul.u32 %s1110, 128
        %s1112 = sshra.s32 %s1111, 4
        %s1113 = scalar_lea.vmem [#allocation9], %s1112
        %v1114 = vld [vmem:[#allocation9] sm:$0xff]
        // While loop
        $region186: #{custom-call.2} parent=184 // loop_pre_header
          _
        $region187: #{custom-call.2} parent=184 // loop_header
          %s1115 = sphi [#allocation9], %s1137
          %s1116 = sphi %s7, %s1138
          %v1117 = vphi %v1114, %v1139
          %s1118 = ssub.s32 %s1113, 64
          %p1119 = scmp.gt.s32.totalorder %s1115, %s1118
        $region188: #{custom-call.2} parent=184 // loop_header_branch
          %1121 = sbr.rel (%p1119) target = $region192
        $region189: #{custom-call.2} parent=184 // loop_body
          %1122 = vst [vmem:[%s1116] sm:$0xff] %v1117
          %v1123 = vld [vmem:[%s1115 + $0x8] sm:$0xff]
          %1124 = vst [vmem:[%s1116 + $0x8] sm:$0xff] %v1123
          %v1125 = vld [vmem:[%s1115 + $0x10] sm:$0xff]
          %1126 = vst [vmem:[%s1116 + $0x10] sm:$0xff] %v1125
          %v1127 = vld [vmem:[%s1115 + $0x18] sm:$0xff]
          %1128 = vst [vmem:[%s1116 + $0x18] sm:$0xff] %v1127
          %v1129 = vld [vmem:[%s1115 + $0x20] sm:$0xff]
          %1130 = vst [vmem:[%s1116 + $0x20] sm:$0xff] %v1129
          %v1131 = vld [vmem:[%s1115 + $0x28] sm:$0xff]
          %1132 = vst [vmem:[%s1116 + $0x28] sm:$0xff] %v1131
          %v1133 = vld [vmem:[%s1115 + $0x30] sm:$0xff]
          %1134 = vst [vmem:[%s1116 + $0x30] sm:$0xff] %v1133
          %v1135 = vld [vmem:[%s1115 + $0x38] sm:$0xff]
          %1136 = vst [vmem:[%s1116 + $0x38] sm:$0xff] %v1135
        $region190: #{custom-call.2} parent=184 // loop_footer
          %s1137 = scalar_lea.vmem %s1115, 64
          %s1138 = scalar_lea.vmem %s1116, 64
          %v1139 = vld [vmem:[%s1115 + $0x40] sm:$0xff]
        $region191: #{custom-call.2} parent=184 // loop_footer_branch
          %1140 = sbr.rel target = $region187
        $region192: #{custom-call.2} parent=184 // loop_exit
          _
        // While loop
        $region193: #{custom-call.2} parent=184 // loop_pre_header
          _
        $region194: #{custom-call.2} parent=184 // loop_header
          %s1141 = sphi %s1115, %s1149
          %s1142 = sphi %s1116, %s1150
          %v1143 = vphi %v1117, %v1143
          %p1144 = scmp.gt.s32.totalorder %s1141, %s1113
        $region195: #{custom-call.2} parent=184 // loop_header_branch
          %1146 = sbr.rel (%p1144) target = $region199
        $region196: #{custom-call.2} parent=184 // loop_body
          %v1147 = vld [vmem:[%s1141] sm:$0xff]
          %1148 = vst [vmem:[%s1142] sm:$0xff] %v1147
        $region197: #{custom-call.2} parent=184 // loop_footer
          %s1149 = scalar_lea.vmem %s1141, 8
          %s1150 = scalar_lea.vmem %s1142, 8
        $region198: #{custom-call.2} parent=184 // loop_footer_branch
          %1151 = sbr.rel target = $region194
        $region199: #{custom-call.2} parent=184 // loop_exit
          _
      $region185: #{custom-call.2} parent=180 // pred_fallthru
        _
      %s1152 = sand.u32 8, 7
      %s1153 = sshll.u32 1, %s1152
      %s1154 = ssub.s32 %s1153, 1
      %s1155 = smul.u32 %s1105, 128
      %s1156 = sshra.s32 %s1155, 4
      %s1157 = scalar_lea.vmem %s7, %s1156
      %s1158 = smul.u32 %s1105, 128
      %s1159 = sshra.s32 %s1158, 4
      %s1160 = scalar_lea.vmem [#allocation9], %s1159
      %v1161 = vld [vmem:[%s1160] sm:%s1154]
      %1162 = vst [vmem:[%s1157] sm:%s1154] %v1161
    $region181: #{custom-call.2} parent=1 // pred_fallthru
      _
    %p1164 = scmp.gt.s32.totalorder 8, 0
    // Predicated region
    $region200: #{custom-call.2} parent=1 // pred_check
      %p1165 = pneg %p1164
    $region201: #{custom-call.2} parent=1 // pred_check_branch
      %1167 = sbr.rel (%p1165) target = $region203
    $region202: #{custom-call.2} parent=1 // pred_region
      %s1168 = sshra.s32 8, 3
      %p1169 = scmp.gt.s32.totalorder %s1168, 0
      // Predicated region
      $region204: #{custom-call.2} parent=202 // pred_check
        %p1170 = pneg %p1169
      $region205: #{custom-call.2} parent=202 // pred_check_branch
        %1172 = sbr.rel (%p1170) target = $region207
      $region206: #{custom-call.2} parent=202 // pred_region
        %s1173 = ssub.s32 %s1168, 1
        %s1174 = smul.u32 %s1173, 128
        %s1175 = sshra.s32 %s1174, 4
        %s1176 = scalar_lea.vmem [#allocation10], %s1175
        %v1177 = vld [vmem:[#allocation10] sm:$0xff]
        // While loop
        $region208: #{custom-call.2} parent=206 // loop_pre_header
          _
        $region209: #{custom-call.2} parent=206 // loop_header
          %s1178 = sphi [#allocation10], %s1200
          %s1179 = sphi %s8, %s1201
          %v1180 = vphi %v1177, %v1202
          %s1181 = ssub.s32 %s1176, 64
          %p1182 = scmp.gt.s32.totalorder %s1178, %s1181
        $region210: #{custom-call.2} parent=206 // loop_header_branch
          %1184 = sbr.rel (%p1182) target = $region214
        $region211: #{custom-call.2} parent=206 // loop_body
          %1185 = vst [vmem:[%s1179] sm:$0xff] %v1180
          %v1186 = vld [vmem:[%s1178 + $0x8] sm:$0xff]
          %1187 = vst [vmem:[%s1179 + $0x8] sm:$0xff] %v1186
          %v1188 = vld [vmem:[%s1178 + $0x10] sm:$0xff]
          %1189 = vst [vmem:[%s1179 + $0x10] sm:$0xff] %v1188
          %v1190 = vld [vmem:[%s1178 + $0x18] sm:$0xff]
          %1191 = vst [vmem:[%s1179 + $0x18] sm:$0xff] %v1190
          %v1192 = vld [vmem:[%s1178 + $0x20] sm:$0xff]
          %1193 = vst [vmem:[%s1179 + $0x20] sm:$0xff] %v1192
          %v1194 = vld [vmem:[%s1178 + $0x28] sm:$0xff]
          %1195 = vst [vmem:[%s1179 + $0x28] sm:$0xff] %v1194
          %v1196 = vld [vmem:[%s1178 + $0x30] sm:$0xff]
          %1197 = vst [vmem:[%s1179 + $0x30] sm:$0xff] %v1196
          %v1198 = vld [vmem:[%s1178 + $0x38] sm:$0xff]
          %1199 = vst [vmem:[%s1179 + $0x38] sm:$0xff] %v1198
        $region212: #{custom-call.2} parent=206 // loop_footer
          %s1200 = scalar_lea.vmem %s1178, 64
          %s1201 = scalar_lea.vmem %s1179, 64
          %v1202 = vld [vmem:[%s1178 + $0x40] sm:$0xff]
        $region213: #{custom-call.2} parent=206 // loop_footer_branch
          %1203 = sbr.rel target = $region209
        $region214: #{custom-call.2} parent=206 // loop_exit
          _
        // While loop
        $region215: #{custom-call.2} parent=206 // loop_pre_header
          _
        $region216: #{custom-call.2} parent=206 // loop_header
          %s1204 = sphi %s1178, %s1212
          %s1205 = sphi %s1179, %s1213
          %v1206 = vphi %v1180, %v1206
          %p1207 = scmp.gt.s32.totalorder %s1204, %s1176
        $region217: #{custom-call.2} parent=206 // loop_header_branch
          %1209 = sbr.rel (%p1207) target = $region221
        $region218: #{custom-call.2} parent=206 // loop_body
          %v1210 = vld [vmem:[%s1204] sm:$0xff]
          %1211 = vst [vmem:[%s1205] sm:$0xff] %v1210
        $region219: #{custom-call.2} parent=206 // loop_footer
          %s1212 = scalar_lea.vmem %s1204, 8
          %s1213 = scalar_lea.vmem %s1205, 8
        $region220: #{custom-call.2} parent=206 // loop_footer_branch
          %1214 = sbr.rel target = $region216
        $region221: #{custom-call.2} parent=206 // loop_exit
          _
      $region207: #{custom-call.2} parent=202 // pred_fallthru
        _
      %s1215 = sand.u32 8, 7
      %s1216 = sshll.u32 1, %s1215
      %s1217 = ssub.s32 %s1216, 1
      %s1218 = smul.u32 %s1168, 128
      %s1219 = sshra.s32 %s1218, 4
      %s1220 = scalar_lea.vmem %s8, %s1219
      %s1221 = smul.u32 %s1168, 128
      %s1222 = sshra.s32 %s1221, 4
      %s1223 = scalar_lea.vmem [#allocation10], %s1222
      %v1224 = vld [vmem:[%s1223] sm:%s1217]
      %1225 = vst [vmem:[%s1220] sm:%s1217] %v1224
    $region203: #{custom-call.2} parent=1 // pred_fallthru
      _
    %p1227 = scmp.gt.s32.totalorder 8, 0
    // Predicated region
    $region222: #{custom-call.2} parent=1 // pred_check
      %p1228 = pneg %p1227
    $region223: #{custom-call.2} parent=1 // pred_check_branch
      %1230 = sbr.rel (%p1228) target = $region225
    $region224: #{custom-call.2} parent=1 // pred_region
      %s1231 = sshra.s32 8, 3
      %p1232 = scmp.gt.s32.totalorder %s1231, 0
      // Predicated region
      $region226: #{custom-call.2} parent=224 // pred_check
        %p1233 = pneg %p1232
      $region227: #{custom-call.2} parent=224 // pred_check_branch
        %1235 = sbr.rel (%p1233) target = $region229
      $region228: #{custom-call.2} parent=224 // pred_region
        %s1236 = ssub.s32 %s1231, 1
        %s1237 = smul.u32 %s1236, 128
        %s1238 = sshra.s32 %s1237, 4
        %s1239 = scalar_lea.vmem [#allocation11], %s1238
        %v1240 = vld [vmem:[#allocation11] sm:$0xff]
        // While loop
        $region230: #{custom-call.2} parent=228 // loop_pre_header
          _
        $region231: #{custom-call.2} parent=228 // loop_header
          %s1241 = sphi [#allocation11], %s1263
          %s1242 = sphi %s9, %s1264
          %v1243 = vphi %v1240, %v1265
          %s1244 = ssub.s32 %s1239, 64
          %p1245 = scmp.gt.s32.totalorder %s1241, %s1244
        $region232: #{custom-call.2} parent=228 // loop_header_branch
          %1247 = sbr.rel (%p1245) target = $region236
        $region233: #{custom-call.2} parent=228 // loop_body
          %1248 = vst [vmem:[%s1242] sm:$0xff] %v1243
          %v1249 = vld [vmem:[%s1241 + $0x8] sm:$0xff]
          %1250 = vst [vmem:[%s1242 + $0x8] sm:$0xff] %v1249
          %v1251 = vld [vmem:[%s1241 + $0x10] sm:$0xff]
          %1252 = vst [vmem:[%s1242 + $0x10] sm:$0xff] %v1251
          %v1253 = vld [vmem:[%s1241 + $0x18] sm:$0xff]
          %1254 = vst [vmem:[%s1242 + $0x18] sm:$0xff] %v1253
          %v1255 = vld [vmem:[%s1241 + $0x20] sm:$0xff]
          %1256 = vst [vmem:[%s1242 + $0x20] sm:$0xff] %v1255
          %v1257 = vld [vmem:[%s1241 + $0x28] sm:$0xff]
          %1258 = vst [vmem:[%s1242 + $0x28] sm:$0xff] %v1257
          %v1259 = vld [vmem:[%s1241 + $0x30] sm:$0xff]
          %1260 = vst [vmem:[%s1242 + $0x30] sm:$0xff] %v1259
          %v1261 = vld [vmem:[%s1241 + $0x38] sm:$0xff]
          %1262 = vst [vmem:[%s1242 + $0x38] sm:$0xff] %v1261
        $region234: #{custom-call.2} parent=228 // loop_footer
          %s1263 = scalar_lea.vmem %s1241, 64
          %s1264 = scalar_lea.vmem %s1242, 64
          %v1265 = vld [vmem:[%s1241 + $0x40] sm:$0xff]
        $region235: #{custom-call.2} parent=228 // loop_footer_branch
          %1266 = sbr.rel target = $region231
        $region236: #{custom-call.2} parent=228 // loop_exit
          _
        // While loop
        $region237: #{custom-call.2} parent=228 // loop_pre_header
          _
        $region238: #{custom-call.2} parent=228 // loop_header
          %s1267 = sphi %s1241, %s1275
          %s1268 = sphi %s1242, %s1276
          %v1269 = vphi %v1243, %v1269
          %p1270 = scmp.gt.s32.totalorder %s1267, %s1239
        $region239: #{custom-call.2} parent=228 // loop_header_branch
          %1272 = sbr.rel (%p1270) target = $region243
        $region240: #{custom-call.2} parent=228 // loop_body
          %v1273 = vld [vmem:[%s1267] sm:$0xff]
          %1274 = vst [vmem:[%s1268] sm:$0xff] %v1273
        $region241: #{custom-call.2} parent=228 // loop_footer
          %s1275 = scalar_lea.vmem %s1267, 8
          %s1276 = scalar_lea.vmem %s1268, 8
        $region242: #{custom-call.2} parent=228 // loop_footer_branch
          %1277 = sbr.rel target = $region238
        $region243: #{custom-call.2} parent=228 // loop_exit
          _
      $region229: #{custom-call.2} parent=224 // pred_fallthru
        _
      %s1278 = sand.u32 8, 7
      %s1279 = sshll.u32 1, %s1278
      %s1280 = ssub.s32 %s1279, 1
      %s1281 = smul.u32 %s1231, 128
      %s1282 = sshra.s32 %s1281, 4
      %s1283 = scalar_lea.vmem %s9, %s1282
      %s1284 = smul.u32 %s1231, 128
      %s1285 = sshra.s32 %s1284, 4
      %s1286 = scalar_lea.vmem [#allocation11], %s1285
      %v1287 = vld [vmem:[%s1286] sm:%s1280]
      %1288 = vst [vmem:[%s1283] sm:%s1280] %v1287
    $region225: #{custom-call.2} parent=1 // pred_fallthru
      _
    // Predicated region
    $region244: #{custom-call.2} parent=1 // pred_check
      _
    $region245: #{custom-call.2} parent=1 // pred_check_branch
      %1290 = sbr.rel (0) target = $region247
    $region246: #{custom-call.2} parent=1 // pred_region
      _
    $region247: #{custom-call.2} parent=1 // pred_fallthru
      _
    // Predicated region
    $region248: #{custom-call.2} parent=1 // pred_check
      _
    $region249: #{custom-call.2} parent=1 // pred_check_branch
      %1292 = sbr.rel (0) target = $region251
    $region250: #{custom-call.2} parent=1 // pred_region
      _
    $region251: #{custom-call.2} parent=1 // pred_fallthru
      _

// kernel: agsr_net_forward.3
$region0: #{agsr_net_forward.3}
  #allocation0 [shape = 'u32[]', space=smem, size = 0x4, offset = 0x4, fixed_abs, tag = 'smem constant byte address 0x4 - core index']
  #allocation1 [shape = 'u32[144,128]{1,0:T(1,128)}', space=vmem, size = 0x12000, scoped, tag = 'internal scratch']
  %s0 = inlined_call_operand.vmem [shape: f32[32,32], index: 0, kind: input, shape index: {}]
  %s1 = inlined_call_operand.vmem [shape: f32[16,16], index: 1, kind: input, shape index: {}]
  %s2 = inlined_call_operand.vmem [shape: f32[16,32], index: 2, kind: input, shape index: {}]
  %s3 = inlined_call_operand.vmem [shape: f32[32,32], index: 3, kind: input, shape index: {}]
  %s4 = inlined_call_operand.vmem [shape: f32[32,32], index: 4, kind: input, shape index: {}]
  %s5 = inlined_call_operand.hbm [shape: f32[32,32], index: 5, kind: output, shape index: {0}]
  %s6 = inlined_call_operand.hbm [shape: f32[32,32], index: 6, kind: output, shape index: {1}]
  %7 = xla_tuple %s5, %s6
  %s8 = sld [smem:[#allocation0]]
  $region38: #{agsr_net_forward.3} parent=0
    _
  %s10 = ssub.s32 1, %s8
  %s11 = scalar_select 0, %s10, %s8
  $region1: #{agsr_net_forward.3} parent=0
    #allocation2 [shape = 'u8[16384]{0}', space=vmem, size = 0x4000, scoped, tag = 'output window, operand 0, single buffered']
    #allocation3 [shape = 's32[1]{0}', space=sflag, size = 0x4, scoped, tag = 'scoped memory for agsr_net_forward.3']
    #allocation4 [shape = 'u8[16384]{0}', space=vmem, size = 0x4000, scoped, tag = 'output window, operand 1, single buffered']
    #allocation5 [shape = 's32[1]{0}', space=sflag, size = 0x4, scoped, tag = 'scoped memory for agsr_net_forward.3']
    %12 = vsyncpa [#allocation3], 0
    %13 = vsyncpa [#allocation5], 0
    // Predicated region
    $region2: #{agsr_net_forward.3} parent=1 // pred_check
      _
    $region3: #{agsr_net_forward.3} parent=1 // pred_check_branch
      %15 = sbr.rel (0) target = $region5
    $region4: #{agsr_net_forward.3} parent=1 // pred_region
      _
    $region5: #{agsr_net_forward.3} parent=1 // pred_fallthru
      _
    // Predicated region
    $region6: #{agsr_net_forward.3} parent=1 // pred_check
      _
    $region7: #{agsr_net_forward.3} parent=1 // pred_check_branch
      %17 = sbr.rel (0) target = $region9
    $region8: #{agsr_net_forward.3} parent=1 // pred_region
      _
    $region9: #{agsr_net_forward.3} parent=1 // pred_fallthru
      _
    // Predicated region
    $region10: #{agsr_net_forward.3} parent=1 // pred_check
      _
    $region11: #{agsr_net_forward.3} parent=1 // pred_check_branch
      %19 = sbr.rel (0) target = $region13
    $region12: #{agsr_net_forward.3} parent=1 // pred_region
      _
    $region13: #{agsr_net_forward.3} parent=1 // pred_fallthru
      _
    // Predicated region
    $region14: #{agsr_net_forward.3} parent=1 // pred_check
      _
    $region15: #{agsr_net_forward.3} parent=1 // pred_check_branch
      %21 = sbr.rel (0) target = $region17
    $region16: #{agsr_net_forward.3} parent=1 // pred_region
      _
    $region17: #{agsr_net_forward.3} parent=1 // pred_fallthru
      _
    // Predicated region
    $region18: #{agsr_net_forward.3} parent=1 // pred_check
      _
    $region19: #{agsr_net_forward.3} parent=1 // pred_check_branch
      %23 = sbr.rel (0) target = $region21
    $region20: #{agsr_net_forward.3} parent=1 // pred_region
      _
    $region21: #{agsr_net_forward.3} parent=1 // pred_fallthru
      _
    %v24 = vld [vmem:[%s0] sm:$0xff]
    %v25 = vld [vmem:[%s0 + $0x8] sm:$0xff]
    %v26 = vld [vmem:[%s0 + $0x10] sm:$0xff]
    %v27 = vld [vmem:[%s0 + $0x18] sm:$0xff]
    %32 = vrot.lane.b32.xlu0 %v24, 112
    %v33 = vpop.permute.xlu0 %32
    %34 = vrot.lane.b32.xlu0 %v25, 112
    %v35 = vpop.permute.xlu0 %34
    %36 = vrot.lane.b32.xlu0 %v26, 112
    %v37 = vpop.permute.xlu0 %36
    %38 = vrot.lane.b32.xlu0 %v27, 112
    %v39 = vpop.permute.xlu0 %38
    %v44 = vadd.f32 %v24, %v33
    %v45 = vadd.f32 %v25, %v35
    %v46 = vadd.f32 %v26, %v37
    %v47 = vadd.f32 %v27, %v39
    %v48 = vld [vmem:[%s1] sm:$0xff]
    %v49 = vld [vmem:[%s1 + $0x8] sm:$0xff]
    %vm50 = vcmask 130048
    %v52 = vsel %vm50, %v44, 0
    %v55 = vsel %vm50, %v45, 0
    %v58 = vsel %vm50, %v46, 0
    %v61 = vsel %vm50, %v47, 0
    %63 = vmatprep.subr.mxu0 0.0
    %64 = vmatpush1.msra.mxu0 0.0
    %65 = vmatprep.subr.mxu0 0.0
    %66 = vmatpush1.msra.mxu0 0.0
    %67 = vmatprep.subr.mxu0 0.0
    %68 = vmatpush1.msra.mxu0 0.0
    %69 = vmatprep.subr.mxu0 0.0
    %70 = vmatpush1.msra.mxu0 0.0
    %71 = vmatprep.subr.mxu0 0.0
    %72 = vmatpush1.msra.mxu0 0.0
    %73 = vmatprep.subr.mxu0 0.0
    %74 = vmatpush1.msra.mxu0 0.0
    %75 = vmatprep.subr.mxu0 0.0
    %76 = vmatpush1.msra.mxu0 0.0
    %77 = vmatprep.subr.mxu0 0.0
    %78 = vmatpush1.msra.mxu0 0.0
    %79 = vmatprep.subr.mxu0 0.0
    %80 = vmatpush1.msra.mxu0 0.0
    %81 = vmatprep.subr.mxu0 0.0
    %82 = vmatpush1.msra.mxu0 0.0
    %83 = vmatprep.subr.mxu0 0.0
    %84 = vmatpush1.msra.mxu0 0.0
    %85 = vmatprep.subr.mxu0 0.0
    %86 = vmatpush1.msra.mxu0 0.0
    %87 = vmatprep.subr.mxu0 0.0
    %88 = vmatpush1.msra.mxu0 0.0
    %89 = vmatprep.subr.mxu0 0.0
    %90 = vmatpush1.msra.mxu0 0.0
    %91 = vmatprep.subr.mxu0 0.0
    %92 = vmatpush1.msra.mxu0 %v49
    %93 = vmatprep.subr.mxu0 0.0
    %94 = vmatpush1.msra.mxu0 %v48
    %95 = vmatprep.subr.mxu0 0.0
    %96 = vmatpush2.msra.mxu0 0.0
    %97 = vmatprep.subr.mxu0 0.0
    %98 = vmatpush2.msra.mxu0 0.0
    %99 = vmatprep.subr.mxu0 0.0
    %100 = vmatpush2.msra.mxu0 0.0
    %101 = vmatprep.subr.mxu0 0.0
    %102 = vmatpush2.msra.mxu0 0.0
    %103 = vmatprep.subr.mxu0 0.0
    %104 = vmatpush2.msra.mxu0 0.0
    %105 = vmatprep.subr.mxu0 0.0
    %106 = vmatpush2.msra.mxu0 0.0
    %107 = vmatprep.subr.mxu0 0.0
    %108 = vmatpush2.msra.mxu0 0.0
    %109 = vmatprep.subr.mxu0 0.0
    %110 = vmatpush2.msra.mxu0 0.0
    %111 = vmatprep.subr.mxu0 0.0
    %112 = vmatpush2.msra.mxu0 0.0
    %113 = vmatprep.subr.mxu0 0.0
    %114 = vmatpush2.msra.mxu0 0.0
    %115 = vmatprep.subr.mxu0 0.0
    %116 = vmatpush2.msra.mxu0 0.0
    %117 = vmatprep.subr.mxu0 0.0
    %118 = vmatpush2.msra.mxu0 0.0
    %119 = vmatprep.subr.mxu0 0.0
    %120 = vmatpush2.msra.mxu0 0.0
    %121 = vmatprep.subr.mxu0 0.0
    %122 = vmatpush2.msra.mxu0 0.0
    %123 = vmatprep.subr.mxu0 0.0
    %124 = vmatpush2.msra.mxu0 0.0
    %125 = vmatprep.subr.mxu0 0.0
    %126 = vmatpush2.msra.mxu0 0.0
    %127 = vmatprep.mubr.f32.mxu0 0.0
    %128 = vmatmul.mubr.f32.gmra.mxu0 %v52
    %v129 = vpop.f32.mrf.mxu0
    %v130 = vadd.f32 0.0, %v129
    %v131 = vpop.f32.mrf.mxu0
    %132 = vmatprep.mubr.f32.mxu0 0.0
    %133 = vmatmul.mubr.f32.gmra.mxu0 %v55
    %v134 = vpop.f32.mrf.mxu0
    %v135 = vadd.f32 0.0, %v134
    %v136 = vpop.f32.mrf.mxu0
    %137 = vmatprep.mubr.f32.mxu0 0.0
    %138 = vmatmul.mubr.f32.gmra.mxu0 %v58
    %v139 = vpop.f32.mrf.mxu0
    %v140 = vadd.f32 0.0, %v139
    %v141 = vpop.f32.mrf.mxu0
    %142 = vmatprep.mubr.f32.mxu0 0.0
    %143 = vmatmul.mubr.f32.gmra.mxu0 %v61
    %v144 = vpop.f32.mrf.mxu0
    %v145 = vadd.f32 0.0, %v144
    %v146 = vpop.f32.mrf.mxu0
    %147 = vdwg.mxu0
    %v148 = vld [vmem:[%s2] sm:$0xff]
    %v149 = vld [vmem:[%s2 + $0x8] sm:$0xff]
    %v151 = vsel %vm50, %v130, 0
    %v154 = vsel %vm50, %v135, 0
    %v157 = vsel %vm50, %v140, 0
    %v160 = vsel %vm50, %v145, 0
    %162 = vmatprep.subr.mxu0 0.0
    %163 = vmatpush1.msra.mxu0 0.0
    %164 = vmatprep.subr.mxu0 0.0
    %165 = vmatpush1.msra.mxu0 0.0
    %166 = vmatprep.subr.mxu0 0.0
    %167 = vmatpush1.msra.mxu0 0.0
    %168 = vmatprep.subr.mxu0 0.0
    %169 = vmatpush1.msra.mxu0 0.0
    %170 = vmatprep.subr.mxu0 0.0
    %171 = vmatpush1.msra.mxu0 0.0
    %172 = vmatprep.subr.mxu0 0.0
    %173 = vmatpush1.msra.mxu0 0.0
    %174 = vmatprep.subr.mxu0 0.0
    %175 = vmatpush1.msra.mxu0 0.0
    %176 = vmatprep.subr.mxu0 0.0
    %177 = vmatpush1.msra.mxu0 0.0
    %178 = vmatprep.subr.mxu0 0.0
    %179 = vmatpush1.msra.mxu0 0.0
    %180 = vmatprep.subr.mxu0 0.0
    %181 = vmatpush1.msra.mxu0 0.0
    %182 = vmatprep.subr.mxu0 0.0
    %183 = vmatpush1.msra.mxu0 0.0
    %184 = vmatprep.subr.mxu0 0.0
    %185 = vmatpush1.msra.mxu0 0.0
    %186 = vmatprep.subr.mxu0 0.0
    %187 = vmatpush1.msra.mxu0 0.0
    %188 = vmatprep.subr.mxu0 0.0
    %189 = vmatpush1.msra.mxu0 0.0
    %190 = vmatprep.subr.mxu0 0.0
    %191 = vmatpush1.msra.mxu0 %v149
    %192 = vmatprep.subr.mxu0 0.0
    %193 = vmatpush1.msra.mxu0 %v148
    %194 = vmatprep.subr.mxu0 0.0
    %195 = vmatpush2.msra.mxu0 0.0
    %196 = vmatprep.subr.mxu0 0.0
    %197 = vmatpush2.msra.mxu0 0.0
    %198 = vmatprep.subr.mxu0 0.0
    %199 = vmatpush2.msra.mxu0 0.0
    %200 = vmatprep.subr.mxu0 0.0
    %201 = vmatpush2.msra.mxu0 0.0
    %202 = vmatprep.subr.mxu0 0.0
    %203 = vmatpush2.msra.mxu0 0.0
    %204 = vmatprep.subr.mxu0 0.0
    %205 = vmatpush2.msra.mxu0 0.0
    %206 = vmatprep.subr.mxu0 0.0
    %207 = vmatpush2.msra.mxu0 0.0
    %208 = vmatprep.subr.mxu0 0.0
    %209 = vmatpush2.msra.mxu0 0.0
    %210 = vmatprep.subr.mxu0 0.0
    %211 = vmatpush2.msra.mxu0 0.0
    %212 = vmatprep.subr.mxu0 0.0
    %213 = vmatpush2.msra.mxu0 0.0
    %214 = vmatprep.subr.mxu0 0.0
    %215 = vmatpush2.msra.mxu0 0.0
    %216 = vmatprep.subr.mxu0 0.0
    %217 = vmatpush2.msra.mxu0 0.0
    %218 = vmatprep.subr.mxu0 0.0
    %219 = vmatpush2.msra.mxu0 0.0
    %220 = vmatprep.subr.mxu0 0.0
    %221 = vmatpush2.msra.mxu0 0.0
    %222 = vmatprep.subr.mxu0 0.0
    %223 = vmatpush2.msra.mxu0 0.0
    %224 = vmatprep.subr.mxu0 0.0
    %225 = vmatpush2.msra.mxu0 0.0
    %226 = vmatprep.mubr.f32.mxu0 0.0
    %227 = vmatmul.mubr.f32.gmra.mxu0 %v151
    %v228 = vpop.f32.mrf.mxu0
    %v229 = vadd.f32 0.0, %v228
    %v230 = vpop.f32.mrf.mxu0
    %231 = vmatprep.mubr.f32.mxu0 0.0
    %232 = vmatmul.mubr.f32.gmra.mxu0 %v154
    %v233 = vpop.f32.mrf.mxu0
    %v234 = vadd.f32 0.0, %v233
    %v235 = vpop.f32.mrf.mxu0
    %236 = vmatprep.mubr.f32.mxu0 0.0
    %237 = vmatmul.mubr.f32.gmra.mxu0 %v157
    %v238 = vpop.f32.mrf.mxu0
    %v239 = vadd.f32 0.0, %v238
    %v240 = vpop.f32.mrf.mxu0
    %241 = vmatprep.mubr.f32.mxu0 0.0
    %242 = vmatmul.mubr.f32.gmra.mxu0 %v160
    %v243 = vpop.f32.mrf.mxu0
    %v244 = vadd.f32 0.0, %v243
    %v245 = vpop.f32.mrf.mxu0
    %246 = vdwg.mxu0
    %v247 = vand.u32 2147483647, %v229
    %v248 = vand.u32 2147483647, %v234
    %v249 = vand.u32 2147483647, %v239
    %v250 = vand.u32 2147483647, %v244
    %v251 = vlaneseq
    %v252 = vshrl.u32 %v251, 7
    %v253 = vadd.s32 %v252, 8
    %v254 = vadd.s32 %v252, 16
    %v255 = vadd.s32 %v252, 24
    %v256 = vlaneseq
    %v257 = vand.u32 %v256, 127
    %vm258 = vcmp.eq.s32.totalorder %v252, %v257
    %vm259 = vcmp.eq.s32.totalorder %v253, %v257
    %vm260 = vcmp.eq.s32.totalorder %v254, %v257
    %vm261 = vcmp.eq.s32.totalorder %v255, %v257
    %v262 = vsel %vm258, 1.0, %v247
    %v263 = vsel %vm259, 1.0, %v248
    %v264 = vsel %vm260, 1.0, %v249
    %v265 = vsel %vm261, 1.0, %v250
    %vm266 = vcmask 261120
    %267 = vst.msk [vmem:[#allocation2] sm:$0xff] %vm266, %v262
    %268 = vst.msk [vmem:[#allocation2 + $0x8] sm:$0xff] %vm266, %v263
    %269 = vst.msk [vmem:[#allocation2 + $0x10] sm:$0xff] %vm266, %v264
    %270 = vst.msk [vmem:[#allocation2 + $0x18] sm:$0xff] %vm266, %v265
    %v272 = vsel %vm266, %v262, 0
    %v275 = vsel %vm266, %v263, 0
    %v278 = vsel %vm266, %v264, 0
    %v281 = vsel %vm266, %v265, 0
    %283 = vmatprep.subr.mxu0 0.0
    %284 = vmatpush1.xpose.msra.mxu0 0.0
    %285 = vmatprep.subr.mxu0 0.0
    %286 = vmatpush1.xpose.msra.mxu0 0.0
    %287 = vmatprep.subr.mxu0 0.0
    %288 = vmatpush1.xpose.msra.mxu0 0.0
    %289 = vmatprep.subr.mxu0 0.0
    %290 = vmatpush1.xpose.msra.mxu0 0.0
    %291 = vmatprep.subr.mxu0 0.0
    %292 = vmatpush1.xpose.msra.mxu0 0.0
    %293 = vmatprep.subr.mxu0 0.0
    %294 = vmatpush1.xpose.msra.mxu0 0.0
    %295 = vmatprep.subr.mxu0 0.0
    %296 = vmatpush1.xpose.msra.mxu0 0.0
    %297 = vmatprep.subr.mxu0 0.0
    %298 = vmatpush1.xpose.msra.mxu0 0.0
    %299 = vmatprep.subr.mxu0 0.0
    %300 = vmatpush1.xpose.msra.mxu0 0.0
    %301 = vmatprep.subr.mxu0 0.0
    %302 = vmatpush1.xpose.msra.mxu0 0.0
    %303 = vmatprep.subr.mxu0 0.0
    %304 = vmatpush1.xpose.msra.mxu0 0.0
    %305 = vmatprep.subr.mxu0 0.0
    %306 = vmatpush1.xpose.msra.mxu0 0.0
    %307 = vmatprep.subr.mxu0 0.0
    %308 = vmatpush1.xpose.msra.mxu0 %v281
    %309 = vmatprep.subr.mxu0 0.0
    %310 = vmatpush1.xpose.msra.mxu0 %v278
    %311 = vmatprep.subr.mxu0 0.0
    %312 = vmatpush1.xpose.msra.mxu0 %v275
    %313 = vmatprep.subr.mxu0 0.0
    %314 = vmatpush1.xpose.msra.mxu0 %v272
    %315 = vmatprep.subr.mxu0 0.0
    %316 = vmatpush2.xpose.msra.mxu0 0.0
    %317 = vmatprep.subr.mxu0 0.0
    %318 = vmatpush2.xpose.msra.mxu0 0.0
    %319 = vmatprep.subr.mxu0 0.0
    %320 = vmatpush2.xpose.msra.mxu0 0.0
    %321 = vmatprep.subr.mxu0 0.0
    %322 = vmatpush2.xpose.msra.mxu0 0.0
    %323 = vmatprep.subr.mxu0 0.0
    %324 = vmatpush2.xpose.msra.mxu0 0.0
    %325 = vmatprep.subr.mxu0 0.0
    %326 = vmatpush2.xpose.msra.mxu0 0.0
    %327 = vmatprep.subr.mxu0 0.0
    %328 = vmatpush2.xpose.msra.mxu0 0.0
    %329 = vmatprep.subr.mxu0 0.0
    %330 = vmatpush2.xpose.msra.mxu0 0.0
    %331 = vmatprep.subr.mxu0 0.0
    %332 = vmatpush2.xpose.msra.mxu0 0.0
    %333 = vmatprep.subr.mxu0 0.0
    %334 = vmatpush2.xpose.msra.mxu0 0.0
    %335 = vmatprep.subr.mxu0 0.0
    %336 = vmatpush2.xpose.msra.mxu0 0.0
    %337 = vmatprep.subr.mxu0 0.0
    %338 = vmatpush2.xpose.msra.mxu0 0.0
    %339 = vmatprep.subr.mxu0 0.0
    %340 = vmatpush2.xpose.msra.mxu0 0.0
    %341 = vmatprep.subr.mxu0 0.0
    %342 = vmatpush2.xpose.msra.mxu0 0.0
    %343 = vmatprep.subr.mxu0 0.0
    %344 = vmatpush2.xpose.msra.mxu0 0.0
    %345 = vmatprep.subr.mxu0 0.0
    %346 = vmatpush2.xpose.msra.mxu0 0.0
    %347 = vmatprep.mubr.f32.mxu0 0.0
    %348 = vmatmul.mubr.f32.gmra.mxu0 %v272
    %v349 = vpop.f32.mrf.mxu0
    %v350 = vadd.f32 0.0, %v349
    %v351 = vpop.f32.mrf.mxu0
    %352 = vmatprep.mubr.f32.mxu0 0.0
    %353 = vmatmul.mubr.f32.gmra.mxu0 %v275
    %v354 = vpop.f32.mrf.mxu0
    %v355 = vadd.f32 0.0, %v354
    %v356 = vpop.f32.mrf.mxu0
    %357 = vmatprep.mubr.f32.mxu0 0.0
    %358 = vmatmul.mubr.f32.gmra.mxu0 %v278
    %v359 = vpop.f32.mrf.mxu0
    %v360 = vadd.f32 0.0, %v359
    %v361 = vpop.f32.mrf.mxu0
    %362 = vmatprep.mubr.f32.mxu0 0.0
    %363 = vmatmul.mubr.f32.gmra.mxu0 %v281
    %v364 = vpop.f32.mrf.mxu0
    %v365 = vadd.f32 0.0, %v364
    %v366 = vpop.f32.mrf.mxu0
    %367 = vdwg.mxu0
    %v368 = vsel %vm258, 1.0, %v350
    %v369 = vsel %vm259, 1.0, %v355
    %v370 = vsel %vm260, 1.0, %v360
    %v371 = vsel %vm261, 1.0, %v365
    %v372 = vand.u32 2147483647, %v368
    %v373 = vand.u32 2147483647, %v369
    %v374 = vand.u32 2147483647, %v370
    %v375 = vand.u32 2147483647, %v371
    %v376 = vld [vmem:[%s3] sm:$0xff]
    %v377 = vld [vmem:[%s3 + $0x8] sm:$0xff]
    %v378 = vld [vmem:[%s3 + $0x10] sm:$0xff]
    %v379 = vld [vmem:[%s3 + $0x18] sm:$0xff]
    %v381 = vsel %vm266, %v372, 0
    %v384 = vsel %vm266, %v373, 0
    %v387 = vsel %vm266, %v374, 0
    %v390 = vsel %vm266, %v375, 0
    %392 = vmatprep.subr.mxu0 0.0
    %393 = vmatpush1.msra.mxu0 0.0
    %394 = vmatprep.subr.mxu0 0.0
    %395 = vmatpush1.msra.mxu0 0.0
    %396 = vmatprep.subr.mxu0 0.0
    %397 = vmatpush1.msra.mxu0 0.0
    %398 = vmatprep.subr.mxu0 0.0
    %399 = vmatpush1.msra.mxu0 0.0
    %400 = vmatprep.subr.mxu0 0.0
    %401 = vmatpush1.msra.mxu0 0.0
    %402 = vmatprep.subr.mxu0 0.0
    %403 = vmatpush1.msra.mxu0 0.0
    %404 = vmatprep.subr.mxu0 0.0
    %405 = vmatpush1.msra.mxu0 0.0
    %406 = vmatprep.subr.mxu0 0.0
    %407 = vmatpush1.msra.mxu0 0.0
    %408 = vmatprep.subr.mxu0 0.0
    %409 = vmatpush1.msra.mxu0 0.0
    %410 = vmatprep.subr.mxu0 0.0
    %411 = vmatpush1.msra.mxu0 0.0
    %412 = vmatprep.subr.mxu0 0.0
    %413 = vmatpush1.msra.mxu0 0.0
    %414 = vmatprep.subr.mxu0 0.0
    %415 = vmatpush1.msra.mxu0 0.0
    %416 = vmatprep.subr.mxu0 0.0
    %417 = vmatpush1.msra.mxu0 %v379
    %418 = vmatprep.subr.mxu0 0.0
    %419 = vmatpush1.msra.mxu0 %v378
    %420 = vmatprep.subr.mxu0 0.0
    %421 = vmatpush1.msra.mxu0 %v377
    %422 = vmatprep.subr.mxu0 0.0
    %423 = vmatpush1.msra.mxu0 %v376
    %424 = vmatprep.subr.mxu0 0.0
    %425 = vmatpush2.msra.mxu0 0.0
    %426 = vmatprep.subr.mxu0 0.0
    %427 = vmatpush2.msra.mxu0 0.0
    %428 = vmatprep.subr.mxu0 0.0
    %429 = vmatpush2.msra.mxu0 0.0
    %430 = vmatprep.subr.mxu0 0.0
    %431 = vmatpush2.msra.mxu0 0.0
    %432 = vmatprep.subr.mxu0 0.0
    %433 = vmatpush2.msra.mxu0 0.0
    %434 = vmatprep.subr.mxu0 0.0
    %435 = vmatpush2.msra.mxu0 0.0
    %436 = vmatprep.subr.mxu0 0.0
    %437 = vmatpush2.msra.mxu0 0.0
    %438 = vmatprep.subr.mxu0 0.0
    %439 = vmatpush2.msra.mxu0 0.0
    %440 = vmatprep.subr.mxu0 0.0
    %441 = vmatpush2.msra.mxu0 0.0
    %442 = vmatprep.subr.mxu0 0.0
    %443 = vmatpush2.msra.mxu0 0.0
    %444 = vmatprep.subr.mxu0 0.0
    %445 = vmatpush2.msra.mxu0 0.0
    %446 = vmatprep.subr.mxu0 0.0
    %447 = vmatpush2.msra.mxu0 0.0
    %448 = vmatprep.subr.mxu0 0.0
    %449 = vmatpush2.msra.mxu0 0.0
    %450 = vmatprep.subr.mxu0 0.0
    %451 = vmatpush2.msra.mxu0 0.0
    %452 = vmatprep.subr.mxu0 0.0
    %453 = vmatpush2.msra.mxu0 0.0
    %454 = vmatprep.subr.mxu0 0.0
    %455 = vmatpush2.msra.mxu0 0.0
    %456 = vmatprep.mubr.f32.mxu0 0.0
    %457 = vmatmul.mubr.f32.gmra.mxu0 %v381
    %v458 = vpop.f32.mrf.mxu0
    %v459 = vadd.f32 0.0, %v458
    %v460 = vpop.f32.mrf.mxu0
    %461 = vmatprep.mubr.f32.mxu0 0.0
    %462 = vmatmul.mubr.f32.gmra.mxu0 %v384
    %v463 = vpop.f32.mrf.mxu0
    %v464 = vadd.f32 0.0, %v463
    %v465 = vpop.f32.mrf.mxu0
    %466 = vmatprep.mubr.f32.mxu0 0.0
    %467 = vmatmul.mubr.f32.gmra.mxu0 %v387
    %v468 = vpop.f32.mrf.mxu0
    %v469 = vadd.f32 0.0, %v468
    %v470 = vpop.f32.mrf.mxu0
    %471 = vmatprep.mubr.f32.mxu0 0.0
    %472 = vmatmul.mubr.f32.gmra.mxu0 %v390
    %v473 = vpop.f32.mrf.mxu0
    %v474 = vadd.f32 0.0, %v473
    %v475 = vpop.f32.mrf.mxu0
    %476 = vdwg.mxu0
    %477 = vmatprep.subr.mxu0 0.0
    %478 = vmatpush1.msra.mxu0 0.0
    %479 = vmatprep.subr.mxu0 0.0
    %480 = vmatpush1.msra.mxu0 0.0
    %481 = vmatprep.subr.mxu0 0.0
    %482 = vmatpush1.msra.mxu0 0.0
    %483 = vmatprep.subr.mxu0 0.0
    %484 = vmatpush1.msra.mxu0 0.0
    %485 = vmatprep.subr.mxu0 0.0
    %486 = vmatpush1.msra.mxu0 0.0
    %487 = vmatprep.subr.mxu0 0.0
    %488 = vmatpush1.msra.mxu0 0.0
    %489 = vmatprep.subr.mxu0 0.0
    %490 = vmatpush1.msra.mxu0 0.0
    %491 = vmatprep.subr.mxu0 0.0
    %492 = vmatpush1.msra.mxu0 0.0
    %493 = vmatprep.subr.mxu0 0.0
    %494 = vmatpush1.msra.mxu0 0.0
    %495 = vmatprep.subr.mxu0 0.0
    %496 = vmatpush1.msra.mxu0 0.0
    %497 = vmatprep.subr.mxu0 0.0
    %498 = vmatpush1.msra.mxu0 0.0
    %499 = vmatprep.subr.mxu0 0.0
    %500 = vmatpush1.msra.mxu0 0.0
    %501 = vmatprep.subr.mxu0 0.0
    %502 = vmatpush1.msra.mxu0 %v474
    %503 = vmatprep.subr.mxu0 0.0
    %504 = vmatpush1.msra.mxu0 %v469
    %505 = vmatprep.subr.mxu0 0.0
    %506 = vmatpush1.msra.mxu0 %v464
    %507 = vmatprep.subr.mxu0 0.0
    %508 = vmatpush1.msra.mxu0 %v459
    %509 = vmatprep.subr.mxu0 0.0
    %510 = vmatpush2.msra.mxu0 0.0
    %511 = vmatprep.subr.mxu0 0.0
    %512 = vmatpush2.msra.mxu0 0.0
    %513 = vmatprep.subr.mxu0 0.0
    %514 = vmatpush2.msra.mxu0 0.0
    %515 = vmatprep.subr.mxu0 0.0
    %516 = vmatpush2.msra.mxu0 0.0
    %517 = vmatprep.subr.mxu0 0.0
    %518 = vmatpush2.msra.mxu0 0.0
    %519 = vmatprep.subr.mxu0 0.0
    %520 = vmatpush2.msra.mxu0 0.0
    %521 = vmatprep.subr.mxu0 0.0
    %522 = vmatpush2.msra.mxu0 0.0
    %523 = vmatprep.subr.mxu0 0.0
    %524 = vmatpush2.msra.mxu0 0.0
    %525 = vmatprep.subr.mxu0 0.0
    %526 = vmatpush2.msra.mxu0 0.0
    %527 = vmatprep.subr.mxu0 0.0
    %528 = vmatpush2.msra.mxu0 0.0
    %529 = vmatprep.subr.mxu0 0.0
    %530 = vmatpush2.msra.mxu0 0.0
    %531 = vmatprep.subr.mxu0 0.0
    %532 = vmatpush2.msra.mxu0 0.0
    %533 = vmatprep.subr.mxu0 0.0
    %534 = vmatpush2.msra.mxu0 0.0
    %535 = vmatprep.subr.mxu0 0.0
    %536 = vmatpush2.msra.mxu0 0.0
    %537 = vmatprep.subr.mxu0 0.0
    %538 = vmatpush2.msra.mxu0 0.0
    %539 = vmatprep.subr.mxu0 0.0
    %540 = vmatpush2.msra.mxu0 0.0
    %541 = vmatprep.mubr.f32.mxu0 0.0
    %542 = vmatmul.mubr.f32.gmra.mxu0 %v272
    %v543 = vpop.f32.mrf.mxu0
    %v544 = vadd.f32 0.0, %v543
    %v545 = vpop.f32.mrf.mxu0
    %546 = vmatprep.mubr.f32.mxu0 0.0
    %547 = vmatmul.mubr.f32.gmra.mxu0 %v275
    %v548 = vpop.f32.mrf.mxu0
    %v549 = vadd.f32 0.0, %v548
    %v550 = vpop.f32.mrf.mxu0
    %551 = vmatprep.mubr.f32.mxu0 0.0
    %552 = vmatmul.mubr.f32.gmra.mxu0 %v278
    %v553 = vpop.f32.mrf.mxu0
    %v554 = vadd.f32 0.0, %v553
    %v555 = vpop.f32.mrf.mxu0
    %556 = vmatprep.mubr.f32.mxu0 0.0
    %557 = vmatmul.mubr.f32.gmra.mxu0 %v281
    %v558 = vpop.f32.mrf.mxu0
    %v559 = vadd.f32 0.0, %v558
    %v560 = vpop.f32.mrf.mxu0
    %561 = vdwg.mxu0
    %v562 = vmax.f32 %v544, 0.0
    %v563 = vmax.f32 %v549, 0.0
    %v564 = vmax.f32 %v554, 0.0
    %v565 = vmax.f32 %v559, 0.0
    %v566 = vld [vmem:[%s4] sm:$0xff]
    %v567 = vld [vmem:[%s4 + $0x8] sm:$0xff]
    %v568 = vld [vmem:[%s4 + $0x10] sm:$0xff]
    %v569 = vld [vmem:[%s4 + $0x18] sm:$0xff]
    %v571 = vsel %vm266, %v562, 0
    %v574 = vsel %vm266, %v563, 0
    %v577 = vsel %vm266, %v564, 0
    %v580 = vsel %vm266, %v565, 0
    %582 = vmatprep.subr.mxu0 0.0
    %583 = vmatpush1.msra.mxu0 0.0
    %584 = vmatprep.subr.mxu0 0.0
    %585 = vmatpush1.msra.mxu0 0.0
    %586 = vmatprep.subr.mxu0 0.0
    %587 = vmatpush1.msra.mxu0 0.0
    %588 = vmatprep.subr.mxu0 0.0
    %589 = vmatpush1.msra.mxu0 0.0
    %590 = vmatprep.subr.mxu0 0.0
    %591 = vmatpush1.msra.mxu0 0.0
    %592 = vmatprep.subr.mxu0 0.0
    %593 = vmatpush1.msra.mxu0 0.0
    %594 = vmatprep.subr.mxu0 0.0
    %595 = vmatpush1.msra.mxu0 0.0
    %596 = vmatprep.subr.mxu0 0.0
    %597 = vmatpush1.msra.mxu0 0.0
    %598 = vmatprep.subr.mxu0 0.0
    %599 = vmatpush1.msra.mxu0 0.0
    %600 = vmatprep.subr.mxu0 0.0
    %601 = vmatpush1.msra.mxu0 0.0
    %602 = vmatprep.subr.mxu0 0.0
    %603 = vmatpush1.msra.mxu0 0.0
    %604 = vmatprep.subr.mxu0 0.0
    %605 = vmatpush1.msra.mxu0 0.0
    %606 = vmatprep.subr.mxu0 0.0
    %607 = vmatpush1.msra.mxu0 %v569
    %608 = vmatprep.subr.mxu0 0.0
    %609 = vmatpush1.msra.mxu0 %v568
    %610 = vmatprep.subr.mxu0 0.0
    %611 = vmatpush1.msra.mxu0 %v567
    %612 = vmatprep.subr.mxu0 0.0
    %613 = vmatpush1.msra.mxu0 %v566
    %614 = vmatprep.subr.mxu0 0.0
    %615 = vmatpush2.msra.mxu0 0.0
    %616 = vmatprep.subr.mxu0 0.0
    %617 = vmatpush2.msra.mxu0 0.0
    %618 = vmatprep.subr.mxu0 0.0
    %619 = vmatpush2.msra.mxu0 0.0
    %620 = vmatprep.subr.mxu0 0.0
    %621 = vmatpush2.msra.mxu0 0.0
    %622 = vmatprep.subr.mxu0 0.0
    %623 = vmatpush2.msra.mxu0 0.0
    %624 = vmatprep.subr.mxu0 0.0
    %625 = vmatpush2.msra.mxu0 0.0
    %626 = vmatprep.subr.mxu0 0.0
    %627 = vmatpush2.msra.mxu0 0.0
    %628 = vmatprep.subr.mxu0 0.0
    %629 = vmatpush2.msra.mxu0 0.0
    %630 = vmatprep.subr.mxu0 0.0
    %631 = vmatpush2.msra.mxu0 0.0
    %632 = vmatprep.subr.mxu0 0.0
    %633 = vmatpush2.msra.mxu0 0.0
    %634 = vmatprep.subr.mxu0 0.0
    %635 = vmatpush2.msra.mxu0 0.0
    %636 = vmatprep.subr.mxu0 0.0
    %637 = vmatpush2.msra.mxu0 0.0
    %638 = vmatprep.subr.mxu0 0.0
    %639 = vmatpush2.msra.mxu0 0.0
    %640 = vmatprep.subr.mxu0 0.0
    %641 = vmatpush2.msra.mxu0 0.0
    %642 = vmatprep.subr.mxu0 0.0
    %643 = vmatpush2.msra.mxu0 0.0
    %644 = vmatprep.subr.mxu0 0.0
    %645 = vmatpush2.msra.mxu0 0.0
    %646 = vmatprep.mubr.f32.mxu0 0.0
    %647 = vmatmul.mubr.f32.gmra.mxu0 %v571
    %v648 = vpop.f32.mrf.mxu0
    %v649 = vadd.f32 0.0, %v648
    %v650 = vpop.f32.mrf.mxu0
    %651 = vmatprep.mubr.f32.mxu0 0.0
    %652 = vmatmul.mubr.f32.gmra.mxu0 %v574
    %v653 = vpop.f32.mrf.mxu0
    %v654 = vadd.f32 0.0, %v653
    %v655 = vpop.f32.mrf.mxu0
    %656 = vmatprep.mubr.f32.mxu0 0.0
    %657 = vmatmul.mubr.f32.gmra.mxu0 %v577
    %v658 = vpop.f32.mrf.mxu0
    %v659 = vadd.f32 0.0, %v658
    %v660 = vpop.f32.mrf.mxu0
    %661 = vmatprep.mubr.f32.mxu0 0.0
    %662 = vmatmul.mubr.f32.gmra.mxu0 %v580
    %v663 = vpop.f32.mrf.mxu0
    %v664 = vadd.f32 0.0, %v663
    %v665 = vpop.f32.mrf.mxu0
    %666 = vdwg.mxu0
    %667 = vmatprep.subr.mxu0 0.0
    %668 = vmatpush1.msra.mxu0 0.0
    %669 = vmatprep.subr.mxu0 0.0
    %670 = vmatpush1.msra.mxu0 0.0
    %671 = vmatprep.subr.mxu0 0.0
    %672 = vmatpush1.msra.mxu0 0.0
    %673 = vmatprep.subr.mxu0 0.0
    %674 = vmatpush1.msra.mxu0 0.0
    %675 = vmatprep.subr.mxu0 0.0
    %676 = vmatpush1.msra.mxu0 0.0
    %677 = vmatprep.subr.mxu0 0.0
    %678 = vmatpush1.msra.mxu0 0.0
    %679 = vmatprep.subr.mxu0 0.0
    %680 = vmatpush1.msra.mxu0 0.0
    %681 = vmatprep.subr.mxu0 0.0
    %682 = vmatpush1.msra.mxu0 0.0
    %683 = vmatprep.subr.mxu0 0.0
    %684 = vmatpush1.msra.mxu0 0.0
    %685 = vmatprep.subr.mxu0 0.0
    %686 = vmatpush1.msra.mxu0 0.0
    %687 = vmatprep.subr.mxu0 0.0
    %688 = vmatpush1.msra.mxu0 0.0
    %689 = vmatprep.subr.mxu0 0.0
    %690 = vmatpush1.msra.mxu0 0.0
    %691 = vmatprep.subr.mxu0 0.0
    %692 = vmatpush1.msra.mxu0 %v664
    %693 = vmatprep.subr.mxu0 0.0
    %694 = vmatpush1.msra.mxu0 %v659
    %695 = vmatprep.subr.mxu0 0.0
    %696 = vmatpush1.msra.mxu0 %v654
    %697 = vmatprep.subr.mxu0 0.0
    %698 = vmatpush1.msra.mxu0 %v649
    %699 = vmatprep.subr.mxu0 0.0
    %700 = vmatpush2.msra.mxu0 0.0
    %701 = vmatprep.subr.mxu0 0.0
    %702 = vmatpush2.msra.mxu0 0.0
    %703 = vmatprep.subr.mxu0 0.0
    %704 = vmatpush2.msra.mxu0 0.0
    %705 = vmatprep.subr.mxu0 0.0
    %706 = vmatpush2.msra.mxu0 0.0
    %707 = vmatprep.subr.mxu0 0.0
    %708 = vmatpush2.msra.mxu0 0.0
    %709 = vmatprep.subr.mxu0 0.0
    %710 = vmatpush2.msra.mxu0 0.0
    %711 = vmatprep.subr.mxu0 0.0
    %712 = vmatpush2.msra.mxu0 0.0
    %713 = vmatprep.subr.mxu0 0.0
    %714 = vmatpush2.msra.mxu0 0.0
    %715 = vmatprep.subr.mxu0 0.0
    %716 = vmatpush2.msra.mxu0 0.0
    %717 = vmatprep.subr.mxu0 0.0
    %718 = vmatpush2.msra.mxu0 0.0
    %719 = vmatprep.subr.mxu0 0.0
    %720 = vmatpush2.msra.mxu0 0.0
    %721 = vmatprep.subr.mxu0 0.0
    %722 = vmatpush2.msra.mxu0 0.0
    %723 = vmatprep.subr.mxu0 0.0
    %724 = vmatpush2.msra.mxu0 0.0
    %725 = vmatprep.subr.mxu0 0.0
    %726 = vmatpush2.msra.mxu0 0.0
    %727 = vmatprep.subr.mxu0 0.0
    %728 = vmatpush2.msra.mxu0 0.0
    %729 = vmatprep.subr.mxu0 0.0
    %730 = vmatpush2.msra.mxu0 0.0
    %731 = vmatprep.mubr.f32.mxu0 0.0
    %732 = vmatmul.mubr.f32.gmra.mxu0 %v272
    %v733 = vpop.f32.mrf.mxu0
    %v734 = vadd.f32 0.0, %v733
    %v735 = vpop.f32.mrf.mxu0
    %736 = vmatprep.mubr.f32.mxu0 0.0
    %737 = vmatmul.mubr.f32.gmra.mxu0 %v275
    %v738 = vpop.f32.mrf.mxu0
    %v739 = vadd.f32 0.0, %v738
    %v740 = vpop.f32.mrf.mxu0
    %741 = vmatprep.mubr.f32.mxu0 0.0
    %742 = vmatmul.mubr.f32.gmra.mxu0 %v278
    %v743 = vpop.f32.mrf.mxu0
    %v744 = vadd.f32 0.0, %v743
    %v745 = vpop.f32.mrf.mxu0
    %746 = vmatprep.mubr.f32.mxu0 0.0
    %747 = vmatmul.mubr.f32.gmra.mxu0 %v281
    %v748 = vpop.f32.mrf.mxu0
    %v749 = vadd.f32 0.0, %v748
    %v750 = vpop.f32.mrf.mxu0
    %751 = vdwg.mxu0
    %v752 = vmax.f32 %v734, 0.0
    %v753 = vmax.f32 %v739, 0.0
    %v754 = vmax.f32 %v744, 0.0
    %v755 = vmax.f32 %v749, 0.0
    %756 = vxpose.xlu0.b32.start [1/16] %v752, 128
    %757 = vxpose.xlu0.b32.cont [2/16] %v753, 128
    %758 = vxpose.xlu0.b32.cont [3/16] %v754, 128
    %759 = vxpose.xlu0.b32.cont [4/16] %v755, 128
    %760 = vxpose.xlu0.b32.cont [5/16] 0.0, 128
    %761 = vxpose.xlu0.b32.cont [6/16] 0.0, 128
    %762 = vxpose.xlu0.b32.cont [7/16] 0.0, 128
    %763 = vxpose.xlu0.b32.cont [8/16] 0.0, 128
    %764 = vxpose.xlu0.b32.cont [9/16] 0.0, 128
    %765 = vxpose.xlu0.b32.cont [10/16] 0.0, 128
    %766 = vxpose.xlu0.b32.cont [11/16] 0.0, 128
    %767 = vxpose.xlu0.b32.cont [12/16] 0.0, 128
    %768 = vxpose.xlu0.b32.cont [13/16] 0.0, 128
    %769 = vxpose.xlu0.b32.cont [14/16] 0.0, 128
    %770 = vxpose.xlu0.b32.cont [15/16] 0.0, 128
    %771 = vxpose.xlu0.b32.end [16/16] 0.0, 128
    %v772 = vpop.trf.xlu0
    %v773 = vpop.trf.xlu0
    %v774 = vpop.trf.xlu0
    %v775 = vpop.trf.xlu0
    %v776 = vpop.trf.xlu0
    %v777 = vpop.trf.xlu0
    %v778 = vpop.trf.xlu0
    %v779 = vpop.trf.xlu0
    %v780 = vpop.trf.xlu0
    %v781 = vpop.trf.xlu0
    %v782 = vpop.trf.xlu0
    %v783 = vpop.trf.xlu0
    %v784 = vpop.trf.xlu0
    %v785 = vpop.trf.xlu0
    %v786 = vpop.trf.xlu0
    %v787 = vpop.trf.xlu0
    %v788 = vadd.f32 %v752, %v772
    %v789 = vadd.f32 %v753, %v773
    %v790 = vadd.f32 %v754, %v774
    %v791 = vadd.f32 %v755, %v775
    %v792 = vmul.f32 %v788, 0.5
    %v793 = vmul.f32 %v789, 0.5
    %v794 = vmul.f32 %v790, 0.5
    %v795 = vmul.f32 %v791, 0.5
    %v796 = vsel %vm258, 1.0, %v792
    %v797 = vsel %vm259, 1.0, %v793
    %v798 = vsel %vm260, 1.0, %v794
    %v799 = vsel %vm261, 1.0, %v795
    %v800 = vand.u32 2147483647, %v796
    %v801 = vand.u32 2147483647, %v797
    %v802 = vand.u32 2147483647, %v798
    %v803 = vand.u32 2147483647, %v799
    %804 = vst.msk [vmem:[#allocation4] sm:$0xff] %vm266, %v800
    %805 = vst.msk [vmem:[#allocation4 + $0x8] sm:$0xff] %vm266, %v801
    %806 = vst.msk [vmem:[#allocation4 + $0x10] sm:$0xff] %vm266, %v802
    %807 = vst.msk [vmem:[#allocation4 + $0x18] sm:$0xff] %vm266, %v803
    // Predicated region
    $region22: #{agsr_net_forward.3} parent=1 // pred_check
      _
    $region23: #{agsr_net_forward.3} parent=1 // pred_check_branch
      %809 = sbr.rel (0) target = $region25
    $region24: #{agsr_net_forward.3} parent=1 // pred_region
      %s811 = ssub.s32 512, 512
      %812 = vsyncadd [#allocation3], %s811
      %s813 = sshll.u32 [#allocation2], 4
      %s814 = int_to_ptr.vmem [resolvable:$true] %s813
      %819 = dma.vmem_to_hbm [thread:$0]  %s814, 512, %s5, [#allocation3], 128, 128, 8
    $region25: #{agsr_net_forward.3} parent=1 // pred_fallthru
      _
    // Predicated region
    $region26: #{agsr_net_forward.3} parent=1 // pred_check
      _
    $region27: #{agsr_net_forward.3} parent=1 // pred_check_branch
      %821 = sbr.rel (0) target = $region29
    $region28: #{agsr_net_forward.3} parent=1 // pred_region
      %s823 = ssub.s32 512, 512
      %824 = vsyncadd [#allocation5], %s823
      %s825 = sshll.u32 [#allocation4], 4
      %s826 = int_to_ptr.vmem [resolvable:$true] %s825
      %831 = dma.vmem_to_hbm [thread:$0]  %s826, 512, %s6, [#allocation5], 128, 128, 8
    $region29: #{agsr_net_forward.3} parent=1 // pred_fallthru
      _
    // Predicated region
    $region30: #{agsr_net_forward.3} parent=1 // pred_check
      _
    $region31: #{agsr_net_forward.3} parent=1 // pred_check_branch
      %833 = sbr.rel (0) target = $region33
    $region32: #{agsr_net_forward.3} parent=1 // pred_region
      %834 = dma.done [#allocation3], 512
    $region33: #{agsr_net_forward.3} parent=1 // pred_fallthru
      _
    // Predicated region
    $region34: #{agsr_net_forward.3} parent=1 // pred_check
      _
    $region35: #{agsr_net_forward.3} parent=1 // pred_check_branch
      %836 = sbr.rel (0) target = $region37
    $region36: #{agsr_net_forward.3} parent=1 // pred_region
      %837 = dma.done [#allocation5], 512
    $region37: #{agsr_net_forward.3} parent=1 // pred_fallthru
      _
    %838 = vsyncpa [#allocation3], 1
    %839 = vsyncpa [#allocation5], 1

// kernel: agsr_net_forward.2
$region0: #{agsr_net_forward.2}
  #allocation0 [shape = 'u32[]', space=smem, size = 0x4, offset = 0x4, fixed_abs, tag = 'smem constant byte address 0x4 - core index']
  #allocation1 [shape = 'u32[144,128]{1,0:T(1,128)}', space=vmem, size = 0x12000, scoped, tag = 'internal scratch']
  #allocation2 [shape = 'f32[1,1]{1,0:T(1,128)S(1)}', space=vmem, size = 0x200, scoped, tag = 'scoped memory for agsr_net_forward.2']
  #allocation3 [shape = 'f32[1,1]{1,0:T(1,128)S(1)}', space=vmem, size = 0x200, scoped, tag = 'scoped memory for agsr_net_forward.2']
  #allocation4 [shape = 'f32[1,1]{1,0:T(1,128)S(1)}', space=vmem, size = 0x200, scoped, tag = 'scoped memory for agsr_net_forward.2']
  #allocation5 [shape = 'f32[1,1]{1,0:T(1,128)S(1)}', space=vmem, size = 0x200, scoped, tag = 'scoped memory for agsr_net_forward.2']
  %s0 = inlined_call_operand.smem [shape: u32[35], index: -1, kind: input, shape index: {}]
  %s1 = sld [smem:[%s0]]
  %s2 = scalar_lea.smem %s0, 1
  %s3 = sld [smem:[%s2]]
  %s4 = scalar_lea.smem %s0, 2
  %s5 = sld [smem:[%s4]]
  %s6 = scalar_lea.smem %s0, 3
  %s7 = sld [smem:[%s6]]
  %s8 = scalar_lea.smem %s0, 4
  %s9 = sld [smem:[%s8]]
  %s10 = scalar_lea.smem %s0, 5
  %s11 = sld [smem:[%s10]]
  %s12 = scalar_lea.smem %s0, 6
  %s13 = sld [smem:[%s12]]
  %s14 = scalar_lea.smem %s0, 7
  %s15 = sld [smem:[%s14]]
  %s16 = scalar_lea.smem %s0, 8
  %s17 = sld [smem:[%s16]]
  %s18 = scalar_lea.smem %s0, 9
  %s19 = sld [smem:[%s18]]
  %s20 = scalar_lea.smem %s0, 10
  %s21 = sld [smem:[%s20]]
  %s22 = scalar_lea.smem %s0, 11
  %s23 = sld [smem:[%s22]]
  %s24 = scalar_lea.smem %s0, 12
  %s25 = sld [smem:[%s24]]
  %s26 = scalar_lea.smem %s0, 13
  %s27 = sld [smem:[%s26]]
  %s28 = scalar_lea.smem %s0, 14
  %s29 = sld [smem:[%s28]]
  %s30 = scalar_lea.smem %s0, 15
  %s31 = sld [smem:[%s30]]
  %s32 = scalar_lea.smem %s0, 16
  %s33 = sld [smem:[%s32]]
  %s34 = scalar_lea.smem %s0, 17
  %s35 = sld [smem:[%s34]]
  %s36 = scalar_lea.smem %s0, 18
  %s37 = sld [smem:[%s36]]
  %s38 = scalar_lea.smem %s0, 19
  %s39 = sld [smem:[%s38]]
  %s40 = scalar_lea.smem %s0, 20
  %s41 = sld [smem:[%s40]]
  %s42 = scalar_lea.smem %s0, 21
  %s43 = sld [smem:[%s42]]
  %s44 = scalar_lea.smem %s0, 22
  %s45 = sld [smem:[%s44]]
  %s46 = scalar_lea.smem %s0, 23
  %s47 = sld [smem:[%s46]]
  %s48 = scalar_lea.smem %s0, 24
  %s49 = sld [smem:[%s48]]
  %s50 = scalar_lea.smem %s0, 25
  %s51 = sld [smem:[%s50]]
  %s52 = scalar_lea.smem %s0, 26
  %s53 = sld [smem:[%s52]]
  %s54 = scalar_lea.smem %s0, 27
  %s55 = sld [smem:[%s54]]
  %s56 = scalar_lea.smem %s0, 28
  %s57 = sld [smem:[%s56]]
  %s58 = scalar_lea.smem %s0, 29
  %s59 = sld [smem:[%s58]]
  %s60 = scalar_lea.smem %s0, 30
  %s61 = sld [smem:[%s60]]
  %s62 = scalar_lea.smem %s0, 31
  %s63 = sld [smem:[%s62]]
  %s64 = scalar_lea.smem %s0, 32
  %s65 = sld [smem:[%s64]]
  %s66 = scalar_lea.smem %s0, 33
  %s67 = sld [smem:[%s66]]
  %s68 = scalar_lea.smem %s0, 34
  %s69 = sld [smem:[%s68]]
  %70 = xla_tuple %s65, %s67, %s69
  %s71 = sld [smem:[#allocation0]]
  $region218: #{agsr_net_forward.2} parent=0
    _
  %s73 = ssub.s32 1, %s71
  %s74 = scalar_select 0, %s73, %s71
  %v75 = vstv %s13
  %76 = vst [vmem:[#allocation2] sm:$0x1] %v75
  %v77 = vstv %s21
  %78 = vst [vmem:[#allocation3] sm:$0x1] %v77
  %v79 = vstv %s29
  %80 = vst [vmem:[#allocation4] sm:$0x1] %v79
  %v81 = vstv %s37
  %82 = vst [vmem:[#allocation5] sm:$0x1] %v81
  $region1: #{agsr_net_forward.2} parent=0
    #allocation6 [shape = 'u8[8192]{0}', space=vmem, size = 0x2000, scoped, tag = 'input window, operand 0, single buffered']
    #allocation7 [shape = 's32[1]{0}', space=sflag, size = 0x4, scoped, tag = 'scoped memory for agsr_net_forward.2']
    #allocation8 [shape = 's32[1]{0}', space=sflag, size = 0x4, scoped, tag = 'scoped memory for agsr_net_forward.2']
    #allocation9 [shape = 'u8[8192]{0}', space=vmem, size = 0x2000, scoped, tag = 'input window, operand 1, single buffered']
    #allocation10 [shape = 's32[1]{0}', space=sflag, size = 0x4, scoped, tag = 'scoped memory for agsr_net_forward.2']
    #allocation11 [shape = 'u8[512]{0}', space=vmem, size = 0x400, scoped, tag = 'input window, operand 4, single buffered']
    #allocation12 [shape = 'u8[512]{0}', space=vmem, size = 0x400, scoped, tag = 'input window, operand 8, single buffered']
    #allocation13 [shape = 's32[1]{0}', space=sflag, size = 0x4, scoped, tag = 'scoped memory for agsr_net_forward.2']
    #allocation14 [shape = 'u8[512]{0}', space=vmem, size = 0x400, scoped, tag = 'input window, operand 12, single buffered']
    #allocation15 [shape = 'u8[512]{0}', space=vmem, size = 0x400, scoped, tag = 'input window, operand 16, single buffered']
    #allocation16 [shape = 's32[1]{0}', space=sflag, size = 0x4, scoped, tag = 'scoped memory for agsr_net_forward.2']
    #allocation17 [shape = 'u8[16384]{0}', space=vmem, size = 0x4000, scoped, tag = 'input window, operand 19, single buffered']
    #allocation18 [shape = 'u8[512]{0}', space=vmem, size = 0x400, scoped, tag = 'input window, operand 20, single buffered']
    #allocation19 [shape = 's32[1]{0}', space=sflag, size = 0x4, scoped, tag = 'scoped memory for agsr_net_forward.2']
    #allocation20 [shape = 'u8[16384]{0}', space=vmem, size = 0x4000, scoped, tag = 'input window, operand 23, single buffered']
    #allocation21 [shape = 'u8[512]{0}', space=vmem, size = 0x400, scoped, tag = 'input window, operand 24, single buffered']
    #allocation22 [shape = 's32[1]{0}', space=sflag, size = 0x4, scoped, tag = 'scoped memory for agsr_net_forward.2']
    #allocation23 [shape = 'u8[16384]{0}', space=vmem, size = 0x4000, scoped, tag = 'input window, operand 25, single buffered']
    #allocation24 [shape = 'u8[512]{0}', space=vmem, size = 0x400, scoped, tag = 'input window, operand 26, single buffered']
    #allocation25 [shape = 's32[1]{0}', space=sflag, size = 0x4, scoped, tag = 'scoped memory for agsr_net_forward.2']
    #allocation26 [shape = 'u8[512]{0}', space=vmem, size = 0x400, scoped, tag = 'input window, operand 28, single buffered']
    #allocation27 [shape = 'u8[16384]{0}', space=vmem, size = 0x4000, scoped, tag = 'input window, operand 29, single buffered']
    #allocation28 [shape = 's32[1]{0}', space=sflag, size = 0x4, scoped, tag = 'scoped memory for agsr_net_forward.2']
    #allocation29 [shape = 'u8[16384]{0}', space=vmem, size = 0x4000, scoped, tag = 'input window, operand 30, single buffered']
    #allocation30 [shape = 'u8[512]{0}', space=vmem, size = 0x400, scoped, tag = 'input window, operand 31, single buffered']
    #allocation31 [shape = 's32[1]{0}', space=sflag, size = 0x4, scoped, tag = 'scoped memory for agsr_net_forward.2']
    #allocation32 [shape = 'u8[8192]{0}', space=vmem, size = 0x2000, scoped, tag = 'output window, operand 2, single buffered']
    %83 = vsyncpa [#allocation7], 0
    %84 = vsyncpa [#allocation10], 0
    %85 = vsyncpa [#allocation13], 0
    %86 = vsyncpa [#allocation16], 0
    %87 = vsyncpa [#allocation19], 0
    %88 = vsyncpa [#allocation22], 0
    %89 = vsyncpa [#allocation25], 0
    %90 = vsyncpa [#allocation28], 0
    %91 = vsyncpa [#allocation31], 0
    %92 = vsyncpa [#allocation8], 0
    // Predicated region
    $region2: #{agsr_net_forward.2} parent=1 // pred_check
      _
    $region3: #{agsr_net_forward.2} parent=1 // pred_check_branch
      %94 = sbr.rel (0) target = $region5
    $region4: #{agsr_net_forward.2} parent=1 // pred_region
      %s96 = ssub.s32 256, 256
      %97 = vsyncadd [#allocation7], %s96
      %s98 = sshll.u32 [#allocation6], 4
      %s99 = int_to_ptr.vmem [resolvable:$true] %s98
      %104 = dma.hbm_to_vmem [thread:$0]  %s1, 256, %s99, [#allocation7], 128, 128, 8
    $region5: #{agsr_net_forward.2} parent=1 // pred_fallthru
      _
    // Predicated region
    $region6: #{agsr_net_forward.2} parent=1 // pred_check
      _
    $region7: #{agsr_net_forward.2} parent=1 // pred_check_branch
      %106 = sbr.rel (0) target = $region9
    $region8: #{agsr_net_forward.2} parent=1 // pred_region
      %s108 = ssub.s32 256, 256
      %109 = vsyncadd [#allocation10], %s108
      %s110 = sshll.u32 [#allocation9], 4
      %s111 = int_to_ptr.vmem [resolvable:$true] %s110
      %116 = dma.hbm_to_vmem [thread:$0]  %s3, 256, %s111, [#allocation10], 128, 128, 8
    $region9: #{agsr_net_forward.2} parent=1 // pred_fallthru
      _
    // Predicated region
    $region10: #{agsr_net_forward.2} parent=1 // pred_check
      _
    $region11: #{agsr_net_forward.2} parent=1 // pred_check_branch
      %118 = sbr.rel (0) target = $region13
    $region12: #{agsr_net_forward.2} parent=1 // pred_region
      _
    $region13: #{agsr_net_forward.2} parent=1 // pred_fallthru
      _
    // Predicated region
    $region14: #{agsr_net_forward.2} parent=1 // pred_check
      _
    $region15: #{agsr_net_forward.2} parent=1 // pred_check_branch
      %120 = sbr.rel (0) target = $region17
    $region16: #{agsr_net_forward.2} parent=1 // pred_region
      _
    $region17: #{agsr_net_forward.2} parent=1 // pred_fallthru
      _
    // Predicated region
    $region18: #{agsr_net_forward.2} parent=1 // pred_check
      _
    $region19: #{agsr_net_forward.2} parent=1 // pred_check_branch
      %122 = sbr.rel (0) target = $region21
    $region20: #{agsr_net_forward.2} parent=1 // pred_region
      %s124 = ssub.s32 16, 16
      %125 = vsyncadd [#allocation10], %s124
      %s127 = sshll.u32 [#allocation11], 4
      %s128 = int_to_ptr.vmem [resolvable:$true] %s127
      %130 = dma.hbm_to_vmem [thread:$0]  %s9, 16, %s128, [#allocation10]
    $region21: #{agsr_net_forward.2} parent=1 // pred_fallthru
      _
    // Predicated region
    $region22: #{agsr_net_forward.2} parent=1 // pred_check
      _
    $region23: #{agsr_net_forward.2} parent=1 // pred_check_branch
      %132 = sbr.rel (0) target = $region25
    $region24: #{agsr_net_forward.2} parent=1 // pred_region
      _
    $region25: #{agsr_net_forward.2} parent=1 // pred_fallthru
      _
    // Predicated region
    $region26: #{agsr_net_forward.2} parent=1 // pred_check
      _
    $region27: #{agsr_net_forward.2} parent=1 // pred_check_branch
      %134 = sbr.rel (0) target = $region29
    $region28: #{agsr_net_forward.2} parent=1 // pred_region
      _
    $region29: #{agsr_net_forward.2} parent=1 // pred_fallthru
      _
    // Predicated region
    $region30: #{agsr_net_forward.2} parent=1 // pred_check
      _
    $region31: #{agsr_net_forward.2} parent=1 // pred_check_branch
      %136 = sbr.rel (0) target = $region33
    $region32: #{agsr_net_forward.2} parent=1 // pred_region
      _
    $region33: #{agsr_net_forward.2} parent=1 // pred_fallthru
      _
    // Predicated region
    $region34: #{agsr_net_forward.2} parent=1 // pred_check
      _
    $region35: #{agsr_net_forward.2} parent=1 // pred_check_branch
      %138 = sbr.rel (0) target = $region37
    $region36: #{agsr_net_forward.2} parent=1 // pred_region
      %s140 = ssub.s32 16, 16
      %141 = vsyncadd [#allocation13], %s140
      %s143 = sshll.u32 [#allocation12], 4
      %s144 = int_to_ptr.vmem [resolvable:$true] %s143
      %146 = dma.hbm_to_vmem [thread:$0]  %s17, 16, %s144, [#allocation13]
    $region37: #{agsr_net_forward.2} parent=1 // pred_fallthru
      _
    // Predicated region
    $region38: #{agsr_net_forward.2} parent=1 // pred_check
      _
    $region39: #{agsr_net_forward.2} parent=1 // pred_check_branch
      %148 = sbr.rel (0) target = $region41
    $region40: #{agsr_net_forward.2} parent=1 // pred_region
      _
    $region41: #{agsr_net_forward.2} parent=1 // pred_fallthru
      _
    // Predicated region
    $region42: #{agsr_net_forward.2} parent=1 // pred_check
      _
    $region43: #{agsr_net_forward.2} parent=1 // pred_check_branch
      %150 = sbr.rel (0) target = $region45
    $region44: #{agsr_net_forward.2} parent=1 // pred_region
      _
    $region45: #{agsr_net_forward.2} parent=1 // pred_fallthru
      _
    // Predicated region
    $region46: #{agsr_net_forward.2} parent=1 // pred_check
      _
    $region47: #{agsr_net_forward.2} parent=1 // pred_check_branch
      %152 = sbr.rel (0) target = $region49
    $region48: #{agsr_net_forward.2} parent=1 // pred_region
      _
    $region49: #{agsr_net_forward.2} parent=1 // pred_fallthru
      _
    // Predicated region
    $region50: #{agsr_net_forward.2} parent=1 // pred_check
      _
    $region51: #{agsr_net_forward.2} parent=1 // pred_check_branch
      %154 = sbr.rel (0) target = $region53
    $region52: #{agsr_net_forward.2} parent=1 // pred_region
      %s156 = ssub.s32 16, 16
      %157 = vsyncadd [#allocation13], %s156
      %s159 = sshll.u32 [#allocation14], 4
      %s160 = int_to_ptr.vmem [resolvable:$true] %s159
      %162 = dma.hbm_to_vmem [thread:$0]  %s25, 16, %s160, [#allocation13]
    $region53: #{agsr_net_forward.2} parent=1 // pred_fallthru
      _
    // Predicated region
    $region54: #{agsr_net_forward.2} parent=1 // pred_check
      _
    $region55: #{agsr_net_forward.2} parent=1 // pred_check_branch
      %164 = sbr.rel (0) target = $region57
    $region56: #{agsr_net_forward.2} parent=1 // pred_region
      _
    $region57: #{agsr_net_forward.2} parent=1 // pred_fallthru
      _
    // Predicated region
    $region58: #{agsr_net_forward.2} parent=1 // pred_check
      _
    $region59: #{agsr_net_forward.2} parent=1 // pred_check_branch
      %166 = sbr.rel (0) target = $region61
    $region60: #{agsr_net_forward.2} parent=1 // pred_region
      _
    $region61: #{agsr_net_forward.2} parent=1 // pred_fallthru
      _
    // Predicated region
    $region62: #{agsr_net_forward.2} parent=1 // pred_check
      _
    $region63: #{agsr_net_forward.2} parent=1 // pred_check_branch
      %168 = sbr.rel (0) target = $region65
    $region64: #{agsr_net_forward.2} parent=1 // pred_region
      _
    $region65: #{agsr_net_forward.2} parent=1 // pred_fallthru
      _
    // Predicated region
    $region66: #{agsr_net_forward.2} parent=1 // pred_check
      _
    $region67: #{agsr_net_forward.2} parent=1 // pred_check_branch
      %170 = sbr.rel (0) target = $region69
    $region68: #{agsr_net_forward.2} parent=1 // pred_region
      %s172 = ssub.s32 16, 16
      %173 = vsyncadd [#allocation16], %s172
      %s175 = sshll.u32 [#allocation15], 4
      %s176 = int_to_ptr.vmem [resolvable:$true] %s175
      %178 = dma.hbm_to_vmem [thread:$0]  %s33, 16, %s176, [#allocation16]
    $region69: #{agsr_net_forward.2} parent=1 // pred_fallthru
      _
    // Predicated region
    $region70: #{agsr_net_forward.2} parent=1 // pred_check
      _
    $region71: #{agsr_net_forward.2} parent=1 // pred_check_branch
      %180 = sbr.rel (0) target = $region73
    $region72: #{agsr_net_forward.2} parent=1 // pred_region
      _
    $region73: #{agsr_net_forward.2} parent=1 // pred_fallthru
      _
    // Predicated region
    $region74: #{agsr_net_forward.2} parent=1 // pred_check
      _
    $region75: #{agsr_net_forward.2} parent=1 // pred_check_branch
      %182 = sbr.rel (0) target = $region77
    $region76: #{agsr_net_forward.2} parent=1 // pred_region
      _
    $region77: #{agsr_net_forward.2} parent=1 // pred_fallthru
      _
    // Predicated region
    $region78: #{agsr_net_forward.2} parent=1 // pred_check
      _
    $region79: #{agsr_net_forward.2} parent=1 // pred_check_branch
      %184 = sbr.rel (0) target = $region81
    $region80: #{agsr_net_forward.2} parent=1 // pred_region
      %s186 = ssub.s32 512, 512
      %187 = vsyncadd [#allocation16], %s186
      %s188 = sshll.u32 [#allocation17], 4
      %s189 = int_to_ptr.vmem [resolvable:$true] %s188
      %194 = dma.hbm_to_vmem [thread:$0]  %s39, 512, %s189, [#allocation16], 128, 128, 8
    $region81: #{agsr_net_forward.2} parent=1 // pred_fallthru
      _
    // Predicated region
    $region82: #{agsr_net_forward.2} parent=1 // pred_check
      _
    $region83: #{agsr_net_forward.2} parent=1 // pred_check_branch
      %196 = sbr.rel (0) target = $region85
    $region84: #{agsr_net_forward.2} parent=1 // pred_region
      %s198 = ssub.s32 16, 16
      %199 = vsyncadd [#allocation19], %s198
      %s201 = sshll.u32 [#allocation18], 4
      %s202 = int_to_ptr.vmem [resolvable:$true] %s201
      %204 = dma.hbm_to_vmem [thread:$0]  %s41, 16, %s202, [#allocation19]
    $region85: #{agsr_net_forward.2} parent=1 // pred_fallthru
      _
    // Predicated region
    $region86: #{agsr_net_forward.2} parent=1 // pred_check
      _
    $region87: #{agsr_net_forward.2} parent=1 // pred_check_branch
      %206 = sbr.rel (0) target = $region89
    $region88: #{agsr_net_forward.2} parent=1 // pred_region
      _
    $region89: #{agsr_net_forward.2} parent=1 // pred_fallthru
      _
    // Predicated region
    $region90: #{agsr_net_forward.2} parent=1 // pred_check
      _
    $region91: #{agsr_net_forward.2} parent=1 // pred_check_branch
      %208 = sbr.rel (0) target = $region93
    $region92: #{agsr_net_forward.2} parent=1 // pred_region
      _
    $region93: #{agsr_net_forward.2} parent=1 // pred_fallthru
      _
    // Predicated region
    $region94: #{agsr_net_forward.2} parent=1 // pred_check
      _
    $region95: #{agsr_net_forward.2} parent=1 // pred_check_branch
      %210 = sbr.rel (0) target = $region97
    $region96: #{agsr_net_forward.2} parent=1 // pred_region
      %s212 = ssub.s32 512, 512
      %213 = vsyncadd [#allocation19], %s212
      %s214 = sshll.u32 [#allocation20], 4
      %s215 = int_to_ptr.vmem [resolvable:$true] %s214
      %220 = dma.hbm_to_vmem [thread:$0]  %s47, 512, %s215, [#allocation19], 128, 128, 8
    $region97: #{agsr_net_forward.2} parent=1 // pred_fallthru
      _
    // Predicated region
    $region98: #{agsr_net_forward.2} parent=1 // pred_check
      _
    $region99: #{agsr_net_forward.2} parent=1 // pred_check_branch
      %222 = sbr.rel (0) target = $region101
    $region100: #{agsr_net_forward.2} parent=1 // pred_region
      %s224 = ssub.s32 16, 16
      %225 = vsyncadd [#allocation22], %s224
      %s227 = sshll.u32 [#allocation21], 4
      %s228 = int_to_ptr.vmem [resolvable:$true] %s227
      %230 = dma.hbm_to_vmem [thread:$0]  %s49, 16, %s228, [#allocation22]
    $region101: #{agsr_net_forward.2} parent=1 // pred_fallthru
      _
    // Predicated region
    $region102: #{agsr_net_forward.2} parent=1 // pred_check
      _
    $region103: #{agsr_net_forward.2} parent=1 // pred_check_branch
      %232 = sbr.rel (0) target = $region105
    $region104: #{agsr_net_forward.2} parent=1 // pred_region
      %s234 = ssub.s32 512, 512
      %235 = vsyncadd [#allocation22], %s234
      %s236 = sshll.u32 [#allocation23], 4
      %s237 = int_to_ptr.vmem [resolvable:$true] %s236
      %242 = dma.hbm_to_vmem [thread:$0]  %s51, 512, %s237, [#allocation22], 128, 128, 8
    $region105: #{agsr_net_forward.2} parent=1 // pred_fallthru
      _
    // Predicated region
    $region106: #{agsr_net_forward.2} parent=1 // pred_check
      _
    $region107: #{agsr_net_forward.2} parent=1 // pred_check_branch
      %244 = sbr.rel (0) target = $region109
    $region108: #{agsr_net_forward.2} parent=1 // pred_region
      %s246 = ssub.s32 16, 16
      %247 = vsyncadd [#allocation25], %s246
      %s249 = sshll.u32 [#allocation24], 4
      %s250 = int_to_ptr.vmem [resolvable:$true] %s249
      %252 = dma.hbm_to_vmem [thread:$0]  %s53, 16, %s250, [#allocation25]
    $region109: #{agsr_net_forward.2} parent=1 // pred_fallthru
      _
    // Predicated region
    $region110: #{agsr_net_forward.2} parent=1 // pred_check
      _
    $region111: #{agsr_net_forward.2} parent=1 // pred_check_branch
      %254 = sbr.rel (0) target = $region113
    $region112: #{agsr_net_forward.2} parent=1 // pred_region
      _
    $region113: #{agsr_net_forward.2} parent=1 // pred_fallthru
      _
    // Predicated region
    $region114: #{agsr_net_forward.2} parent=1 // pred_check
      _
    $region115: #{agsr_net_forward.2} parent=1 // pred_check_branch
      %256 = sbr.rel (0) target = $region117
    $region116: #{agsr_net_forward.2} parent=1 // pred_region
      %s258 = ssub.s32 16, 16
      %259 = vsyncadd [#allocation25], %s258
      %s261 = sshll.u32 [#allocation26], 4
      %s262 = int_to_ptr.vmem [resolvable:$true] %s261
      %264 = dma.hbm_to_vmem [thread:$0]  %s57, 16, %s262, [#allocation25]
    $region117: #{agsr_net_forward.2} parent=1 // pred_fallthru
      _
    // Predicated region
    $region118: #{agsr_net_forward.2} parent=1 // pred_check
      _
    $region119: #{agsr_net_forward.2} parent=1 // pred_check_branch
      %266 = sbr.rel (0) target = $region121
    $region120: #{agsr_net_forward.2} parent=1 // pred_region
      %s268 = ssub.s32 512, 512
      %269 = vsyncadd [#allocation28], %s268
      %s270 = sshll.u32 [#allocation27], 4
      %s271 = int_to_ptr.vmem [resolvable:$true] %s270
      %276 = dma.hbm_to_vmem [thread:$0]  %s59, 512, %s271, [#allocation28], 128, 128, 8
    $region121: #{agsr_net_forward.2} parent=1 // pred_fallthru
      _
    // Predicated region
    $region122: #{agsr_net_forward.2} parent=1 // pred_check
      _
    $region123: #{agsr_net_forward.2} parent=1 // pred_check_branch
      %278 = sbr.rel (0) target = $region125
    $region124: #{agsr_net_forward.2} parent=1 // pred_region
      %s280 = ssub.s32 512, 512
      %281 = vsyncadd [#allocation28], %s280
      %s282 = sshll.u32 [#allocation29], 4
      %s283 = int_to_ptr.vmem [resolvable:$true] %s282
      %288 = dma.hbm_to_vmem [thread:$0]  %s61, 512, %s283, [#allocation28], 128, 128, 8
    $region125: #{agsr_net_forward.2} parent=1 // pred_fallthru
      _
    // Predicated region
    $region126: #{agsr_net_forward.2} parent=1 // pred_check
      _
    $region127: #{agsr_net_forward.2} parent=1 // pred_check_branch
      %290 = sbr.rel (0) target = $region129
    $region128: #{agsr_net_forward.2} parent=1 // pred_region
      %s292 = ssub.s32 16, 16
      %293 = vsyncadd [#allocation31], %s292
      %s295 = sshll.u32 [#allocation30], 4
      %s296 = int_to_ptr.vmem [resolvable:$true] %s295
      %298 = dma.hbm_to_vmem [thread:$0]  %s63, 16, %s296, [#allocation31]
    $region129: #{agsr_net_forward.2} parent=1 // pred_fallthru
      _
    // Predicated region
    $region130: #{agsr_net_forward.2} parent=1 // pred_check
      _
    $region131: #{agsr_net_forward.2} parent=1 // pred_check_branch
      %300 = sbr.rel (0) target = $region133
    $region132: #{agsr_net_forward.2} parent=1 // pred_region
      %301 = dma.done [#allocation7], 256
    $region133: #{agsr_net_forward.2} parent=1 // pred_fallthru
      _
    // Predicated region
    $region134: #{agsr_net_forward.2} parent=1 // pred_check
      _
    $region135: #{agsr_net_forward.2} parent=1 // pred_check_branch
      %303 = sbr.rel (0) target = $region137
    $region136: #{agsr_net_forward.2} parent=1 // pred_region
      %304 = dma.done [#allocation10], 256
    $region137: #{agsr_net_forward.2} parent=1 // pred_fallthru
      _
    // Predicated region
    $region138: #{agsr_net_forward.2} parent=1 // pred_check
      _
    $region139: #{agsr_net_forward.2} parent=1 // pred_check_branch
      %306 = sbr.rel (0) target = $region141
    $region140: #{agsr_net_forward.2} parent=1 // pred_region
      %307 = dma.done [#allocation10], 16
    $region141: #{agsr_net_forward.2} parent=1 // pred_fallthru
      _
    // Predicated region
    $region142: #{agsr_net_forward.2} parent=1 // pred_check
      _
    $region143: #{agsr_net_forward.2} parent=1 // pred_check_branch
      %309 = sbr.rel (0) target = $region145
    $region144: #{agsr_net_forward.2} parent=1 // pred_region
      %310 = dma.done [#allocation13], 16
    $region145: #{agsr_net_forward.2} parent=1 // pred_fallthru
      _
    // Predicated region
    $region146: #{agsr_net_forward.2} parent=1 // pred_check
      _
    $region147: #{agsr_net_forward.2} parent=1 // pred_check_branch
      %312 = sbr.rel (0) target = $region149
    $region148: #{agsr_net_forward.2} parent=1 // pred_region
      %313 = dma.done [#allocation13], 16
    $region149: #{agsr_net_forward.2} parent=1 // pred_fallthru
      _
    // Predicated region
    $region150: #{agsr_net_forward.2} parent=1 // pred_check
      _
    $region151: #{agsr_net_forward.2} parent=1 // pred_check_branch
      %315 = sbr.rel (0) target = $region153
    $region152: #{agsr_net_forward.2} parent=1 // pred_region
      %316 = dma.done [#allocation16], 16
    $region153: #{agsr_net_forward.2} parent=1 // pred_fallthru
      _
    // Predicated region
    $region154: #{agsr_net_forward.2} parent=1 // pred_check
      _
    $region155: #{agsr_net_forward.2} parent=1 // pred_check_branch
      %318 = sbr.rel (0) target = $region157
    $region156: #{agsr_net_forward.2} parent=1 // pred_region
      %319 = dma.done [#allocation16], 512
    $region157: #{agsr_net_forward.2} parent=1 // pred_fallthru
      _
    // Predicated region
    $region158: #{agsr_net_forward.2} parent=1 // pred_check
      _
    $region159: #{agsr_net_forward.2} parent=1 // pred_check_branch
      %321 = sbr.rel (0) target = $region161
    $region160: #{agsr_net_forward.2} parent=1 // pred_region
      %322 = dma.done [#allocation19], 16
    $region161: #{agsr_net_forward.2} parent=1 // pred_fallthru
      _
    // Predicated region
    $region162: #{agsr_net_forward.2} parent=1 // pred_check
      _
    $region163: #{agsr_net_forward.2} parent=1 // pred_check_branch
      %324 = sbr.rel (0) target = $region165
    $region164: #{agsr_net_forward.2} parent=1 // pred_region
      %325 = dma.done [#allocation19], 512
    $region165: #{agsr_net_forward.2} parent=1 // pred_fallthru
      _
    // Predicated region
    $region166: #{agsr_net_forward.2} parent=1 // pred_check
      _
    $region167: #{agsr_net_forward.2} parent=1 // pred_check_branch
      %327 = sbr.rel (0) target = $region169
    $region168: #{agsr_net_forward.2} parent=1 // pred_region
      %328 = dma.done [#allocation22], 16
    $region169: #{agsr_net_forward.2} parent=1 // pred_fallthru
      _
    // Predicated region
    $region170: #{agsr_net_forward.2} parent=1 // pred_check
      _
    $region171: #{agsr_net_forward.2} parent=1 // pred_check_branch
      %330 = sbr.rel (0) target = $region173
    $region172: #{agsr_net_forward.2} parent=1 // pred_region
      %331 = dma.done [#allocation22], 512
    $region173: #{agsr_net_forward.2} parent=1 // pred_fallthru
      _
    // Predicated region
    $region174: #{agsr_net_forward.2} parent=1 // pred_check
      _
    $region175: #{agsr_net_forward.2} parent=1 // pred_check_branch
      %333 = sbr.rel (0) target = $region177
    $region176: #{agsr_net_forward.2} parent=1 // pred_region
      %334 = dma.done [#allocation25], 16
    $region177: #{agsr_net_forward.2} parent=1 // pred_fallthru
      _
    // Predicated region
    $region178: #{agsr_net_forward.2} parent=1 // pred_check
      _
    $region179: #{agsr_net_forward.2} parent=1 // pred_check_branch
      %336 = sbr.rel (0) target = $region181
    $region180: #{agsr_net_forward.2} parent=1 // pred_region
      %337 = dma.done [#allocation25], 16
    $region181: #{agsr_net_forward.2} parent=1 // pred_fallthru
      _
    // Predicated region
    $region182: #{agsr_net_forward.2} parent=1 // pred_check
      _
    $region183: #{agsr_net_forward.2} parent=1 // pred_check_branch
      %339 = sbr.rel (0) target = $region185
    $region184: #{agsr_net_forward.2} parent=1 // pred_region
      %340 = dma.done [#allocation28], 512
    $region185: #{agsr_net_forward.2} parent=1 // pred_fallthru
      _
    // Predicated region
    $region186: #{agsr_net_forward.2} parent=1 // pred_check
      _
    $region187: #{agsr_net_forward.2} parent=1 // pred_check_branch
      %342 = sbr.rel (0) target = $region189
    $region188: #{agsr_net_forward.2} parent=1 // pred_region
      %343 = dma.done [#allocation28], 512
    $region189: #{agsr_net_forward.2} parent=1 // pred_fallthru
      _
    // Predicated region
    $region190: #{agsr_net_forward.2} parent=1 // pred_check
      _
    $region191: #{agsr_net_forward.2} parent=1 // pred_check_branch
      %345 = sbr.rel (0) target = $region193
    $region192: #{agsr_net_forward.2} parent=1 // pred_region
      %346 = dma.done [#allocation31], 16
    $region193: #{agsr_net_forward.2} parent=1 // pred_fallthru
      _
    %v347 = vld [vmem:[#allocation6] sm:$0xff]
    %v348 = vld [vmem:[#allocation6 + $0x8] sm:$0xff]
    %vm349 = vcmask 130048
    %v350 = vsel %vm349, %v347, 0.0
    %351 = vadd.xlane.f32.xlu0 %v350
    %v352 = vpop.xlane.xlu0 %351
    %v353 = vsel %vm349, %v348, 0.0
    %354 = vadd.xlane.f32.xlu0 %v353
    %v355 = vpop.xlane.xlu0 %354
    %v356 = vrsqrt.pop %v352
    %v357 = vrsqrt.pop %v355
    %v358 = vand.u32 2147483647, %v356
    %v359 = vand.u32 2147483647, %v357
    %vm360 = vcmp.eq.f32.partialorder %v358, inf
    %vm361 = vcmp.eq.f32.partialorder %v359, inf
    %v362 = vsel %vm360, 0.0, %v356
    %v363 = vsel %vm361, 0.0, %v357
    %v364 = vmul.f32 %v347, %v362
    %v365 = vmul.f32 %v348, %v363
    %366 = vxpose.xlu0.b32.start [1/16] %v362, 128
    %367 = vxpose.xlu0.b32.cont [2/16] %v363, 128
    %368 = vxpose.xlu0.b32.cont [3/16] 0.0, 128
    %369 = vxpose.xlu0.b32.cont [4/16] 0.0, 128
    %370 = vxpose.xlu0.b32.cont [5/16] 0.0, 128
    %371 = vxpose.xlu0.b32.cont [6/16] 0.0, 128
    %372 = vxpose.xlu0.b32.cont [7/16] 0.0, 128
    %373 = vxpose.xlu0.b32.cont [8/16] 0.0, 128
    %374 = vxpose.xlu0.b32.cont [9/16] 0.0, 128
    %375 = vxpose.xlu0.b32.cont [10/16] 0.0, 128
    %376 = vxpose.xlu0.b32.cont [11/16] 0.0, 128
    %377 = vxpose.xlu0.b32.cont [12/16] 0.0, 128
    %378 = vxpose.xlu0.b32.cont [13/16] 0.0, 128
    %379 = vxpose.xlu0.b32.cont [14/16] 0.0, 128
    %380 = vxpose.xlu0.b32.cont [15/16] 0.0, 128
    %381 = vxpose.xlu0.b32.end [16/16] 0.0, 128
    %v382 = vpop.trf.xlu0
    %v383 = vpop.trf.xlu0
    %v384 = vpop.trf.xlu0
    %v385 = vpop.trf.xlu0
    %v386 = vpop.trf.xlu0
    %v387 = vpop.trf.xlu0
    %v388 = vpop.trf.xlu0
    %v389 = vpop.trf.xlu0
    %v390 = vpop.trf.xlu0
    %v391 = vpop.trf.xlu0
    %v392 = vpop.trf.xlu0
    %v393 = vpop.trf.xlu0
    %v394 = vpop.trf.xlu0
    %v395 = vpop.trf.xlu0
    %v396 = vpop.trf.xlu0
    %v397 = vpop.trf.xlu0
    %v398 = vlaneseq
    %v399 = vshrl.u32 %v398, 7
    %v400 = vsub.s32 0, %v399
    %v401 = vrot.slane %v382, %v400
    %v402 = vmul.f32 %v364, %v401
    %v403 = vmul.f32 %v365, %v401
    %404 = vst.msk [vmem:[%s65] sm:$0xff] %vm349, %v402
    %405 = vst.msk [vmem:[%s65 + $0x8] sm:$0xff] %vm349, %v403
    %v406 = vld [vmem:[#allocation9] sm:$0xff]
    %v407 = vld [vmem:[#allocation9 + $0x8] sm:$0xff]
    %v408 = vld [vmem:[%s5] sm:$0x1]
    %v410 = vlaneseq
    %v411 = vshrl.u32 %v410, 7
    %v412 = vsub.s32 0, %v411
    %v413 = vrot.slane %v408, %v412
    %v416 = vsel %vm349, %v402, 0
    %v419 = vsel %vm349, %v403, 0
    %421 = vmatprep.subr.mxu0 0.0
    %422 = vmatpush1.msra.mxu0 0.0
    %423 = vmatprep.subr.mxu0 0.0
    %424 = vmatpush1.msra.mxu0 0.0
    %425 = vmatprep.subr.mxu0 0.0
    %426 = vmatpush1.msra.mxu0 0.0
    %427 = vmatprep.subr.mxu0 0.0
    %428 = vmatpush1.msra.mxu0 0.0
    %429 = vmatprep.subr.mxu0 0.0
    %430 = vmatpush1.msra.mxu0 0.0
    %431 = vmatprep.subr.mxu0 0.0
    %432 = vmatpush1.msra.mxu0 0.0
    %433 = vmatprep.subr.mxu0 0.0
    %434 = vmatpush1.msra.mxu0 0.0
    %435 = vmatprep.subr.mxu0 0.0
    %436 = vmatpush1.msra.mxu0 0.0
    %437 = vmatprep.subr.mxu0 0.0
    %438 = vmatpush1.msra.mxu0 0.0
    %439 = vmatprep.subr.mxu0 0.0
    %440 = vmatpush1.msra.mxu0 0.0
    %441 = vmatprep.subr.mxu0 0.0
    %442 = vmatpush1.msra.mxu0 0.0
    %443 = vmatprep.subr.mxu0 0.0
    %444 = vmatpush1.msra.mxu0 0.0
    %445 = vmatprep.subr.mxu0 0.0
    %446 = vmatpush1.msra.mxu0 0.0
    %447 = vmatprep.subr.mxu0 0.0
    %448 = vmatpush1.msra.mxu0 0.0
    %449 = vmatprep.subr.mxu0 0.0
    %450 = vmatpush1.msra.mxu0 %v407
    %451 = vmatprep.subr.mxu0 0.0
    %452 = vmatpush1.msra.mxu0 %v406
    %453 = vmatprep.subr.mxu0 0.0
    %454 = vmatpush2.msra.mxu0 0.0
    %455 = vmatprep.subr.mxu0 0.0
    %456 = vmatpush2.msra.mxu0 0.0
    %457 = vmatprep.subr.mxu0 0.0
    %458 = vmatpush2.msra.mxu0 0.0
    %459 = vmatprep.subr.mxu0 0.0
    %460 = vmatpush2.msra.mxu0 0.0
    %461 = vmatprep.subr.mxu0 0.0
    %462 = vmatpush2.msra.mxu0 0.0
    %463 = vmatprep.subr.mxu0 0.0
    %464 = vmatpush2.msra.mxu0 0.0
    %465 = vmatprep.subr.mxu0 0.0
    %466 = vmatpush2.msra.mxu0 0.0
    %467 = vmatprep.subr.mxu0 0.0
    %468 = vmatpush2.msra.mxu0 0.0
    %469 = vmatprep.subr.mxu0 0.0
    %470 = vmatpush2.msra.mxu0 0.0
    %471 = vmatprep.subr.mxu0 0.0
    %472 = vmatpush2.msra.mxu0 0.0
    %473 = vmatprep.subr.mxu0 0.0
    %474 = vmatpush2.msra.mxu0 0.0
    %475 = vmatprep.subr.mxu0 0.0
    %476 = vmatpush2.msra.mxu0 0.0
    %477 = vmatprep.subr.mxu0 0.0
    %478 = vmatpush2.msra.mxu0 0.0
    %479 = vmatprep.subr.mxu0 0.0
    %480 = vmatpush2.msra.mxu0 0.0
    %481 = vmatprep.subr.mxu0 0.0
    %482 = vmatpush2.msra.mxu0 0.0
    %483 = vmatprep.subr.mxu0 0.0
    %484 = vmatpush2.msra.mxu0 0.0
    %485 = vmatprep.mubr.f32.mxu0 0.0
    %486 = vmatmul.mubr.f32.gmra.mxu0 %v416
    %v487 = vpop.f32.mrf.mxu0
    %v488 = vadd.f32 %v413, %v487
    %v489 = vpop.f32.mrf.mxu0
    %490 = vmatprep.mubr.f32.mxu0 0.0
    %491 = vmatmul.mubr.f32.gmra.mxu0 %v419
    %v492 = vpop.f32.mrf.mxu0
    %v493 = vadd.f32 %v413, %v492
    %v494 = vpop.f32.mrf.mxu0
    %495 = vdwg.mxu0
    %vm496 = vcmask 261120
    %497 = vst.msk [vmem:[#allocation32] sm:$0xff] %vm496, %v488
    %498 = vst.msk [vmem:[#allocation32 + $0x8] sm:$0xff] %vm496, %v493
    %v499 = vlaneseq
    %v500 = vshrl.u32 %v499, 7
    %v501 = vadd.s32 %v500, 8
    %vm502 = vcmp.lt.s32.totalorder %v500, 16
    %vm503 = vcmp.lt.s32.totalorder %v501, 16
    %v504 = vsel %vm502, 1, 0
    %v505 = vsel %vm503, 1, 0
    %v506 = vcvt.s32.f32 %v504
    %v507 = vcvt.s32.f32 %v505
    %508 = vmatprep.subr.mxu0 0.0
    %509 = vmatpush1.msra.mxu0 0.0
    %510 = vmatprep.subr.mxu0 0.0
    %511 = vmatpush1.msra.mxu0 0.0
    %512 = vmatprep.subr.mxu0 0.0
    %513 = vmatpush1.msra.mxu0 0.0
    %514 = vmatprep.subr.mxu0 0.0
    %515 = vmatpush1.msra.mxu0 0.0
    %516 = vmatprep.subr.mxu0 0.0
    %517 = vmatpush1.msra.mxu0 0.0
    %518 = vmatprep.subr.mxu0 0.0
    %519 = vmatpush1.msra.mxu0 0.0
    %520 = vmatprep.subr.mxu0 0.0
    %521 = vmatpush1.msra.mxu0 0.0
    %522 = vmatprep.subr.mxu0 0.0
    %523 = vmatpush1.msra.mxu0 0.0
    %524 = vmatprep.subr.mxu0 0.0
    %525 = vmatpush1.msra.mxu0 0.0
    %526 = vmatprep.subr.mxu0 0.0
    %527 = vmatpush1.msra.mxu0 0.0
    %528 = vmatprep.subr.mxu0 0.0
    %529 = vmatpush1.msra.mxu0 0.0
    %530 = vmatprep.subr.mxu0 0.0
    %531 = vmatpush1.msra.mxu0 0.0
    %532 = vmatprep.subr.mxu0 0.0
    %533 = vmatpush1.msra.mxu0 0.0
    %534 = vmatprep.subr.mxu0 0.0
    %535 = vmatpush1.msra.mxu0 0.0
    %536 = vmatprep.subr.mxu0 0.0
    %537 = vmatpush1.msra.mxu0 %v493
    %538 = vmatprep.subr.mxu0 0.0
    %539 = vmatpush1.msra.mxu0 %v488
    %540 = vmatprep.subr.mxu0 0.0
    %541 = vmatpush2.msra.mxu0 0.0
    %542 = vmatprep.subr.mxu0 0.0
    %543 = vmatpush2.msra.mxu0 0.0
    %544 = vmatprep.subr.mxu0 0.0
    %545 = vmatpush2.msra.mxu0 0.0
    %546 = vmatprep.subr.mxu0 0.0
    %547 = vmatpush2.msra.mxu0 0.0
    %548 = vmatprep.subr.mxu0 0.0
    %549 = vmatpush2.msra.mxu0 0.0
    %550 = vmatprep.subr.mxu0 0.0
    %551 = vmatpush2.msra.mxu0 0.0
    %552 = vmatprep.subr.mxu0 0.0
    %553 = vmatpush2.msra.mxu0 0.0
    %554 = vmatprep.subr.mxu0 0.0
    %555 = vmatpush2.msra.mxu0 0.0
    %556 = vmatprep.subr.mxu0 0.0
    %557 = vmatpush2.msra.mxu0 0.0
    %558 = vmatprep.subr.mxu0 0.0
    %559 = vmatpush2.msra.mxu0 0.0
    %560 = vmatprep.subr.mxu0 0.0
    %561 = vmatpush2.msra.mxu0 0.0
    %562 = vmatprep.subr.mxu0 0.0
    %563 = vmatpush2.msra.mxu0 0.0
    %564 = vmatprep.subr.mxu0 0.0
    %565 = vmatpush2.msra.mxu0 0.0
    %566 = vmatprep.subr.mxu0 0.0
    %567 = vmatpush2.msra.mxu0 0.0
    %568 = vmatprep.subr.mxu0 0.0
    %569 = vmatpush2.msra.mxu0 0.0
    %570 = vmatprep.subr.mxu0 0.0
    %571 = vmatpush2.msra.mxu0 0.0
    %572 = vmatprep.mubr.f32.mxu0 0.0
    %573 = vmatmul.mubr.f32.gmra.mxu0 %v416
    %v574 = vpop.f32.mrf.mxu0
    %v575 = vadd.f32 0.0, %v574
    %v576 = vpop.f32.mrf.mxu0
    %577 = vmatprep.mubr.f32.mxu0 0.0
    %578 = vmatmul.mubr.f32.gmra.mxu0 %v419
    %v579 = vpop.f32.mrf.mxu0
    %v580 = vadd.f32 0.0, %v579
    %v581 = vpop.f32.mrf.mxu0
    %582 = vdwg.mxu0
    %v583 = vld [vmem:[%s7] sm:$0xff]
    %v584 = vld [vmem:[%s7 + $0x8] sm:$0xff]
    %v585 = vld [vmem:[%s7 + $0x10] sm:$0xff]
    %v586 = vld [vmem:[%s7 + $0x18] sm:$0xff]
    %v587 = vld [vmem:[#allocation11] sm:$0x1]
    %v589 = vlaneseq
    %v590 = vshrl.u32 %v589, 7
    %v591 = vsub.s32 0, %v590
    %v592 = vrot.slane %v587, %v591
    %v595 = vsel %vm496, %v575, 0
    %v598 = vsel %vm496, %v580, 0
    %600 = vmatprep.subr.mxu0 0.0
    %601 = vmatpush1.msra.mxu0 0.0
    %602 = vmatprep.subr.mxu0 0.0
    %603 = vmatpush1.msra.mxu0 0.0
    %604 = vmatprep.subr.mxu0 0.0
    %605 = vmatpush1.msra.mxu0 0.0
    %606 = vmatprep.subr.mxu0 0.0
    %607 = vmatpush1.msra.mxu0 0.0
    %608 = vmatprep.subr.mxu0 0.0
    %609 = vmatpush1.msra.mxu0 0.0
    %610 = vmatprep.subr.mxu0 0.0
    %611 = vmatpush1.msra.mxu0 0.0
    %612 = vmatprep.subr.mxu0 0.0
    %613 = vmatpush1.msra.mxu0 0.0
    %614 = vmatprep.subr.mxu0 0.0
    %615 = vmatpush1.msra.mxu0 0.0
    %616 = vmatprep.subr.mxu0 0.0
    %617 = vmatpush1.msra.mxu0 0.0
    %618 = vmatprep.subr.mxu0 0.0
    %619 = vmatpush1.msra.mxu0 0.0
    %620 = vmatprep.subr.mxu0 0.0
    %621 = vmatpush1.msra.mxu0 0.0
    %622 = vmatprep.subr.mxu0 0.0
    %623 = vmatpush1.msra.mxu0 0.0
    %624 = vmatprep.subr.mxu0 0.0
    %625 = vmatpush1.msra.mxu0 %v586
    %626 = vmatprep.subr.mxu0 0.0
    %627 = vmatpush1.msra.mxu0 %v585
    %628 = vmatprep.subr.mxu0 0.0
    %629 = vmatpush1.msra.mxu0 %v584
    %630 = vmatprep.subr.mxu0 0.0
    %631 = vmatpush1.msra.mxu0 %v583
    %632 = vmatprep.subr.mxu0 0.0
    %633 = vmatpush2.msra.mxu0 0.0
    %634 = vmatprep.subr.mxu0 0.0
    %635 = vmatpush2.msra.mxu0 0.0
    %636 = vmatprep.subr.mxu0 0.0
    %637 = vmatpush2.msra.mxu0 0.0
    %638 = vmatprep.subr.mxu0 0.0
    %639 = vmatpush2.msra.mxu0 0.0
    %640 = vmatprep.subr.mxu0 0.0
    %641 = vmatpush2.msra.mxu0 0.0
    %642 = vmatprep.subr.mxu0 0.0
    %643 = vmatpush2.msra.mxu0 0.0
    %644 = vmatprep.subr.mxu0 0.0
    %645 = vmatpush2.msra.mxu0 0.0
    %646 = vmatprep.subr.mxu0 0.0
    %647 = vmatpush2.msra.mxu0 0.0
    %648 = vmatprep.subr.mxu0 0.0
    %649 = vmatpush2.msra.mxu0 0.0
    %650 = vmatprep.subr.mxu0 0.0
    %651 = vmatpush2.msra.mxu0 0.0
    %652 = vmatprep.subr.mxu0 0.0
    %653 = vmatpush2.msra.mxu0 0.0
    %654 = vmatprep.subr.mxu0 0.0
    %655 = vmatpush2.msra.mxu0 0.0
    %656 = vmatprep.subr.mxu0 0.0
    %657 = vmatpush2.msra.mxu0 0.0
    %658 = vmatprep.subr.mxu0 0.0
    %659 = vmatpush2.msra.mxu0 0.0
    %660 = vmatprep.subr.mxu0 0.0
    %661 = vmatpush2.msra.mxu0 0.0
    %662 = vmatprep.subr.mxu0 0.0
    %663 = vmatpush2.msra.mxu0 0.0
    %664 = vmatprep.mubr.f32.mxu0 0.0
    %665 = vmatmul.mubr.f32.gmra.mxu0 %v595
    %v666 = vpop.f32.mrf.mxu0
    %v667 = vadd.f32 %v592, %v666
    %v668 = vpop.f32.mrf.mxu0
    %669 = vmatprep.mubr.f32.mxu0 0.0
    %670 = vmatmul.mubr.f32.gmra.mxu0 %v598
    %v671 = vpop.f32.mrf.mxu0
    %v672 = vadd.f32 %v592, %v671
    %v673 = vpop.f32.mrf.mxu0
    %674 = vdwg.mxu0
    %v675 = vld [vmem:[%s11] sm:$0xff]
    %v676 = vld [vmem:[%s11 + $0x8] sm:$0xff]
    %v677 = vld [vmem:[%s11 + $0x10] sm:$0xff]
    %v678 = vld [vmem:[%s11 + $0x18] sm:$0xff]
    %v679 = vld [vmem:[#allocation2] sm:$0x1]
    %v681 = vlaneseq
    %v682 = vshrl.u32 %v681, 7
    %v683 = vsub.s32 0, %v682
    %v684 = vrot.slane %v679, %v683
    %v687 = vsel %vm496, %v667, 0
    %v690 = vsel %vm496, %v672, 0
    %692 = vmatprep.subr.mxu0 0.0
    %693 = vmatpush1.msra.mxu0 0.0
    %694 = vmatprep.subr.mxu0 0.0
    %695 = vmatpush1.msra.mxu0 0.0
    %696 = vmatprep.subr.mxu0 0.0
    %697 = vmatpush1.msra.mxu0 0.0
    %698 = vmatprep.subr.mxu0 0.0
    %699 = vmatpush1.msra.mxu0 0.0
    %700 = vmatprep.subr.mxu0 0.0
    %701 = vmatpush1.msra.mxu0 0.0
    %702 = vmatprep.subr.mxu0 0.0
    %703 = vmatpush1.msra.mxu0 0.0
    %704 = vmatprep.subr.mxu0 0.0
    %705 = vmatpush1.msra.mxu0 0.0
    %706 = vmatprep.subr.mxu0 0.0
    %707 = vmatpush1.msra.mxu0 0.0
    %708 = vmatprep.subr.mxu0 0.0
    %709 = vmatpush1.msra.mxu0 0.0
    %710 = vmatprep.subr.mxu0 0.0
    %711 = vmatpush1.msra.mxu0 0.0
    %712 = vmatprep.subr.mxu0 0.0
    %713 = vmatpush1.msra.mxu0 0.0
    %714 = vmatprep.subr.mxu0 0.0
    %715 = vmatpush1.msra.mxu0 0.0
    %716 = vmatprep.subr.mxu0 0.0
    %717 = vmatpush1.msra.mxu0 %v678
    %718 = vmatprep.subr.mxu0 0.0
    %719 = vmatpush1.msra.mxu0 %v677
    %720 = vmatprep.subr.mxu0 0.0
    %721 = vmatpush1.msra.mxu0 %v676
    %722 = vmatprep.subr.mxu0 0.0
    %723 = vmatpush1.msra.mxu0 %v675
    %724 = vmatprep.subr.mxu0 0.0
    %725 = vmatpush2.msra.mxu0 0.0
    %726 = vmatprep.subr.mxu0 0.0
    %727 = vmatpush2.msra.mxu0 0.0
    %728 = vmatprep.subr.mxu0 0.0
    %729 = vmatpush2.msra.mxu0 0.0
    %730 = vmatprep.subr.mxu0 0.0
    %731 = vmatpush2.msra.mxu0 0.0
    %732 = vmatprep.subr.mxu0 0.0
    %733 = vmatpush2.msra.mxu0 0.0
    %734 = vmatprep.subr.mxu0 0.0
    %735 = vmatpush2.msra.mxu0 0.0
    %736 = vmatprep.subr.mxu0 0.0
    %737 = vmatpush2.msra.mxu0 0.0
    %738 = vmatprep.subr.mxu0 0.0
    %739 = vmatpush2.msra.mxu0 0.0
    %740 = vmatprep.subr.mxu0 0.0
    %741 = vmatpush2.msra.mxu0 0.0
    %742 = vmatprep.subr.mxu0 0.0
    %743 = vmatpush2.msra.mxu0 0.0
    %744 = vmatprep.subr.mxu0 0.0
    %745 = vmatpush2.msra.mxu0 0.0
    %746 = vmatprep.subr.mxu0 0.0
    %747 = vmatpush2.msra.mxu0 0.0
    %748 = vmatprep.subr.mxu0 0.0
    %749 = vmatpush2.msra.mxu0 0.0
    %750 = vmatprep.subr.mxu0 0.0
    %751 = vmatpush2.msra.mxu0 0.0
    %752 = vmatprep.subr.mxu0 0.0
    %753 = vmatpush2.msra.mxu0 0.0
    %754 = vmatprep.subr.mxu0 0.0
    %755 = vmatpush2.msra.mxu0 0.0
    %756 = vmatprep.mubr.f32.mxu0 0.0
    %757 = vmatmul.mubr.f32.gmra.mxu0 %v687
    %v758 = vpop.f32.mrf.mxu0
    %v759 = vadd.f32 %v684, %v758
    %v760 = vpop.f32.mrf.mxu0
    %761 = vmatprep.mubr.f32.mxu0 0.0
    %762 = vmatmul.mubr.f32.gmra.mxu0 %v690
    %v763 = vpop.f32.mrf.mxu0
    %v764 = vadd.f32 %v684, %v763
    %v765 = vpop.f32.mrf.mxu0
    %766 = vdwg.mxu0
    %v767 = vrcp.pop 100.0
    %v768 = vmul.f32 %v759, %v767
    %v769 = vmul.f32 %v764, %v767
    %v770 = vxor.u32 %v768, 2147483648
    %v771 = vxor.u32 %v769, 2147483648
    %v772 = vmul.f32 %v770, 1.442695
    %v773 = vpow.pop %v772
    %v774 = vmul.f32 %v771, 1.442695
    %v775 = vpow.pop %v774
    %v776 = vadd.f32 %v773, 1.0
    %v777 = vadd.f32 %v775, 1.0
    %v778 = vrcp.pop %v776
    %v779 = vmul.f32 1.0, %v778
    %v780 = vrcp.pop %v777
    %v781 = vmul.f32 1.0, %v780
    %vm782 = vcmp.gt.f32.partialorder %v506, 0.0
    %vm783 = vcmp.gt.f32.partialorder %v507, 0.0
    %v784 = vsel %vm782, %v779, -1e+30
    %v785 = vsel %vm783, %v781, -1e+30
    %786 = vxpose.xlu0.b32.start [1/16] %v784, 128
    %787 = vxpose.xlu0.b32.cont [2/16] %v785, 128
    %788 = vxpose.xlu0.b32.cont [3/16] 0.0, 128
    %789 = vxpose.xlu0.b32.cont [4/16] 0.0, 128
    %790 = vxpose.xlu0.b32.cont [5/16] 0.0, 128
    %791 = vxpose.xlu0.b32.cont [6/16] 0.0, 128
    %792 = vxpose.xlu0.b32.cont [7/16] 0.0, 128
    %793 = vxpose.xlu0.b32.cont [8/16] 0.0, 128
    %794 = vxpose.xlu0.b32.cont [9/16] 0.0, 128
    %795 = vxpose.xlu0.b32.cont [10/16] 0.0, 128
    %796 = vxpose.xlu0.b32.cont [11/16] 0.0, 128
    %797 = vxpose.xlu0.b32.cont [12/16] 0.0, 128
    %798 = vxpose.xlu0.b32.cont [13/16] 0.0, 128
    %799 = vxpose.xlu0.b32.cont [14/16] 0.0, 128
    %800 = vxpose.xlu0.b32.cont [15/16] 0.0, 128
    %801 = vxpose.xlu0.b32.end [16/16] 0.0, 128
    %v802 = vpop.trf.xlu0
    %v803 = vpop.trf.xlu0
    %v804 = vpop.trf.xlu0
    %v805 = vpop.trf.xlu0
    %v806 = vpop.trf.xlu0
    %v807 = vpop.trf.xlu0
    %v808 = vpop.trf.xlu0
    %v809 = vpop.trf.xlu0
    %v810 = vpop.trf.xlu0
    %v811 = vpop.trf.xlu0
    %v812 = vpop.trf.xlu0
    %v813 = vpop.trf.xlu0
    %v814 = vpop.trf.xlu0
    %v815 = vpop.trf.xlu0
    %v816 = vpop.trf.xlu0
    %v817 = vpop.trf.xlu0
    %v818 = vlaneseq
    %v819 = vand.u32 %v818, 127
    %v820 = vlaneseq
    %v821 = vshrl.u32 %v820, 7
    %v822 = vsub.s32 0, %v821
    %v823 = vrot.slane %v802, %v822
    %825 = vset.pattern.permute.xlu0 0
    %826 = vperm.xlu0 %825, %v784
    %v827 = vpop.permute.xlu0 %826
    %830 = vset.pattern.permute.xlu0 0
    %831 = vperm.xlu0 %830, %v785
    %v832 = vpop.permute.xlu0 %831
    %vm834 = vcmp.gt.f32.partialorder %v823, %v827
    %vm835 = vcmp.gt.f32.partialorder %v823, %v832
    %vm836 = vcmp.eq.f32.partialorder %v823, %v827
    %vm837 = vcmp.eq.f32.partialorder %v823, %v832
    %vm838 = vcmp.lt.s32.totalorder %v819, %v500
    %vm839 = vcmp.lt.s32.totalorder %v819, %v501
    %vm840 = vmand %vm836, %vm838
    %vm841 = vmand %vm837, %vm839
    %vm842 = vmor %vm834, %vm840
    %vm843 = vmor %vm835, %vm841
    %v844 = vsel %vm842, 1, 0
    %v845 = vsel %vm843, 1, 0
    %v846 = vcvt.s32.f32 %v844
    %v847 = vcvt.s32.f32 %v845
    %v848 = vsel %vm349, %v846, 0.0
    %849 = vadd.xlane.f32.xlu0 %v848
    %v850 = vpop.xlane.xlu0 %849
    %v851 = vsel %vm349, %v847, 0.0
    %852 = vadd.xlane.f32.xlu0 %v851
    %v853 = vpop.xlane.xlu0 %852
    %vm854 = vcmp.lt.f32.partialorder %v850, 14.0
    %vm855 = vcmp.lt.f32.partialorder %v853, 14.0
    %v856 = vsel %vm854, 1, 0
    %v857 = vsel %vm855, 1, 0
    %v858 = vcvt.s32.f32 %v856
    %v859 = vcvt.s32.f32 %v857
    %v860 = vmul.f32 %v858, %v779
    %v861 = vmul.f32 %v859, %v781
    %863 = vset.pattern.permute.xlu0 0
    %864 = vperm.xlu0 %863, %v860
    %v865 = vpop.permute.xlu0 %864
    %868 = vset.pattern.permute.xlu0 0
    %869 = vperm.xlu0 %868, %v861
    %v870 = vpop.permute.xlu0 %869
    %v872 = vmul.f32 %v667, %v865
    %v873 = vmul.f32 %v672, %v870
    %874 = vmatprep.subr.mxu0 0.0
    %875 = vmatpush1.msra.mxu0 0.0
    %876 = vmatprep.subr.mxu0 0.0
    %877 = vmatpush1.msra.mxu0 0.0
    %878 = vmatprep.subr.mxu0 0.0
    %879 = vmatpush1.msra.mxu0 0.0
    %880 = vmatprep.subr.mxu0 0.0
    %881 = vmatpush1.msra.mxu0 0.0
    %882 = vmatprep.subr.mxu0 0.0
    %883 = vmatpush1.msra.mxu0 0.0
    %884 = vmatprep.subr.mxu0 0.0
    %885 = vmatpush1.msra.mxu0 0.0
    %886 = vmatprep.subr.mxu0 0.0
    %887 = vmatpush1.msra.mxu0 0.0
    %888 = vmatprep.subr.mxu0 0.0
    %889 = vmatpush1.msra.mxu0 0.0
    %890 = vmatprep.subr.mxu0 0.0
    %891 = vmatpush1.msra.mxu0 0.0
    %892 = vmatprep.subr.mxu0 0.0
    %893 = vmatpush1.msra.mxu0 0.0
    %894 = vmatprep.subr.mxu0 0.0
    %895 = vmatpush1.msra.mxu0 0.0
    %896 = vmatprep.subr.mxu0 0.0
    %897 = vmatpush1.msra.mxu0 0.0
    %898 = vmatprep.subr.mxu0 0.0
    %899 = vmatpush1.msra.mxu0 0.0
    %900 = vmatprep.subr.mxu0 0.0
    %901 = vmatpush1.msra.mxu0 0.0
    %902 = vmatprep.subr.mxu0 0.0
    %903 = vmatpush1.msra.mxu0 %v873
    %904 = vmatprep.subr.mxu0 0.0
    %905 = vmatpush1.msra.mxu0 %v872
    %906 = vmatprep.subr.mxu0 0.0
    %907 = vmatpush2.msra.mxu0 0.0
    %908 = vmatprep.subr.mxu0 0.0
    %909 = vmatpush2.msra.mxu0 0.0
    %910 = vmatprep.subr.mxu0 0.0
    %911 = vmatpush2.msra.mxu0 0.0
    %912 = vmatprep.subr.mxu0 0.0
    %913 = vmatpush2.msra.mxu0 0.0
    %914 = vmatprep.subr.mxu0 0.0
    %915 = vmatpush2.msra.mxu0 0.0
    %916 = vmatprep.subr.mxu0 0.0
    %917 = vmatpush2.msra.mxu0 0.0
    %918 = vmatprep.subr.mxu0 0.0
    %919 = vmatpush2.msra.mxu0 0.0
    %920 = vmatprep.subr.mxu0 0.0
    %921 = vmatpush2.msra.mxu0 0.0
    %922 = vmatprep.subr.mxu0 0.0
    %923 = vmatpush2.msra.mxu0 0.0
    %924 = vmatprep.subr.mxu0 0.0
    %925 = vmatpush2.msra.mxu0 0.0
    %926 = vmatprep.subr.mxu0 0.0
    %927 = vmatpush2.msra.mxu0 0.0
    %928 = vmatprep.subr.mxu0 0.0
    %929 = vmatpush2.msra.mxu0 0.0
    %930 = vmatprep.subr.mxu0 0.0
    %931 = vmatpush2.msra.mxu0 0.0
    %932 = vmatprep.subr.mxu0 0.0
    %933 = vmatpush2.msra.mxu0 0.0
    %934 = vmatprep.subr.mxu0 0.0
    %935 = vmatpush2.msra.mxu0 0.0
    %936 = vmatprep.subr.mxu0 0.0
    %937 = vmatpush2.msra.mxu0 0.0
    %938 = vmatprep.mubr.f32.mxu0 0.0
    %939 = vmatmul.mubr.f32.gmra.mxu0 %v416
    %v940 = vpop.f32.mrf.mxu0
    %v941 = vadd.f32 0.0, %v940
    %v942 = vpop.f32.mrf.mxu0
    %943 = vmatprep.mubr.f32.mxu0 0.0
    %944 = vmatmul.mubr.f32.gmra.mxu0 %v419
    %v945 = vpop.f32.mrf.mxu0
    %v946 = vadd.f32 0.0, %v945
    %v947 = vpop.f32.mrf.mxu0
    %948 = vdwg.mxu0
    %v949 = vld [vmem:[%s15] sm:$0xff]
    %v950 = vld [vmem:[%s15 + $0x8] sm:$0xff]
    %v951 = vld [vmem:[%s15 + $0x10] sm:$0xff]
    %v952 = vld [vmem:[%s15 + $0x18] sm:$0xff]
    %v953 = vld [vmem:[#allocation12] sm:$0x1]
    %v955 = vlaneseq
    %v956 = vshrl.u32 %v955, 7
    %v957 = vsub.s32 0, %v956
    %v958 = vrot.slane %v953, %v957
    %v961 = vsel %vm496, %v941, 0
    %v964 = vsel %vm496, %v946, 0
    %966 = vmatprep.subr.mxu0 0.0
    %967 = vmatpush1.msra.mxu0 0.0
    %968 = vmatprep.subr.mxu0 0.0
    %969 = vmatpush1.msra.mxu0 0.0
    %970 = vmatprep.subr.mxu0 0.0
    %971 = vmatpush1.msra.mxu0 0.0
    %972 = vmatprep.subr.mxu0 0.0
    %973 = vmatpush1.msra.mxu0 0.0
    %974 = vmatprep.subr.mxu0 0.0
    %975 = vmatpush1.msra.mxu0 0.0
    %976 = vmatprep.subr.mxu0 0.0
    %977 = vmatpush1.msra.mxu0 0.0
    %978 = vmatprep.subr.mxu0 0.0
    %979 = vmatpush1.msra.mxu0 0.0
    %980 = vmatprep.subr.mxu0 0.0
    %981 = vmatpush1.msra.mxu0 0.0
    %982 = vmatprep.subr.mxu0 0.0
    %983 = vmatpush1.msra.mxu0 0.0
    %984 = vmatprep.subr.mxu0 0.0
    %985 = vmatpush1.msra.mxu0 0.0
    %986 = vmatprep.subr.mxu0 0.0
    %987 = vmatpush1.msra.mxu0 0.0
    %988 = vmatprep.subr.mxu0 0.0
    %989 = vmatpush1.msra.mxu0 0.0
    %990 = vmatprep.subr.mxu0 0.0
    %991 = vmatpush1.msra.mxu0 %v952
    %992 = vmatprep.subr.mxu0 0.0
    %993 = vmatpush1.msra.mxu0 %v951
    %994 = vmatprep.subr.mxu0 0.0
    %995 = vmatpush1.msra.mxu0 %v950
    %996 = vmatprep.subr.mxu0 0.0
    %997 = vmatpush1.msra.mxu0 %v949
    %998 = vmatprep.subr.mxu0 0.0
    %999 = vmatpush2.msra.mxu0 0.0
    %1000 = vmatprep.subr.mxu0 0.0
    %1001 = vmatpush2.msra.mxu0 0.0
    %1002 = vmatprep.subr.mxu0 0.0
    %1003 = vmatpush2.msra.mxu0 0.0
    %1004 = vmatprep.subr.mxu0 0.0
    %1005 = vmatpush2.msra.mxu0 0.0
    %1006 = vmatprep.subr.mxu0 0.0
    %1007 = vmatpush2.msra.mxu0 0.0
    %1008 = vmatprep.subr.mxu0 0.0
    %1009 = vmatpush2.msra.mxu0 0.0
    %1010 = vmatprep.subr.mxu0 0.0
    %1011 = vmatpush2.msra.mxu0 0.0
    %1012 = vmatprep.subr.mxu0 0.0
    %1013 = vmatpush2.msra.mxu0 0.0
    %1014 = vmatprep.subr.mxu0 0.0
    %1015 = vmatpush2.msra.mxu0 0.0
    %1016 = vmatprep.subr.mxu0 0.0
    %1017 = vmatpush2.msra.mxu0 0.0
    %1018 = vmatprep.subr.mxu0 0.0
    %1019 = vmatpush2.msra.mxu0 0.0
    %1020 = vmatprep.subr.mxu0 0.0
    %1021 = vmatpush2.msra.mxu0 0.0
    %1022 = vmatprep.subr.mxu0 0.0
    %1023 = vmatpush2.msra.mxu0 0.0
    %1024 = vmatprep.subr.mxu0 0.0
    %1025 = vmatpush2.msra.mxu0 0.0
    %1026 = vmatprep.subr.mxu0 0.0
    %1027 = vmatpush2.msra.mxu0 0.0
    %1028 = vmatprep.subr.mxu0 0.0
    %1029 = vmatpush2.msra.mxu0 0.0
    %1030 = vmatprep.mubr.f32.mxu0 0.0
    %1031 = vmatmul.mubr.f32.gmra.mxu0 %v961
    %v1032 = vpop.f32.mrf.mxu0
    %v1033 = vadd.f32 %v958, %v1032
    %v1034 = vpop.f32.mrf.mxu0
    %1035 = vmatprep.mubr.f32.mxu0 0.0
    %1036 = vmatmul.mubr.f32.gmra.mxu0 %v964
    %v1037 = vpop.f32.mrf.mxu0
    %v1038 = vadd.f32 %v958, %v1037
    %v1039 = vpop.f32.mrf.mxu0
    %1040 = vdwg.mxu0
    %v1041 = vld [vmem:[%s19] sm:$0xff]
    %v1042 = vld [vmem:[%s19 + $0x8] sm:$0xff]
    %v1043 = vld [vmem:[%s19 + $0x10] sm:$0xff]
    %v1044 = vld [vmem:[%s19 + $0x18] sm:$0xff]
    %v1045 = vld [vmem:[#allocation3] sm:$0x1]
    %v1047 = vlaneseq
    %v1048 = vshrl.u32 %v1047, 7
    %v1049 = vsub.s32 0, %v1048
    %v1050 = vrot.slane %v1045, %v1049
    %v1053 = vsel %vm496, %v1033, 0
    %v1056 = vsel %vm496, %v1038, 0
    %1058 = vmatprep.subr.mxu0 0.0
    %1059 = vmatpush1.msra.mxu0 0.0
    %1060 = vmatprep.subr.mxu0 0.0
    %1061 = vmatpush1.msra.mxu0 0.0
    %1062 = vmatprep.subr.mxu0 0.0
    %1063 = vmatpush1.msra.mxu0 0.0
    %1064 = vmatprep.subr.mxu0 0.0
    %1065 = vmatpush1.msra.mxu0 0.0
    %1066 = vmatprep.subr.mxu0 0.0
    %1067 = vmatpush1.msra.mxu0 0.0
    %1068 = vmatprep.subr.mxu0 0.0
    %1069 = vmatpush1.msra.mxu0 0.0
    %1070 = vmatprep.subr.mxu0 0.0
    %1071 = vmatpush1.msra.mxu0 0.0
    %1072 = vmatprep.subr.mxu0 0.0
    %1073 = vmatpush1.msra.mxu0 0.0
    %1074 = vmatprep.subr.mxu0 0.0
    %1075 = vmatpush1.msra.mxu0 0.0
    %1076 = vmatprep.subr.mxu0 0.0
    %1077 = vmatpush1.msra.mxu0 0.0
    %1078 = vmatprep.subr.mxu0 0.0
    %1079 = vmatpush1.msra.mxu0 0.0
    %1080 = vmatprep.subr.mxu0 0.0
    %1081 = vmatpush1.msra.mxu0 0.0
    %1082 = vmatprep.subr.mxu0 0.0
    %1083 = vmatpush1.msra.mxu0 %v1044
    %1084 = vmatprep.subr.mxu0 0.0
    %1085 = vmatpush1.msra.mxu0 %v1043
    %1086 = vmatprep.subr.mxu0 0.0
    %1087 = vmatpush1.msra.mxu0 %v1042
    %1088 = vmatprep.subr.mxu0 0.0
    %1089 = vmatpush1.msra.mxu0 %v1041
    %1090 = vmatprep.subr.mxu0 0.0
    %1091 = vmatpush2.msra.mxu0 0.0
    %1092 = vmatprep.subr.mxu0 0.0
    %1093 = vmatpush2.msra.mxu0 0.0
    %1094 = vmatprep.subr.mxu0 0.0
    %1095 = vmatpush2.msra.mxu0 0.0
    %1096 = vmatprep.subr.mxu0 0.0
    %1097 = vmatpush2.msra.mxu0 0.0
    %1098 = vmatprep.subr.mxu0 0.0
    %1099 = vmatpush2.msra.mxu0 0.0
    %1100 = vmatprep.subr.mxu0 0.0
    %1101 = vmatpush2.msra.mxu0 0.0
    %1102 = vmatprep.subr.mxu0 0.0
    %1103 = vmatpush2.msra.mxu0 0.0
    %1104 = vmatprep.subr.mxu0 0.0
    %1105 = vmatpush2.msra.mxu0 0.0
    %1106 = vmatprep.subr.mxu0 0.0
    %1107 = vmatpush2.msra.mxu0 0.0
    %1108 = vmatprep.subr.mxu0 0.0
    %1109 = vmatpush2.msra.mxu0 0.0
    %1110 = vmatprep.subr.mxu0 0.0
    %1111 = vmatpush2.msra.mxu0 0.0
    %1112 = vmatprep.subr.mxu0 0.0
    %1113 = vmatpush2.msra.mxu0 0.0
    %1114 = vmatprep.subr.mxu0 0.0
    %1115 = vmatpush2.msra.mxu0 0.0
    %1116 = vmatprep.subr.mxu0 0.0
    %1117 = vmatpush2.msra.mxu0 0.0
    %1118 = vmatprep.subr.mxu0 0.0
    %1119 = vmatpush2.msra.mxu0 0.0
    %1120 = vmatprep.subr.mxu0 0.0
    %1121 = vmatpush2.msra.mxu0 0.0
    %1122 = vmatprep.mubr.f32.mxu0 0.0
    %1123 = vmatmul.mubr.f32.gmra.mxu0 %v1053
    %v1124 = vpop.f32.mrf.mxu0
    %v1125 = vadd.f32 %v1050, %v1124
    %v1126 = vpop.f32.mrf.mxu0
    %1127 = vmatprep.mubr.f32.mxu0 0.0
    %1128 = vmatmul.mubr.f32.gmra.mxu0 %v1056
    %v1129 = vpop.f32.mrf.mxu0
    %v1130 = vadd.f32 %v1050, %v1129
    %v1131 = vpop.f32.mrf.mxu0
    %1132 = vdwg.mxu0
    %v1133 = vmul.f32 %v1125, %v767
    %v1134 = vmul.f32 %v1130, %v767
    %v1135 = vxor.u32 %v1133, 2147483648
    %v1136 = vxor.u32 %v1134, 2147483648
    %v1137 = vmul.f32 %v1135, 1.442695
    %v1138 = vpow.pop %v1137
    %v1139 = vmul.f32 %v1136, 1.442695
    %v1140 = vpow.pop %v1139
    %v1141 = vadd.f32 %v1138, 1.0
    %v1142 = vadd.f32 %v1140, 1.0
    %v1143 = vrcp.pop %v1141
    %v1144 = vmul.f32 1.0, %v1143
    %v1145 = vrcp.pop %v1142
    %v1146 = vmul.f32 1.0, %v1145
    %vm1147 = vcmp.gt.f32.partialorder %v858, 0.0
    %vm1148 = vcmp.gt.f32.partialorder %v859, 0.0
    %v1149 = vsel %vm1147, %v1144, -1e+30
    %v1150 = vsel %vm1148, %v1146, -1e+30
    %1151 = vxpose.xlu0.b32.start [1/16] %v1149, 128
    %1152 = vxpose.xlu0.b32.cont [2/16] %v1150, 128
    %1153 = vxpose.xlu0.b32.cont [3/16] 0.0, 128
    %1154 = vxpose.xlu0.b32.cont [4/16] 0.0, 128
    %1155 = vxpose.xlu0.b32.cont [5/16] 0.0, 128
    %1156 = vxpose.xlu0.b32.cont [6/16] 0.0, 128
    %1157 = vxpose.xlu0.b32.cont [7/16] 0.0, 128
    %1158 = vxpose.xlu0.b32.cont [8/16] 0.0, 128
    %1159 = vxpose.xlu0.b32.cont [9/16] 0.0, 128
    %1160 = vxpose.xlu0.b32.cont [10/16] 0.0, 128
    %1161 = vxpose.xlu0.b32.cont [11/16] 0.0, 128
    %1162 = vxpose.xlu0.b32.cont [12/16] 0.0, 128
    %1163 = vxpose.xlu0.b32.cont [13/16] 0.0, 128
    %1164 = vxpose.xlu0.b32.cont [14/16] 0.0, 128
    %1165 = vxpose.xlu0.b32.cont [15/16] 0.0, 128
    %1166 = vxpose.xlu0.b32.end [16/16] 0.0, 128
    %v1167 = vpop.trf.xlu0
    %v1168 = vpop.trf.xlu0
    %v1169 = vpop.trf.xlu0
    %v1170 = vpop.trf.xlu0
    %v1171 = vpop.trf.xlu0
    %v1172 = vpop.trf.xlu0
    %v1173 = vpop.trf.xlu0
    %v1174 = vpop.trf.xlu0
    %v1175 = vpop.trf.xlu0
    %v1176 = vpop.trf.xlu0
    %v1177 = vpop.trf.xlu0
    %v1178 = vpop.trf.xlu0
    %v1179 = vpop.trf.xlu0
    %v1180 = vpop.trf.xlu0
    %v1181 = vpop.trf.xlu0
    %v1182 = vpop.trf.xlu0
    %v1183 = vlaneseq
    %v1184 = vshrl.u32 %v1183, 7
    %v1185 = vsub.s32 0, %v1184
    %v1186 = vrot.slane %v1167, %v1185
    %1188 = vset.pattern.permute.xlu0 0
    %1189 = vperm.xlu0 %1188, %v1149
    %v1190 = vpop.permute.xlu0 %1189
    %1193 = vset.pattern.permute.xlu0 0
    %1194 = vperm.xlu0 %1193, %v1150
    %v1195 = vpop.permute.xlu0 %1194
    %vm1197 = vcmp.gt.f32.partialorder %v1186, %v1190
    %vm1198 = vcmp.gt.f32.partialorder %v1186, %v1195
    %vm1199 = vcmp.eq.f32.partialorder %v1186, %v1190
    %vm1200 = vcmp.eq.f32.partialorder %v1186, %v1195
    %vm1201 = vmand %vm1199, %vm838
    %vm1202 = vmand %vm1200, %vm839
    %vm1203 = vmor %vm1197, %vm1201
    %vm1204 = vmor %vm1198, %vm1202
    %v1205 = vsel %vm1203, 1, 0
    %v1206 = vsel %vm1204, 1, 0
    %v1207 = vcvt.s32.f32 %v1205
    %v1208 = vcvt.s32.f32 %v1206
    %v1209 = vsel %vm349, %v1207, 0.0
    %1210 = vadd.xlane.f32.xlu0 %v1209
    %v1211 = vpop.xlane.xlu0 %1210
    %v1212 = vsel %vm349, %v1208, 0.0
    %1213 = vadd.xlane.f32.xlu0 %v1212
    %v1214 = vpop.xlane.xlu0 %1213
    %vm1215 = vcmp.lt.f32.partialorder %v1211, 9.0
    %vm1216 = vcmp.lt.f32.partialorder %v1214, 9.0
    %v1217 = vsel %vm1215, 1, 0
    %v1218 = vsel %vm1216, 1, 0
    %v1219 = vcvt.s32.f32 %v1217
    %v1220 = vcvt.s32.f32 %v1218
    %v1221 = vmul.f32 %v1219, %v1144
    %v1222 = vmul.f32 %v1220, %v1146
    %1224 = vset.pattern.permute.xlu0 0
    %1225 = vperm.xlu0 %1224, %v1221
    %v1226 = vpop.permute.xlu0 %1225
    %1229 = vset.pattern.permute.xlu0 0
    %1230 = vperm.xlu0 %1229, %v1222
    %v1231 = vpop.permute.xlu0 %1230
    %v1233 = vmul.f32 %v1033, %v1226
    %v1234 = vmul.f32 %v1038, %v1231
    %1235 = vmatprep.subr.mxu0 0.0
    %1236 = vmatpush1.msra.mxu0 0.0
    %1237 = vmatprep.subr.mxu0 0.0
    %1238 = vmatpush1.msra.mxu0 0.0
    %1239 = vmatprep.subr.mxu0 0.0
    %1240 = vmatpush1.msra.mxu0 0.0
    %1241 = vmatprep.subr.mxu0 0.0
    %1242 = vmatpush1.msra.mxu0 0.0
    %1243 = vmatprep.subr.mxu0 0.0
    %1244 = vmatpush1.msra.mxu0 0.0
    %1245 = vmatprep.subr.mxu0 0.0
    %1246 = vmatpush1.msra.mxu0 0.0
    %1247 = vmatprep.subr.mxu0 0.0
    %1248 = vmatpush1.msra.mxu0 0.0
    %1249 = vmatprep.subr.mxu0 0.0
    %1250 = vmatpush1.msra.mxu0 0.0
    %1251 = vmatprep.subr.mxu0 0.0
    %1252 = vmatpush1.msra.mxu0 0.0
    %1253 = vmatprep.subr.mxu0 0.0
    %1254 = vmatpush1.msra.mxu0 0.0
    %1255 = vmatprep.subr.mxu0 0.0
    %1256 = vmatpush1.msra.mxu0 0.0
    %1257 = vmatprep.subr.mxu0 0.0
    %1258 = vmatpush1.msra.mxu0 0.0
    %1259 = vmatprep.subr.mxu0 0.0
    %1260 = vmatpush1.msra.mxu0 0.0
    %1261 = vmatprep.subr.mxu0 0.0
    %1262 = vmatpush1.msra.mxu0 0.0
    %1263 = vmatprep.subr.mxu0 0.0
    %1264 = vmatpush1.msra.mxu0 %v1234
    %1265 = vmatprep.subr.mxu0 0.0
    %1266 = vmatpush1.msra.mxu0 %v1233
    %1267 = vmatprep.subr.mxu0 0.0
    %1268 = vmatpush2.msra.mxu0 0.0
    %1269 = vmatprep.subr.mxu0 0.0
    %1270 = vmatpush2.msra.mxu0 0.0
    %1271 = vmatprep.subr.mxu0 0.0
    %1272 = vmatpush2.msra.mxu0 0.0
    %1273 = vmatprep.subr.mxu0 0.0
    %1274 = vmatpush2.msra.mxu0 0.0
    %1275 = vmatprep.subr.mxu0 0.0
    %1276 = vmatpush2.msra.mxu0 0.0
    %1277 = vmatprep.subr.mxu0 0.0
    %1278 = vmatpush2.msra.mxu0 0.0
    %1279 = vmatprep.subr.mxu0 0.0
    %1280 = vmatpush2.msra.mxu0 0.0
    %1281 = vmatprep.subr.mxu0 0.0
    %1282 = vmatpush2.msra.mxu0 0.0
    %1283 = vmatprep.subr.mxu0 0.0
    %1284 = vmatpush2.msra.mxu0 0.0
    %1285 = vmatprep.subr.mxu0 0.0
    %1286 = vmatpush2.msra.mxu0 0.0
    %1287 = vmatprep.subr.mxu0 0.0
    %1288 = vmatpush2.msra.mxu0 0.0
    %1289 = vmatprep.subr.mxu0 0.0
    %1290 = vmatpush2.msra.mxu0 0.0
    %1291 = vmatprep.subr.mxu0 0.0
    %1292 = vmatpush2.msra.mxu0 0.0
    %1293 = vmatprep.subr.mxu0 0.0
    %1294 = vmatpush2.msra.mxu0 0.0
    %1295 = vmatprep.subr.mxu0 0.0
    %1296 = vmatpush2.msra.mxu0 0.0
    %1297 = vmatprep.subr.mxu0 0.0
    %1298 = vmatpush2.msra.mxu0 0.0
    %1299 = vmatprep.mubr.f32.mxu0 0.0
    %1300 = vmatmul.mubr.f32.gmra.mxu0 %v416
    %v1301 = vpop.f32.mrf.mxu0
    %v1302 = vadd.f32 0.0, %v1301
    %v1303 = vpop.f32.mrf.mxu0
    %1304 = vmatprep.mubr.f32.mxu0 0.0
    %1305 = vmatmul.mubr.f32.gmra.mxu0 %v419
    %v1306 = vpop.f32.mrf.mxu0
    %v1307 = vadd.f32 0.0, %v1306
    %v1308 = vpop.f32.mrf.mxu0
    %1309 = vdwg.mxu0
    %v1310 = vld [vmem:[%s23] sm:$0xff]
    %v1311 = vld [vmem:[%s23 + $0x8] sm:$0xff]
    %v1312 = vld [vmem:[%s23 + $0x10] sm:$0xff]
    %v1313 = vld [vmem:[%s23 + $0x18] sm:$0xff]
    %v1314 = vld [vmem:[#allocation14] sm:$0x1]
    %v1316 = vlaneseq
    %v1317 = vshrl.u32 %v1316, 7
    %v1318 = vsub.s32 0, %v1317
    %v1319 = vrot.slane %v1314, %v1318
    %v1322 = vsel %vm496, %v1302, 0
    %v1325 = vsel %vm496, %v1307, 0
    %1327 = vmatprep.subr.mxu0 0.0
    %1328 = vmatpush1.msra.mxu0 0.0
    %1329 = vmatprep.subr.mxu0 0.0
    %1330 = vmatpush1.msra.mxu0 0.0
    %1331 = vmatprep.subr.mxu0 0.0
    %1332 = vmatpush1.msra.mxu0 0.0
    %1333 = vmatprep.subr.mxu0 0.0
    %1334 = vmatpush1.msra.mxu0 0.0
    %1335 = vmatprep.subr.mxu0 0.0
    %1336 = vmatpush1.msra.mxu0 0.0
    %1337 = vmatprep.subr.mxu0 0.0
    %1338 = vmatpush1.msra.mxu0 0.0
    %1339 = vmatprep.subr.mxu0 0.0
    %1340 = vmatpush1.msra.mxu0 0.0
    %1341 = vmatprep.subr.mxu0 0.0
    %1342 = vmatpush1.msra.mxu0 0.0
    %1343 = vmatprep.subr.mxu0 0.0
    %1344 = vmatpush1.msra.mxu0 0.0
    %1345 = vmatprep.subr.mxu0 0.0
    %1346 = vmatpush1.msra.mxu0 0.0
    %1347 = vmatprep.subr.mxu0 0.0
    %1348 = vmatpush1.msra.mxu0 0.0
    %1349 = vmatprep.subr.mxu0 0.0
    %1350 = vmatpush1.msra.mxu0 0.0
    %1351 = vmatprep.subr.mxu0 0.0
    %1352 = vmatpush1.msra.mxu0 %v1313
    %1353 = vmatprep.subr.mxu0 0.0
    %1354 = vmatpush1.msra.mxu0 %v1312
    %1355 = vmatprep.subr.mxu0 0.0
    %1356 = vmatpush1.msra.mxu0 %v1311
    %1357 = vmatprep.subr.mxu0 0.0
    %1358 = vmatpush1.msra.mxu0 %v1310
    %1359 = vmatprep.subr.mxu0 0.0
    %1360 = vmatpush2.msra.mxu0 0.0
    %1361 = vmatprep.subr.mxu0 0.0
    %1362 = vmatpush2.msra.mxu0 0.0
    %1363 = vmatprep.subr.mxu0 0.0
    %1364 = vmatpush2.msra.mxu0 0.0
    %1365 = vmatprep.subr.mxu0 0.0
    %1366 = vmatpush2.msra.mxu0 0.0
    %1367 = vmatprep.subr.mxu0 0.0
    %1368 = vmatpush2.msra.mxu0 0.0
    %1369 = vmatprep.subr.mxu0 0.0
    %1370 = vmatpush2.msra.mxu0 0.0
    %1371 = vmatprep.subr.mxu0 0.0
    %1372 = vmatpush2.msra.mxu0 0.0
    %1373 = vmatprep.subr.mxu0 0.0
    %1374 = vmatpush2.msra.mxu0 0.0
    %1375 = vmatprep.subr.mxu0 0.0
    %1376 = vmatpush2.msra.mxu0 0.0
    %1377 = vmatprep.subr.mxu0 0.0
    %1378 = vmatpush2.msra.mxu0 0.0
    %1379 = vmatprep.subr.mxu0 0.0
    %1380 = vmatpush2.msra.mxu0 0.0
    %1381 = vmatprep.subr.mxu0 0.0
    %1382 = vmatpush2.msra.mxu0 0.0
    %1383 = vmatprep.subr.mxu0 0.0
    %1384 = vmatpush2.msra.mxu0 0.0
    %1385 = vmatprep.subr.mxu0 0.0
    %1386 = vmatpush2.msra.mxu0 0.0
    %1387 = vmatprep.subr.mxu0 0.0
    %1388 = vmatpush2.msra.mxu0 0.0
    %1389 = vmatprep.subr.mxu0 0.0
    %1390 = vmatpush2.msra.mxu0 0.0
    %1391 = vmatprep.mubr.f32.mxu0 0.0
    %1392 = vmatmul.mubr.f32.gmra.mxu0 %v1322
    %v1393 = vpop.f32.mrf.mxu0
    %v1394 = vadd.f32 %v1319, %v1393
    %v1395 = vpop.f32.mrf.mxu0
    %1396 = vmatprep.mubr.f32.mxu0 0.0
    %1397 = vmatmul.mubr.f32.gmra.mxu0 %v1325
    %v1398 = vpop.f32.mrf.mxu0
    %v1399 = vadd.f32 %v1319, %v1398
    %v1400 = vpop.f32.mrf.mxu0
    %1401 = vdwg.mxu0
    %v1402 = vld [vmem:[%s27] sm:$0xff]
    %v1403 = vld [vmem:[%s27 + $0x8] sm:$0xff]
    %v1404 = vld [vmem:[%s27 + $0x10] sm:$0xff]
    %v1405 = vld [vmem:[%s27 + $0x18] sm:$0xff]
    %v1406 = vld [vmem:[#allocation4] sm:$0x1]
    %v1408 = vlaneseq
    %v1409 = vshrl.u32 %v1408, 7
    %v1410 = vsub.s32 0, %v1409
    %v1411 = vrot.slane %v1406, %v1410
    %v1414 = vsel %vm496, %v1394, 0
    %v1417 = vsel %vm496, %v1399, 0
    %1419 = vmatprep.subr.mxu0 0.0
    %1420 = vmatpush1.msra.mxu0 0.0
    %1421 = vmatprep.subr.mxu0 0.0
    %1422 = vmatpush1.msra.mxu0 0.0
    %1423 = vmatprep.subr.mxu0 0.0
    %1424 = vmatpush1.msra.mxu0 0.0
    %1425 = vmatprep.subr.mxu0 0.0
    %1426 = vmatpush1.msra.mxu0 0.0
    %1427 = vmatprep.subr.mxu0 0.0
    %1428 = vmatpush1.msra.mxu0 0.0
    %1429 = vmatprep.subr.mxu0 0.0
    %1430 = vmatpush1.msra.mxu0 0.0
    %1431 = vmatprep.subr.mxu0 0.0
    %1432 = vmatpush1.msra.mxu0 0.0
    %1433 = vmatprep.subr.mxu0 0.0
    %1434 = vmatpush1.msra.mxu0 0.0
    %1435 = vmatprep.subr.mxu0 0.0
    %1436 = vmatpush1.msra.mxu0 0.0
    %1437 = vmatprep.subr.mxu0 0.0
    %1438 = vmatpush1.msra.mxu0 0.0
    %1439 = vmatprep.subr.mxu0 0.0
    %1440 = vmatpush1.msra.mxu0 0.0
    %1441 = vmatprep.subr.mxu0 0.0
    %1442 = vmatpush1.msra.mxu0 0.0
    %1443 = vmatprep.subr.mxu0 0.0
    %1444 = vmatpush1.msra.mxu0 %v1405
    %1445 = vmatprep.subr.mxu0 0.0
    %1446 = vmatpush1.msra.mxu0 %v1404
    %1447 = vmatprep.subr.mxu0 0.0
    %1448 = vmatpush1.msra.mxu0 %v1403
    %1449 = vmatprep.subr.mxu0 0.0
    %1450 = vmatpush1.msra.mxu0 %v1402
    %1451 = vmatprep.subr.mxu0 0.0
    %1452 = vmatpush2.msra.mxu0 0.0
    %1453 = vmatprep.subr.mxu0 0.0
    %1454 = vmatpush2.msra.mxu0 0.0
    %1455 = vmatprep.subr.mxu0 0.0
    %1456 = vmatpush2.msra.mxu0 0.0
    %1457 = vmatprep.subr.mxu0 0.0
    %1458 = vmatpush2.msra.mxu0 0.0
    %1459 = vmatprep.subr.mxu0 0.0
    %1460 = vmatpush2.msra.mxu0 0.0
    %1461 = vmatprep.subr.mxu0 0.0
    %1462 = vmatpush2.msra.mxu0 0.0
    %1463 = vmatprep.subr.mxu0 0.0
    %1464 = vmatpush2.msra.mxu0 0.0
    %1465 = vmatprep.subr.mxu0 0.0
    %1466 = vmatpush2.msra.mxu0 0.0
    %1467 = vmatprep.subr.mxu0 0.0
    %1468 = vmatpush2.msra.mxu0 0.0
    %1469 = vmatprep.subr.mxu0 0.0
    %1470 = vmatpush2.msra.mxu0 0.0
    %1471 = vmatprep.subr.mxu0 0.0
    %1472 = vmatpush2.msra.mxu0 0.0
    %1473 = vmatprep.subr.mxu0 0.0
    %1474 = vmatpush2.msra.mxu0 0.0
    %1475 = vmatprep.subr.mxu0 0.0
    %1476 = vmatpush2.msra.mxu0 0.0
    %1477 = vmatprep.subr.mxu0 0.0
    %1478 = vmatpush2.msra.mxu0 0.0
    %1479 = vmatprep.subr.mxu0 0.0
    %1480 = vmatpush2.msra.mxu0 0.0
    %1481 = vmatprep.subr.mxu0 0.0
    %1482 = vmatpush2.msra.mxu0 0.0
    %1483 = vmatprep.mubr.f32.mxu0 0.0
    %1484 = vmatmul.mubr.f32.gmra.mxu0 %v1414
    %v1485 = vpop.f32.mrf.mxu0
    %v1486 = vadd.f32 %v1411, %v1485
    %v1487 = vpop.f32.mrf.mxu0
    %1488 = vmatprep.mubr.f32.mxu0 0.0
    %1489 = vmatmul.mubr.f32.gmra.mxu0 %v1417
    %v1490 = vpop.f32.mrf.mxu0
    %v1491 = vadd.f32 %v1411, %v1490
    %v1492 = vpop.f32.mrf.mxu0
    %1493 = vdwg.mxu0
    %v1494 = vmul.f32 %v1486, %v767
    %v1495 = vmul.f32 %v1491, %v767
    %v1496 = vxor.u32 %v1494, 2147483648
    %v1497 = vxor.u32 %v1495, 2147483648
    %v1498 = vmul.f32 %v1496, 1.442695
    %v1499 = vpow.pop %v1498
    %v1500 = vmul.f32 %v1497, 1.442695
    %v1501 = vpow.pop %v1500
    %v1502 = vadd.f32 %v1499, 1.0
    %v1503 = vadd.f32 %v1501, 1.0
    %v1504 = vrcp.pop %v1502
    %v1505 = vmul.f32 1.0, %v1504
    %v1506 = vrcp.pop %v1503
    %v1507 = vmul.f32 1.0, %v1506
    %vm1508 = vcmp.gt.f32.partialorder %v1219, 0.0
    %vm1509 = vcmp.gt.f32.partialorder %v1220, 0.0
    %v1510 = vsel %vm1508, %v1505, -1e+30
    %v1511 = vsel %vm1509, %v1507, -1e+30
    %1512 = vxpose.xlu0.b32.start [1/16] %v1510, 128
    %1513 = vxpose.xlu0.b32.cont [2/16] %v1511, 128
    %1514 = vxpose.xlu0.b32.cont [3/16] 0.0, 128
    %1515 = vxpose.xlu0.b32.cont [4/16] 0.0, 128
    %1516 = vxpose.xlu0.b32.cont [5/16] 0.0, 128
    %1517 = vxpose.xlu0.b32.cont [6/16] 0.0, 128
    %1518 = vxpose.xlu0.b32.cont [7/16] 0.0, 128
    %1519 = vxpose.xlu0.b32.cont [8/16] 0.0, 128
    %1520 = vxpose.xlu0.b32.cont [9/16] 0.0, 128
    %1521 = vxpose.xlu0.b32.cont [10/16] 0.0, 128
    %1522 = vxpose.xlu0.b32.cont [11/16] 0.0, 128
    %1523 = vxpose.xlu0.b32.cont [12/16] 0.0, 128
    %1524 = vxpose.xlu0.b32.cont [13/16] 0.0, 128
    %1525 = vxpose.xlu0.b32.cont [14/16] 0.0, 128
    %1526 = vxpose.xlu0.b32.cont [15/16] 0.0, 128
    %1527 = vxpose.xlu0.b32.end [16/16] 0.0, 128
    %v1528 = vpop.trf.xlu0
    %v1529 = vpop.trf.xlu0
    %v1530 = vpop.trf.xlu0
    %v1531 = vpop.trf.xlu0
    %v1532 = vpop.trf.xlu0
    %v1533 = vpop.trf.xlu0
    %v1534 = vpop.trf.xlu0
    %v1535 = vpop.trf.xlu0
    %v1536 = vpop.trf.xlu0
    %v1537 = vpop.trf.xlu0
    %v1538 = vpop.trf.xlu0
    %v1539 = vpop.trf.xlu0
    %v1540 = vpop.trf.xlu0
    %v1541 = vpop.trf.xlu0
    %v1542 = vpop.trf.xlu0
    %v1543 = vpop.trf.xlu0
    %v1544 = vlaneseq
    %v1545 = vshrl.u32 %v1544, 7
    %v1546 = vsub.s32 0, %v1545
    %v1547 = vrot.slane %v1528, %v1546
    %1549 = vset.pattern.permute.xlu0 0
    %1550 = vperm.xlu0 %1549, %v1510
    %v1551 = vpop.permute.xlu0 %1550
    %1554 = vset.pattern.permute.xlu0 0
    %1555 = vperm.xlu0 %1554, %v1511
    %v1556 = vpop.permute.xlu0 %1555
    %vm1558 = vcmp.gt.f32.partialorder %v1547, %v1551
    %vm1559 = vcmp.gt.f32.partialorder %v1547, %v1556
    %vm1560 = vcmp.eq.f32.partialorder %v1547, %v1551
    %vm1561 = vcmp.eq.f32.partialorder %v1547, %v1556
    %vm1562 = vmand %vm1560, %vm838
    %vm1563 = vmand %vm1561, %vm839
    %vm1564 = vmor %vm1558, %vm1562
    %vm1565 = vmor %vm1559, %vm1563
    %v1566 = vsel %vm1564, 1, 0
    %v1567 = vsel %vm1565, 1, 0
    %v1568 = vcvt.s32.f32 %v1566
    %v1569 = vcvt.s32.f32 %v1567
    %v1570 = vsel %vm349, %v1568, 0.0
    %1571 = vadd.xlane.f32.xlu0 %v1570
    %v1572 = vpop.xlane.xlu0 %1571
    %v1573 = vsel %vm349, %v1569, 0.0
    %1574 = vadd.xlane.f32.xlu0 %v1573
    %v1575 = vpop.xlane.xlu0 %1574
    %vm1576 = vcmp.lt.f32.partialorder %v1572, 5.0
    %vm1577 = vcmp.lt.f32.partialorder %v1575, 5.0
    %v1578 = vsel %vm1576, 1, 0
    %v1579 = vsel %vm1577, 1, 0
    %v1580 = vcvt.s32.f32 %v1578
    %v1581 = vcvt.s32.f32 %v1579
    %v1582 = vmul.f32 %v1580, %v1505
    %v1583 = vmul.f32 %v1581, %v1507
    %1585 = vset.pattern.permute.xlu0 0
    %1586 = vperm.xlu0 %1585, %v1582
    %v1587 = vpop.permute.xlu0 %1586
    %1590 = vset.pattern.permute.xlu0 0
    %1591 = vperm.xlu0 %1590, %v1583
    %v1592 = vpop.permute.xlu0 %1591
    %v1594 = vmul.f32 %v1394, %v1587
    %v1595 = vmul.f32 %v1399, %v1592
    %1596 = vmatprep.subr.mxu0 0.0
    %1597 = vmatpush1.msra.mxu0 0.0
    %1598 = vmatprep.subr.mxu0 0.0
    %1599 = vmatpush1.msra.mxu0 0.0
    %1600 = vmatprep.subr.mxu0 0.0
    %1601 = vmatpush1.msra.mxu0 0.0
    %1602 = vmatprep.subr.mxu0 0.0
    %1603 = vmatpush1.msra.mxu0 0.0
    %1604 = vmatprep.subr.mxu0 0.0
    %1605 = vmatpush1.msra.mxu0 0.0
    %1606 = vmatprep.subr.mxu0 0.0
    %1607 = vmatpush1.msra.mxu0 0.0
    %1608 = vmatprep.subr.mxu0 0.0
    %1609 = vmatpush1.msra.mxu0 0.0
    %1610 = vmatprep.subr.mxu0 0.0
    %1611 = vmatpush1.msra.mxu0 0.0
    %1612 = vmatprep.subr.mxu0 0.0
    %1613 = vmatpush1.msra.mxu0 0.0
    %1614 = vmatprep.subr.mxu0 0.0
    %1615 = vmatpush1.msra.mxu0 0.0
    %1616 = vmatprep.subr.mxu0 0.0
    %1617 = vmatpush1.msra.mxu0 0.0
    %1618 = vmatprep.subr.mxu0 0.0
    %1619 = vmatpush1.msra.mxu0 0.0
    %1620 = vmatprep.subr.mxu0 0.0
    %1621 = vmatpush1.msra.mxu0 0.0
    %1622 = vmatprep.subr.mxu0 0.0
    %1623 = vmatpush1.msra.mxu0 0.0
    %1624 = vmatprep.subr.mxu0 0.0
    %1625 = vmatpush1.msra.mxu0 %v1595
    %1626 = vmatprep.subr.mxu0 0.0
    %1627 = vmatpush1.msra.mxu0 %v1594
    %1628 = vmatprep.subr.mxu0 0.0
    %1629 = vmatpush2.msra.mxu0 0.0
    %1630 = vmatprep.subr.mxu0 0.0
    %1631 = vmatpush2.msra.mxu0 0.0
    %1632 = vmatprep.subr.mxu0 0.0
    %1633 = vmatpush2.msra.mxu0 0.0
    %1634 = vmatprep.subr.mxu0 0.0
    %1635 = vmatpush2.msra.mxu0 0.0
    %1636 = vmatprep.subr.mxu0 0.0
    %1637 = vmatpush2.msra.mxu0 0.0
    %1638 = vmatprep.subr.mxu0 0.0
    %1639 = vmatpush2.msra.mxu0 0.0
    %1640 = vmatprep.subr.mxu0 0.0
    %1641 = vmatpush2.msra.mxu0 0.0
    %1642 = vmatprep.subr.mxu0 0.0
    %1643 = vmatpush2.msra.mxu0 0.0
    %1644 = vmatprep.subr.mxu0 0.0
    %1645 = vmatpush2.msra.mxu0 0.0
    %1646 = vmatprep.subr.mxu0 0.0
    %1647 = vmatpush2.msra.mxu0 0.0
    %1648 = vmatprep.subr.mxu0 0.0
    %1649 = vmatpush2.msra.mxu0 0.0
    %1650 = vmatprep.subr.mxu0 0.0
    %1651 = vmatpush2.msra.mxu0 0.0
    %1652 = vmatprep.subr.mxu0 0.0
    %1653 = vmatpush2.msra.mxu0 0.0
    %1654 = vmatprep.subr.mxu0 0.0
    %1655 = vmatpush2.msra.mxu0 0.0
    %1656 = vmatprep.subr.mxu0 0.0
    %1657 = vmatpush2.msra.mxu0 0.0
    %1658 = vmatprep.subr.mxu0 0.0
    %1659 = vmatpush2.msra.mxu0 0.0
    %1660 = vmatprep.mubr.f32.mxu0 0.0
    %1661 = vmatmul.mubr.f32.gmra.mxu0 %v416
    %v1662 = vpop.f32.mrf.mxu0
    %v1663 = vadd.f32 0.0, %v1662
    %v1664 = vpop.f32.mrf.mxu0
    %1665 = vmatprep.mubr.f32.mxu0 0.0
    %1666 = vmatmul.mubr.f32.gmra.mxu0 %v419
    %v1667 = vpop.f32.mrf.mxu0
    %v1668 = vadd.f32 0.0, %v1667
    %v1669 = vpop.f32.mrf.mxu0
    %1670 = vdwg.mxu0
    %v1671 = vld [vmem:[%s31] sm:$0xff]
    %v1672 = vld [vmem:[%s31 + $0x8] sm:$0xff]
    %v1673 = vld [vmem:[%s31 + $0x10] sm:$0xff]
    %v1674 = vld [vmem:[%s31 + $0x18] sm:$0xff]
    %v1675 = vld [vmem:[#allocation15] sm:$0x1]
    %v1677 = vlaneseq
    %v1678 = vshrl.u32 %v1677, 7
    %v1679 = vsub.s32 0, %v1678
    %v1680 = vrot.slane %v1675, %v1679
    %v1683 = vsel %vm496, %v1663, 0
    %v1686 = vsel %vm496, %v1668, 0
    %1688 = vmatprep.subr.mxu0 0.0
    %1689 = vmatpush1.msra.mxu0 0.0
    %1690 = vmatprep.subr.mxu0 0.0
    %1691 = vmatpush1.msra.mxu0 0.0
    %1692 = vmatprep.subr.mxu0 0.0
    %1693 = vmatpush1.msra.mxu0 0.0
    %1694 = vmatprep.subr.mxu0 0.0
    %1695 = vmatpush1.msra.mxu0 0.0
    %1696 = vmatprep.subr.mxu0 0.0
    %1697 = vmatpush1.msra.mxu0 0.0
    %1698 = vmatprep.subr.mxu0 0.0
    %1699 = vmatpush1.msra.mxu0 0.0
    %1700 = vmatprep.subr.mxu0 0.0
    %1701 = vmatpush1.msra.mxu0 0.0
    %1702 = vmatprep.subr.mxu0 0.0
    %1703 = vmatpush1.msra.mxu0 0.0
    %1704 = vmatprep.subr.mxu0 0.0
    %1705 = vmatpush1.msra.mxu0 0.0
    %1706 = vmatprep.subr.mxu0 0.0
    %1707 = vmatpush1.msra.mxu0 0.0
    %1708 = vmatprep.subr.mxu0 0.0
    %1709 = vmatpush1.msra.mxu0 0.0
    %1710 = vmatprep.subr.mxu0 0.0
    %1711 = vmatpush1.msra.mxu0 0.0
    %1712 = vmatprep.subr.mxu0 0.0
    %1713 = vmatpush1.msra.mxu0 %v1674
    %1714 = vmatprep.subr.mxu0 0.0
    %1715 = vmatpush1.msra.mxu0 %v1673
    %1716 = vmatprep.subr.mxu0 0.0
    %1717 = vmatpush1.msra.mxu0 %v1672
    %1718 = vmatprep.subr.mxu0 0.0
    %1719 = vmatpush1.msra.mxu0 %v1671
    %1720 = vmatprep.subr.mxu0 0.0
    %1721 = vmatpush2.msra.mxu0 0.0
    %1722 = vmatprep.subr.mxu0 0.0
    %1723 = vmatpush2.msra.mxu0 0.0
    %1724 = vmatprep.subr.mxu0 0.0
    %1725 = vmatpush2.msra.mxu0 0.0
    %1726 = vmatprep.subr.mxu0 0.0
    %1727 = vmatpush2.msra.mxu0 0.0
    %1728 = vmatprep.subr.mxu0 0.0
    %1729 = vmatpush2.msra.mxu0 0.0
    %1730 = vmatprep.subr.mxu0 0.0
    %1731 = vmatpush2.msra.mxu0 0.0
    %1732 = vmatprep.subr.mxu0 0.0
    %1733 = vmatpush2.msra.mxu0 0.0
    %1734 = vmatprep.subr.mxu0 0.0
    %1735 = vmatpush2.msra.mxu0 0.0
    %1736 = vmatprep.subr.mxu0 0.0
    %1737 = vmatpush2.msra.mxu0 0.0
    %1738 = vmatprep.subr.mxu0 0.0
    %1739 = vmatpush2.msra.mxu0 0.0
    %1740 = vmatprep.subr.mxu0 0.0
    %1741 = vmatpush2.msra.mxu0 0.0
    %1742 = vmatprep.subr.mxu0 0.0
    %1743 = vmatpush2.msra.mxu0 0.0
    %1744 = vmatprep.subr.mxu0 0.0
    %1745 = vmatpush2.msra.mxu0 0.0
    %1746 = vmatprep.subr.mxu0 0.0
    %1747 = vmatpush2.msra.mxu0 0.0
    %1748 = vmatprep.subr.mxu0 0.0
    %1749 = vmatpush2.msra.mxu0 0.0
    %1750 = vmatprep.subr.mxu0 0.0
    %1751 = vmatpush2.msra.mxu0 0.0
    %1752 = vmatprep.mubr.f32.mxu0 0.0
    %1753 = vmatmul.mubr.f32.gmra.mxu0 %v1683
    %v1754 = vpop.f32.mrf.mxu0
    %v1755 = vadd.f32 %v1680, %v1754
    %v1756 = vpop.f32.mrf.mxu0
    %1757 = vmatprep.mubr.f32.mxu0 0.0
    %1758 = vmatmul.mubr.f32.gmra.mxu0 %v1686
    %v1759 = vpop.f32.mrf.mxu0
    %v1760 = vadd.f32 %v1680, %v1759
    %v1761 = vpop.f32.mrf.mxu0
    %1762 = vdwg.mxu0
    %v1763 = vld [vmem:[%s35] sm:$0xff]
    %v1764 = vld [vmem:[%s35 + $0x8] sm:$0xff]
    %v1765 = vld [vmem:[%s35 + $0x10] sm:$0xff]
    %v1766 = vld [vmem:[%s35 + $0x18] sm:$0xff]
    %v1767 = vld [vmem:[#allocation5] sm:$0x1]
    %v1769 = vlaneseq
    %v1770 = vshrl.u32 %v1769, 7
    %v1771 = vsub.s32 0, %v1770
    %v1772 = vrot.slane %v1767, %v1771
    %v1775 = vsel %vm496, %v1755, 0
    %v1778 = vsel %vm496, %v1760, 0
    %1780 = vmatprep.subr.mxu0 0.0
    %1781 = vmatpush1.msra.mxu0 0.0
    %1782 = vmatprep.subr.mxu0 0.0
    %1783 = vmatpush1.msra.mxu0 0.0
    %1784 = vmatprep.subr.mxu0 0.0
    %1785 = vmatpush1.msra.mxu0 0.0
    %1786 = vmatprep.subr.mxu0 0.0
    %1787 = vmatpush1.msra.mxu0 0.0
    %1788 = vmatprep.subr.mxu0 0.0
    %1789 = vmatpush1.msra.mxu0 0.0
    %1790 = vmatprep.subr.mxu0 0.0
    %1791 = vmatpush1.msra.mxu0 0.0
    %1792 = vmatprep.subr.mxu0 0.0
    %1793 = vmatpush1.msra.mxu0 0.0
    %1794 = vmatprep.subr.mxu0 0.0
    %1795 = vmatpush1.msra.mxu0 0.0
    %1796 = vmatprep.subr.mxu0 0.0
    %1797 = vmatpush1.msra.mxu0 0.0
    %1798 = vmatprep.subr.mxu0 0.0
    %1799 = vmatpush1.msra.mxu0 0.0
    %1800 = vmatprep.subr.mxu0 0.0
    %1801 = vmatpush1.msra.mxu0 0.0
    %1802 = vmatprep.subr.mxu0 0.0
    %1803 = vmatpush1.msra.mxu0 0.0
    %1804 = vmatprep.subr.mxu0 0.0
    %1805 = vmatpush1.msra.mxu0 %v1766
    %1806 = vmatprep.subr.mxu0 0.0
    %1807 = vmatpush1.msra.mxu0 %v1765
    %1808 = vmatprep.subr.mxu0 0.0
    %1809 = vmatpush1.msra.mxu0 %v1764
    %1810 = vmatprep.subr.mxu0 0.0
    %1811 = vmatpush1.msra.mxu0 %v1763
    %1812 = vmatprep.subr.mxu0 0.0
    %1813 = vmatpush2.msra.mxu0 0.0
    %1814 = vmatprep.subr.mxu0 0.0
    %1815 = vmatpush2.msra.mxu0 0.0
    %1816 = vmatprep.subr.mxu0 0.0
    %1817 = vmatpush2.msra.mxu0 0.0
    %1818 = vmatprep.subr.mxu0 0.0
    %1819 = vmatpush2.msra.mxu0 0.0
    %1820 = vmatprep.subr.mxu0 0.0
    %1821 = vmatpush2.msra.mxu0 0.0
    %1822 = vmatprep.subr.mxu0 0.0
    %1823 = vmatpush2.msra.mxu0 0.0
    %1824 = vmatprep.subr.mxu0 0.0
    %1825 = vmatpush2.msra.mxu0 0.0
    %1826 = vmatprep.subr.mxu0 0.0
    %1827 = vmatpush2.msra.mxu0 0.0
    %1828 = vmatprep.subr.mxu0 0.0
    %1829 = vmatpush2.msra.mxu0 0.0
    %1830 = vmatprep.subr.mxu0 0.0
    %1831 = vmatpush2.msra.mxu0 0.0
    %1832 = vmatprep.subr.mxu0 0.0
    %1833 = vmatpush2.msra.mxu0 0.0
    %1834 = vmatprep.subr.mxu0 0.0
    %1835 = vmatpush2.msra.mxu0 0.0
    %1836 = vmatprep.subr.mxu0 0.0
    %1837 = vmatpush2.msra.mxu0 0.0
    %1838 = vmatprep.subr.mxu0 0.0
    %1839 = vmatpush2.msra.mxu0 0.0
    %1840 = vmatprep.subr.mxu0 0.0
    %1841 = vmatpush2.msra.mxu0 0.0
    %1842 = vmatprep.subr.mxu0 0.0
    %1843 = vmatpush2.msra.mxu0 0.0
    %1844 = vmatprep.mubr.f32.mxu0 0.0
    %1845 = vmatmul.mubr.f32.gmra.mxu0 %v1775
    %v1846 = vpop.f32.mrf.mxu0
    %v1847 = vadd.f32 %v1772, %v1846
    %v1848 = vpop.f32.mrf.mxu0
    %1849 = vmatprep.mubr.f32.mxu0 0.0
    %1850 = vmatmul.mubr.f32.gmra.mxu0 %v1778
    %v1851 = vpop.f32.mrf.mxu0
    %v1852 = vadd.f32 %v1772, %v1851
    %v1853 = vpop.f32.mrf.mxu0
    %1854 = vdwg.mxu0
    %v1855 = vmul.f32 %v1847, %v767
    %v1856 = vmul.f32 %v1852, %v767
    %v1857 = vxor.u32 %v1855, 2147483648
    %v1858 = vxor.u32 %v1856, 2147483648
    %v1859 = vmul.f32 %v1857, 1.442695
    %v1860 = vpow.pop %v1859
    %v1861 = vmul.f32 %v1858, 1.442695
    %v1862 = vpow.pop %v1861
    %v1863 = vadd.f32 %v1860, 1.0
    %v1864 = vadd.f32 %v1862, 1.0
    %v1865 = vrcp.pop %v1863
    %v1866 = vmul.f32 1.0, %v1865
    %v1867 = vrcp.pop %v1864
    %v1868 = vmul.f32 1.0, %v1867
    %vm1869 = vcmp.gt.f32.partialorder %v1580, 0.0
    %vm1870 = vcmp.gt.f32.partialorder %v1581, 0.0
    %v1871 = vsel %vm1869, %v1866, -1e+30
    %v1872 = vsel %vm1870, %v1868, -1e+30
    %1873 = vxpose.xlu0.b32.start [1/16] %v1871, 128
    %1874 = vxpose.xlu0.b32.cont [2/16] %v1872, 128
    %1875 = vxpose.xlu0.b32.cont [3/16] 0.0, 128
    %1876 = vxpose.xlu0.b32.cont [4/16] 0.0, 128
    %1877 = vxpose.xlu0.b32.cont [5/16] 0.0, 128
    %1878 = vxpose.xlu0.b32.cont [6/16] 0.0, 128
    %1879 = vxpose.xlu0.b32.cont [7/16] 0.0, 128
    %1880 = vxpose.xlu0.b32.cont [8/16] 0.0, 128
    %1881 = vxpose.xlu0.b32.cont [9/16] 0.0, 128
    %1882 = vxpose.xlu0.b32.cont [10/16] 0.0, 128
    %1883 = vxpose.xlu0.b32.cont [11/16] 0.0, 128
    %1884 = vxpose.xlu0.b32.cont [12/16] 0.0, 128
    %1885 = vxpose.xlu0.b32.cont [13/16] 0.0, 128
    %1886 = vxpose.xlu0.b32.cont [14/16] 0.0, 128
    %1887 = vxpose.xlu0.b32.cont [15/16] 0.0, 128
    %1888 = vxpose.xlu0.b32.end [16/16] 0.0, 128
    %v1889 = vpop.trf.xlu0
    %v1890 = vpop.trf.xlu0
    %v1891 = vpop.trf.xlu0
    %v1892 = vpop.trf.xlu0
    %v1893 = vpop.trf.xlu0
    %v1894 = vpop.trf.xlu0
    %v1895 = vpop.trf.xlu0
    %v1896 = vpop.trf.xlu0
    %v1897 = vpop.trf.xlu0
    %v1898 = vpop.trf.xlu0
    %v1899 = vpop.trf.xlu0
    %v1900 = vpop.trf.xlu0
    %v1901 = vpop.trf.xlu0
    %v1902 = vpop.trf.xlu0
    %v1903 = vpop.trf.xlu0
    %v1904 = vpop.trf.xlu0
    %v1905 = vlaneseq
    %v1906 = vshrl.u32 %v1905, 7
    %v1907 = vsub.s32 0, %v1906
    %v1908 = vrot.slane %v1889, %v1907
    %1910 = vset.pattern.permute.xlu0 0
    %1911 = vperm.xlu0 %1910, %v1871
    %v1912 = vpop.permute.xlu0 %1911
    %1915 = vset.pattern.permute.xlu0 0
    %1916 = vperm.xlu0 %1915, %v1872
    %v1917 = vpop.permute.xlu0 %1916
    %vm1919 = vcmp.gt.f32.partialorder %v1908, %v1912
    %vm1920 = vcmp.gt.f32.partialorder %v1908, %v1917
    %vm1921 = vcmp.eq.f32.partialorder %v1908, %v1912
    %vm1922 = vcmp.eq.f32.partialorder %v1908, %v1917
    %vm1923 = vmand %vm1921, %vm838
    %vm1924 = vmand %vm1922, %vm839
    %vm1925 = vmor %vm1919, %vm1923
    %vm1926 = vmor %vm1920, %vm1924
    %v1927 = vsel %vm1925, 1, 0
    %v1928 = vsel %vm1926, 1, 0
    %v1929 = vcvt.s32.f32 %v1927
    %v1930 = vcvt.s32.f32 %v1928
    %v1931 = vsel %vm349, %v1929, 0.0
    %1932 = vadd.xlane.f32.xlu0 %v1931
    %v1933 = vpop.xlane.xlu0 %1932
    %v1934 = vsel %vm349, %v1930, 0.0
    %1935 = vadd.xlane.f32.xlu0 %v1934
    %v1936 = vpop.xlane.xlu0 %1935
    %vm1937 = vcmp.lt.f32.partialorder %v1933, 2.0
    %vm1938 = vcmp.lt.f32.partialorder %v1936, 2.0
    %v1939 = vsel %vm1937, 1, 0
    %v1940 = vsel %vm1938, 1, 0
    %v1941 = vcvt.s32.f32 %v1939
    %v1942 = vcvt.s32.f32 %v1940
    %v1943 = vmul.f32 %v1941, %v1866
    %v1944 = vmul.f32 %v1942, %v1868
    %1946 = vset.pattern.permute.xlu0 0
    %1947 = vperm.xlu0 %1946, %v1943
    %v1948 = vpop.permute.xlu0 %1947
    %1951 = vset.pattern.permute.xlu0 0
    %1952 = vperm.xlu0 %1951, %v1944
    %v1953 = vpop.permute.xlu0 %1952
    %v1955 = vmul.f32 %v1755, %v1948
    %v1956 = vmul.f32 %v1760, %v1953
    %1957 = vmatprep.subr.mxu0 0.0
    %1958 = vmatpush1.msra.mxu0 0.0
    %1959 = vmatprep.subr.mxu0 0.0
    %1960 = vmatpush1.msra.mxu0 0.0
    %1961 = vmatprep.subr.mxu0 0.0
    %1962 = vmatpush1.msra.mxu0 0.0
    %1963 = vmatprep.subr.mxu0 0.0
    %1964 = vmatpush1.msra.mxu0 0.0
    %1965 = vmatprep.subr.mxu0 0.0
    %1966 = vmatpush1.msra.mxu0 0.0
    %1967 = vmatprep.subr.mxu0 0.0
    %1968 = vmatpush1.msra.mxu0 0.0
    %1969 = vmatprep.subr.mxu0 0.0
    %1970 = vmatpush1.msra.mxu0 0.0
    %1971 = vmatprep.subr.mxu0 0.0
    %1972 = vmatpush1.msra.mxu0 0.0
    %1973 = vmatprep.subr.mxu0 0.0
    %1974 = vmatpush1.msra.mxu0 0.0
    %1975 = vmatprep.subr.mxu0 0.0
    %1976 = vmatpush1.msra.mxu0 0.0
    %1977 = vmatprep.subr.mxu0 0.0
    %1978 = vmatpush1.msra.mxu0 0.0
    %1979 = vmatprep.subr.mxu0 0.0
    %1980 = vmatpush1.msra.mxu0 0.0
    %1981 = vmatprep.subr.mxu0 0.0
    %1982 = vmatpush1.msra.mxu0 0.0
    %1983 = vmatprep.subr.mxu0 0.0
    %1984 = vmatpush1.msra.mxu0 0.0
    %1985 = vmatprep.subr.mxu0 0.0
    %1986 = vmatpush1.msra.mxu0 %v1956
    %1987 = vmatprep.subr.mxu0 0.0
    %1988 = vmatpush1.msra.mxu0 %v1955
    %1989 = vmatprep.subr.mxu0 0.0
    %1990 = vmatpush2.msra.mxu0 0.0
    %1991 = vmatprep.subr.mxu0 0.0
    %1992 = vmatpush2.msra.mxu0 0.0
    %1993 = vmatprep.subr.mxu0 0.0
    %1994 = vmatpush2.msra.mxu0 0.0
    %1995 = vmatprep.subr.mxu0 0.0
    %1996 = vmatpush2.msra.mxu0 0.0
    %1997 = vmatprep.subr.mxu0 0.0
    %1998 = vmatpush2.msra.mxu0 0.0
    %1999 = vmatprep.subr.mxu0 0.0
    %2000 = vmatpush2.msra.mxu0 0.0
    %2001 = vmatprep.subr.mxu0 0.0
    %2002 = vmatpush2.msra.mxu0 0.0
    %2003 = vmatprep.subr.mxu0 0.0
    %2004 = vmatpush2.msra.mxu0 0.0
    %2005 = vmatprep.subr.mxu0 0.0
    %2006 = vmatpush2.msra.mxu0 0.0
    %2007 = vmatprep.subr.mxu0 0.0
    %2008 = vmatpush2.msra.mxu0 0.0
    %2009 = vmatprep.subr.mxu0 0.0
    %2010 = vmatpush2.msra.mxu0 0.0
    %2011 = vmatprep.subr.mxu0 0.0
    %2012 = vmatpush2.msra.mxu0 0.0
    %2013 = vmatprep.subr.mxu0 0.0
    %2014 = vmatpush2.msra.mxu0 0.0
    %2015 = vmatprep.subr.mxu0 0.0
    %2016 = vmatpush2.msra.mxu0 0.0
    %2017 = vmatprep.subr.mxu0 0.0
    %2018 = vmatpush2.msra.mxu0 0.0
    %2019 = vmatprep.subr.mxu0 0.0
    %2020 = vmatpush2.msra.mxu0 0.0
    %2021 = vmatprep.mubr.f32.mxu0 0.0
    %2022 = vmatmul.mubr.f32.gmra.mxu0 %v416
    %v2023 = vpop.f32.mrf.mxu0
    %v2024 = vadd.f32 0.0, %v2023
    %v2025 = vpop.f32.mrf.mxu0
    %2026 = vmatprep.mubr.f32.mxu0 0.0
    %2027 = vmatmul.mubr.f32.gmra.mxu0 %v419
    %v2028 = vpop.f32.mrf.mxu0
    %v2029 = vadd.f32 0.0, %v2028
    %v2030 = vpop.f32.mrf.mxu0
    %2031 = vdwg.mxu0
    %v2032 = vld [vmem:[#allocation17] sm:$0xff]
    %v2033 = vld [vmem:[#allocation17 + $0x8] sm:$0xff]
    %v2034 = vld [vmem:[#allocation17 + $0x10] sm:$0xff]
    %v2035 = vld [vmem:[#allocation17 + $0x18] sm:$0xff]
    %v2036 = vld [vmem:[#allocation18] sm:$0x1]
    %v2038 = vlaneseq
    %v2039 = vshrl.u32 %v2038, 7
    %v2040 = vsub.s32 0, %v2039
    %v2041 = vrot.slane %v2036, %v2040
    %v2044 = vsel %vm496, %v2024, 0
    %v2047 = vsel %vm496, %v2029, 0
    %2049 = vmatprep.subr.mxu0 0.0
    %2050 = vmatpush1.msra.mxu0 0.0
    %2051 = vmatprep.subr.mxu0 0.0
    %2052 = vmatpush1.msra.mxu0 0.0
    %2053 = vmatprep.subr.mxu0 0.0
    %2054 = vmatpush1.msra.mxu0 0.0
    %2055 = vmatprep.subr.mxu0 0.0
    %2056 = vmatpush1.msra.mxu0 0.0
    %2057 = vmatprep.subr.mxu0 0.0
    %2058 = vmatpush1.msra.mxu0 0.0
    %2059 = vmatprep.subr.mxu0 0.0
    %2060 = vmatpush1.msra.mxu0 0.0
    %2061 = vmatprep.subr.mxu0 0.0
    %2062 = vmatpush1.msra.mxu0 0.0
    %2063 = vmatprep.subr.mxu0 0.0
    %2064 = vmatpush1.msra.mxu0 0.0
    %2065 = vmatprep.subr.mxu0 0.0
    %2066 = vmatpush1.msra.mxu0 0.0
    %2067 = vmatprep.subr.mxu0 0.0
    %2068 = vmatpush1.msra.mxu0 0.0
    %2069 = vmatprep.subr.mxu0 0.0
    %2070 = vmatpush1.msra.mxu0 0.0
    %2071 = vmatprep.subr.mxu0 0.0
    %2072 = vmatpush1.msra.mxu0 0.0
    %2073 = vmatprep.subr.mxu0 0.0
    %2074 = vmatpush1.msra.mxu0 %v2035
    %2075 = vmatprep.subr.mxu0 0.0
    %2076 = vmatpush1.msra.mxu0 %v2034
    %2077 = vmatprep.subr.mxu0 0.0
    %2078 = vmatpush1.msra.mxu0 %v2033
    %2079 = vmatprep.subr.mxu0 0.0
    %2080 = vmatpush1.msra.mxu0 %v2032
    %2081 = vmatprep.subr.mxu0 0.0
    %2082 = vmatpush2.msra.mxu0 0.0
    %2083 = vmatprep.subr.mxu0 0.0
    %2084 = vmatpush2.msra.mxu0 0.0
    %2085 = vmatprep.subr.mxu0 0.0
    %2086 = vmatpush2.msra.mxu0 0.0
    %2087 = vmatprep.subr.mxu0 0.0
    %2088 = vmatpush2.msra.mxu0 0.0
    %2089 = vmatprep.subr.mxu0 0.0
    %2090 = vmatpush2.msra.mxu0 0.0
    %2091 = vmatprep.subr.mxu0 0.0
    %2092 = vmatpush2.msra.mxu0 0.0
    %2093 = vmatprep.subr.mxu0 0.0
    %2094 = vmatpush2.msra.mxu0 0.0
    %2095 = vmatprep.subr.mxu0 0.0
    %2096 = vmatpush2.msra.mxu0 0.0
    %2097 = vmatprep.subr.mxu0 0.0
    %2098 = vmatpush2.msra.mxu0 0.0
    %2099 = vmatprep.subr.mxu0 0.0
    %2100 = vmatpush2.msra.mxu0 0.0
    %2101 = vmatprep.subr.mxu0 0.0
    %2102 = vmatpush2.msra.mxu0 0.0
    %2103 = vmatprep.subr.mxu0 0.0
    %2104 = vmatpush2.msra.mxu0 0.0
    %2105 = vmatprep.subr.mxu0 0.0
    %2106 = vmatpush2.msra.mxu0 0.0
    %2107 = vmatprep.subr.mxu0 0.0
    %2108 = vmatpush2.msra.mxu0 0.0
    %2109 = vmatprep.subr.mxu0 0.0
    %2110 = vmatpush2.msra.mxu0 0.0
    %2111 = vmatprep.subr.mxu0 0.0
    %2112 = vmatpush2.msra.mxu0 0.0
    %2113 = vmatprep.mubr.f32.mxu0 0.0
    %2114 = vmatmul.mubr.f32.gmra.mxu0 %v2044
    %v2115 = vpop.f32.mrf.mxu0
    %v2116 = vadd.f32 %v2041, %v2115
    %v2117 = vpop.f32.mrf.mxu0
    %2118 = vmatprep.mubr.f32.mxu0 0.0
    %2119 = vmatmul.mubr.f32.gmra.mxu0 %v2047
    %v2120 = vpop.f32.mrf.mxu0
    %v2121 = vadd.f32 %v2041, %v2120
    %v2122 = vpop.f32.mrf.mxu0
    %2123 = vdwg.mxu0
    %v2124 = vmul.f32 %v2116, %v1941
    %v2125 = vmul.f32 %v2121, %v1942
    %2126 = vmatprep.subr.mxu0 0.0
    %2127 = vmatpush1.msra.mxu0 0.0
    %2128 = vmatprep.subr.mxu0 0.0
    %2129 = vmatpush1.msra.mxu0 0.0
    %2130 = vmatprep.subr.mxu0 0.0
    %2131 = vmatpush1.msra.mxu0 0.0
    %2132 = vmatprep.subr.mxu0 0.0
    %2133 = vmatpush1.msra.mxu0 0.0
    %2134 = vmatprep.subr.mxu0 0.0
    %2135 = vmatpush1.msra.mxu0 0.0
    %2136 = vmatprep.subr.mxu0 0.0
    %2137 = vmatpush1.msra.mxu0 0.0
    %2138 = vmatprep.subr.mxu0 0.0
    %2139 = vmatpush1.msra.mxu0 0.0
    %2140 = vmatprep.subr.mxu0 0.0
    %2141 = vmatpush1.msra.mxu0 0.0
    %2142 = vmatprep.subr.mxu0 0.0
    %2143 = vmatpush1.msra.mxu0 0.0
    %2144 = vmatprep.subr.mxu0 0.0
    %2145 = vmatpush1.msra.mxu0 0.0
    %2146 = vmatprep.subr.mxu0 0.0
    %2147 = vmatpush1.msra.mxu0 0.0
    %2148 = vmatprep.subr.mxu0 0.0
    %2149 = vmatpush1.msra.mxu0 0.0
    %2150 = vmatprep.subr.mxu0 0.0
    %2151 = vmatpush1.msra.mxu0 0.0
    %2152 = vmatprep.subr.mxu0 0.0
    %2153 = vmatpush1.msra.mxu0 0.0
    %2154 = vmatprep.subr.mxu0 0.0
    %2155 = vmatpush1.msra.mxu0 %v2125
    %2156 = vmatprep.subr.mxu0 0.0
    %2157 = vmatpush1.msra.mxu0 %v2124
    %2158 = vmatprep.subr.mxu0 0.0
    %2159 = vmatpush2.msra.mxu0 0.0
    %2160 = vmatprep.subr.mxu0 0.0
    %2161 = vmatpush2.msra.mxu0 0.0
    %2162 = vmatprep.subr.mxu0 0.0
    %2163 = vmatpush2.msra.mxu0 0.0
    %2164 = vmatprep.subr.mxu0 0.0
    %2165 = vmatpush2.msra.mxu0 0.0
    %2166 = vmatprep.subr.mxu0 0.0
    %2167 = vmatpush2.msra.mxu0 0.0
    %2168 = vmatprep.subr.mxu0 0.0
    %2169 = vmatpush2.msra.mxu0 0.0
    %2170 = vmatprep.subr.mxu0 0.0
    %2171 = vmatpush2.msra.mxu0 0.0
    %2172 = vmatprep.subr.mxu0 0.0
    %2173 = vmatpush2.msra.mxu0 0.0
    %2174 = vmatprep.subr.mxu0 0.0
    %2175 = vmatpush2.msra.mxu0 0.0
    %2176 = vmatprep.subr.mxu0 0.0
    %2177 = vmatpush2.msra.mxu0 0.0
    %2178 = vmatprep.subr.mxu0 0.0
    %2179 = vmatpush2.msra.mxu0 0.0
    %2180 = vmatprep.subr.mxu0 0.0
    %2181 = vmatpush2.msra.mxu0 0.0
    %2182 = vmatprep.subr.mxu0 0.0
    %2183 = vmatpush2.msra.mxu0 0.0
    %2184 = vmatprep.subr.mxu0 0.0
    %2185 = vmatpush2.msra.mxu0 0.0
    %2186 = vmatprep.subr.mxu0 0.0
    %2187 = vmatpush2.msra.mxu0 0.0
    %2188 = vmatprep.subr.mxu0 0.0
    %2189 = vmatpush2.msra.mxu0 0.0
    %2190 = vmatprep.mubr.f32.mxu0 0.0
    %2191 = vmatmul.mubr.f32.gmra.mxu0 %v416
    %v2192 = vpop.f32.mrf.mxu0
    %v2193 = vadd.f32 0.0, %v2192
    %v2194 = vpop.f32.mrf.mxu0
    %2195 = vmatprep.mubr.f32.mxu0 0.0
    %2196 = vmatmul.mubr.f32.gmra.mxu0 %v419
    %v2197 = vpop.f32.mrf.mxu0
    %v2198 = vadd.f32 0.0, %v2197
    %v2199 = vpop.f32.mrf.mxu0
    %2200 = vdwg.mxu0
    %v2201 = vld [vmem:[%s43] sm:$0xff]
    %v2202 = vld [vmem:[%s43 + $0x8] sm:$0xff]
    %v2203 = vld [vmem:[%s43 + $0x10] sm:$0xff]
    %v2204 = vld [vmem:[%s43 + $0x18] sm:$0xff]
    %v2205 = vld [vmem:[%s45] sm:$0x1]
    %v2207 = vlaneseq
    %v2208 = vshrl.u32 %v2207, 7
    %v2209 = vsub.s32 0, %v2208
    %v2210 = vrot.slane %v2205, %v2209
    %v2213 = vsel %vm496, %v2193, 0
    %v2216 = vsel %vm496, %v2198, 0
    %2218 = vmatprep.subr.mxu0 0.0
    %2219 = vmatpush1.msra.mxu0 0.0
    %2220 = vmatprep.subr.mxu0 0.0
    %2221 = vmatpush1.msra.mxu0 0.0
    %2222 = vmatprep.subr.mxu0 0.0
    %2223 = vmatpush1.msra.mxu0 0.0
    %2224 = vmatprep.subr.mxu0 0.0
    %2225 = vmatpush1.msra.mxu0 0.0
    %2226 = vmatprep.subr.mxu0 0.0
    %2227 = vmatpush1.msra.mxu0 0.0
    %2228 = vmatprep.subr.mxu0 0.0
    %2229 = vmatpush1.msra.mxu0 0.0
    %2230 = vmatprep.subr.mxu0 0.0
    %2231 = vmatpush1.msra.mxu0 0.0
    %2232 = vmatprep.subr.mxu0 0.0
    %2233 = vmatpush1.msra.mxu0 0.0
    %2234 = vmatprep.subr.mxu0 0.0
    %2235 = vmatpush1.msra.mxu0 0.0
    %2236 = vmatprep.subr.mxu0 0.0
    %2237 = vmatpush1.msra.mxu0 0.0
    %2238 = vmatprep.subr.mxu0 0.0
    %2239 = vmatpush1.msra.mxu0 0.0
    %2240 = vmatprep.subr.mxu0 0.0
    %2241 = vmatpush1.msra.mxu0 0.0
    %2242 = vmatprep.subr.mxu0 0.0
    %2243 = vmatpush1.msra.mxu0 %v2204
    %2244 = vmatprep.subr.mxu0 0.0
    %2245 = vmatpush1.msra.mxu0 %v2203
    %2246 = vmatprep.subr.mxu0 0.0
    %2247 = vmatpush1.msra.mxu0 %v2202
    %2248 = vmatprep.subr.mxu0 0.0
    %2249 = vmatpush1.msra.mxu0 %v2201
    %2250 = vmatprep.subr.mxu0 0.0
    %2251 = vmatpush2.msra.mxu0 0.0
    %2252 = vmatprep.subr.mxu0 0.0
    %2253 = vmatpush2.msra.mxu0 0.0
    %2254 = vmatprep.subr.mxu0 0.0
    %2255 = vmatpush2.msra.mxu0 0.0
    %2256 = vmatprep.subr.mxu0 0.0
    %2257 = vmatpush2.msra.mxu0 0.0
    %2258 = vmatprep.subr.mxu0 0.0
    %2259 = vmatpush2.msra.mxu0 0.0
    %2260 = vmatprep.subr.mxu0 0.0
    %2261 = vmatpush2.msra.mxu0 0.0
    %2262 = vmatprep.subr.mxu0 0.0
    %2263 = vmatpush2.msra.mxu0 0.0
    %2264 = vmatprep.subr.mxu0 0.0
    %2265 = vmatpush2.msra.mxu0 0.0
    %2266 = vmatprep.subr.mxu0 0.0
    %2267 = vmatpush2.msra.mxu0 0.0
    %2268 = vmatprep.subr.mxu0 0.0
    %2269 = vmatpush2.msra.mxu0 0.0
    %2270 = vmatprep.subr.mxu0 0.0
    %2271 = vmatpush2.msra.mxu0 0.0
    %2272 = vmatprep.subr.mxu0 0.0
    %2273 = vmatpush2.msra.mxu0 0.0
    %2274 = vmatprep.subr.mxu0 0.0
    %2275 = vmatpush2.msra.mxu0 0.0
    %2276 = vmatprep.subr.mxu0 0.0
    %2277 = vmatpush2.msra.mxu0 0.0
    %2278 = vmatprep.subr.mxu0 0.0
    %2279 = vmatpush2.msra.mxu0 0.0
    %2280 = vmatprep.subr.mxu0 0.0
    %2281 = vmatpush2.msra.mxu0 0.0
    %2282 = vmatprep.mubr.f32.mxu0 0.0
    %2283 = vmatmul.mubr.f32.gmra.mxu0 %v2213
    %v2284 = vpop.f32.mrf.mxu0
    %v2285 = vadd.f32 %v2210, %v2284
    %v2286 = vpop.f32.mrf.mxu0
    %2287 = vmatprep.mubr.f32.mxu0 0.0
    %2288 = vmatmul.mubr.f32.gmra.mxu0 %v2216
    %v2289 = vpop.f32.mrf.mxu0
    %v2290 = vadd.f32 %v2210, %v2289
    %v2291 = vpop.f32.mrf.mxu0
    %2292 = vdwg.mxu0
    %v2293 = vadd.f32 %v2285, %v1755
    %v2294 = vadd.f32 %v2290, %v1760
    %v2295 = vmul.f32 %v2293, %v1580
    %v2296 = vmul.f32 %v2294, %v1581
    %2297 = vmatprep.subr.mxu0 0.0
    %2298 = vmatpush1.msra.mxu0 0.0
    %2299 = vmatprep.subr.mxu0 0.0
    %2300 = vmatpush1.msra.mxu0 0.0
    %2301 = vmatprep.subr.mxu0 0.0
    %2302 = vmatpush1.msra.mxu0 0.0
    %2303 = vmatprep.subr.mxu0 0.0
    %2304 = vmatpush1.msra.mxu0 0.0
    %2305 = vmatprep.subr.mxu0 0.0
    %2306 = vmatpush1.msra.mxu0 0.0
    %2307 = vmatprep.subr.mxu0 0.0
    %2308 = vmatpush1.msra.mxu0 0.0
    %2309 = vmatprep.subr.mxu0 0.0
    %2310 = vmatpush1.msra.mxu0 0.0
    %2311 = vmatprep.subr.mxu0 0.0
    %2312 = vmatpush1.msra.mxu0 0.0
    %2313 = vmatprep.subr.mxu0 0.0
    %2314 = vmatpush1.msra.mxu0 0.0
    %2315 = vmatprep.subr.mxu0 0.0
    %2316 = vmatpush1.msra.mxu0 0.0
    %2317 = vmatprep.subr.mxu0 0.0
    %2318 = vmatpush1.msra.mxu0 0.0
    %2319 = vmatprep.subr.mxu0 0.0
    %2320 = vmatpush1.msra.mxu0 0.0
    %2321 = vmatprep.subr.mxu0 0.0
    %2322 = vmatpush1.msra.mxu0 0.0
    %2323 = vmatprep.subr.mxu0 0.0
    %2324 = vmatpush1.msra.mxu0 0.0
    %2325 = vmatprep.subr.mxu0 0.0
    %2326 = vmatpush1.msra.mxu0 %v2296
    %2327 = vmatprep.subr.mxu0 0.0
    %2328 = vmatpush1.msra.mxu0 %v2295
    %2329 = vmatprep.subr.mxu0 0.0
    %2330 = vmatpush2.msra.mxu0 0.0
    %2331 = vmatprep.subr.mxu0 0.0
    %2332 = vmatpush2.msra.mxu0 0.0
    %2333 = vmatprep.subr.mxu0 0.0
    %2334 = vmatpush2.msra.mxu0 0.0
    %2335 = vmatprep.subr.mxu0 0.0
    %2336 = vmatpush2.msra.mxu0 0.0
    %2337 = vmatprep.subr.mxu0 0.0
    %2338 = vmatpush2.msra.mxu0 0.0
    %2339 = vmatprep.subr.mxu0 0.0
    %2340 = vmatpush2.msra.mxu0 0.0
    %2341 = vmatprep.subr.mxu0 0.0
    %2342 = vmatpush2.msra.mxu0 0.0
    %2343 = vmatprep.subr.mxu0 0.0
    %2344 = vmatpush2.msra.mxu0 0.0
    %2345 = vmatprep.subr.mxu0 0.0
    %2346 = vmatpush2.msra.mxu0 0.0
    %2347 = vmatprep.subr.mxu0 0.0
    %2348 = vmatpush2.msra.mxu0 0.0
    %2349 = vmatprep.subr.mxu0 0.0
    %2350 = vmatpush2.msra.mxu0 0.0
    %2351 = vmatprep.subr.mxu0 0.0
    %2352 = vmatpush2.msra.mxu0 0.0
    %2353 = vmatprep.subr.mxu0 0.0
    %2354 = vmatpush2.msra.mxu0 0.0
    %2355 = vmatprep.subr.mxu0 0.0
    %2356 = vmatpush2.msra.mxu0 0.0
    %2357 = vmatprep.subr.mxu0 0.0
    %2358 = vmatpush2.msra.mxu0 0.0
    %2359 = vmatprep.subr.mxu0 0.0
    %2360 = vmatpush2.msra.mxu0 0.0
    %2361 = vmatprep.mubr.f32.mxu0 0.0
    %2362 = vmatmul.mubr.f32.gmra.mxu0 %v416
    %v2363 = vpop.f32.mrf.mxu0
    %v2364 = vadd.f32 0.0, %v2363
    %v2365 = vpop.f32.mrf.mxu0
    %2366 = vmatprep.mubr.f32.mxu0 0.0
    %2367 = vmatmul.mubr.f32.gmra.mxu0 %v419
    %v2368 = vpop.f32.mrf.mxu0
    %v2369 = vadd.f32 0.0, %v2368
    %v2370 = vpop.f32.mrf.mxu0
    %2371 = vdwg.mxu0
    %v2372 = vld [vmem:[#allocation20] sm:$0xff]
    %v2373 = vld [vmem:[#allocation20 + $0x8] sm:$0xff]
    %v2374 = vld [vmem:[#allocation20 + $0x10] sm:$0xff]
    %v2375 = vld [vmem:[#allocation20 + $0x18] sm:$0xff]
    %v2376 = vld [vmem:[#allocation21] sm:$0x1]
    %v2378 = vlaneseq
    %v2379 = vshrl.u32 %v2378, 7
    %v2380 = vsub.s32 0, %v2379
    %v2381 = vrot.slane %v2376, %v2380
    %v2384 = vsel %vm496, %v2364, 0
    %v2387 = vsel %vm496, %v2369, 0
    %2389 = vmatprep.subr.mxu0 0.0
    %2390 = vmatpush1.msra.mxu0 0.0
    %2391 = vmatprep.subr.mxu0 0.0
    %2392 = vmatpush1.msra.mxu0 0.0
    %2393 = vmatprep.subr.mxu0 0.0
    %2394 = vmatpush1.msra.mxu0 0.0
    %2395 = vmatprep.subr.mxu0 0.0
    %2396 = vmatpush1.msra.mxu0 0.0
    %2397 = vmatprep.subr.mxu0 0.0
    %2398 = vmatpush1.msra.mxu0 0.0
    %2399 = vmatprep.subr.mxu0 0.0
    %2400 = vmatpush1.msra.mxu0 0.0
    %2401 = vmatprep.subr.mxu0 0.0
    %2402 = vmatpush1.msra.mxu0 0.0
    %2403 = vmatprep.subr.mxu0 0.0
    %2404 = vmatpush1.msra.mxu0 0.0
    %2405 = vmatprep.subr.mxu0 0.0
    %2406 = vmatpush1.msra.mxu0 0.0
    %2407 = vmatprep.subr.mxu0 0.0
    %2408 = vmatpush1.msra.mxu0 0.0
    %2409 = vmatprep.subr.mxu0 0.0
    %2410 = vmatpush1.msra.mxu0 0.0
    %2411 = vmatprep.subr.mxu0 0.0
    %2412 = vmatpush1.msra.mxu0 0.0
    %2413 = vmatprep.subr.mxu0 0.0
    %2414 = vmatpush1.msra.mxu0 %v2375
    %2415 = vmatprep.subr.mxu0 0.0
    %2416 = vmatpush1.msra.mxu0 %v2374
    %2417 = vmatprep.subr.mxu0 0.0
    %2418 = vmatpush1.msra.mxu0 %v2373
    %2419 = vmatprep.subr.mxu0 0.0
    %2420 = vmatpush1.msra.mxu0 %v2372
    %2421 = vmatprep.subr.mxu0 0.0
    %2422 = vmatpush2.msra.mxu0 0.0
    %2423 = vmatprep.subr.mxu0 0.0
    %2424 = vmatpush2.msra.mxu0 0.0
    %2425 = vmatprep.subr.mxu0 0.0
    %2426 = vmatpush2.msra.mxu0 0.0
    %2427 = vmatprep.subr.mxu0 0.0
    %2428 = vmatpush2.msra.mxu0 0.0
    %2429 = vmatprep.subr.mxu0 0.0
    %2430 = vmatpush2.msra.mxu0 0.0
    %2431 = vmatprep.subr.mxu0 0.0
    %2432 = vmatpush2.msra.mxu0 0.0
    %2433 = vmatprep.subr.mxu0 0.0
    %2434 = vmatpush2.msra.mxu0 0.0
    %2435 = vmatprep.subr.mxu0 0.0
    %2436 = vmatpush2.msra.mxu0 0.0
    %2437 = vmatprep.subr.mxu0 0.0
    %2438 = vmatpush2.msra.mxu0 0.0
    %2439 = vmatprep.subr.mxu0 0.0
    %2440 = vmatpush2.msra.mxu0 0.0
    %2441 = vmatprep.subr.mxu0 0.0
    %2442 = vmatpush2.msra.mxu0 0.0
    %2443 = vmatprep.subr.mxu0 0.0
    %2444 = vmatpush2.msra.mxu0 0.0
    %2445 = vmatprep.subr.mxu0 0.0
    %2446 = vmatpush2.msra.mxu0 0.0
    %2447 = vmatprep.subr.mxu0 0.0
    %2448 = vmatpush2.msra.mxu0 0.0
    %2449 = vmatprep.subr.mxu0 0.0
    %2450 = vmatpush2.msra.mxu0 0.0
    %2451 = vmatprep.subr.mxu0 0.0
    %2452 = vmatpush2.msra.mxu0 0.0
    %2453 = vmatprep.mubr.f32.mxu0 0.0
    %2454 = vmatmul.mubr.f32.gmra.mxu0 %v2384
    %v2455 = vpop.f32.mrf.mxu0
    %v2456 = vadd.f32 %v2381, %v2455
    %v2457 = vpop.f32.mrf.mxu0
    %2458 = vmatprep.mubr.f32.mxu0 0.0
    %2459 = vmatmul.mubr.f32.gmra.mxu0 %v2387
    %v2460 = vpop.f32.mrf.mxu0
    %v2461 = vadd.f32 %v2381, %v2460
    %v2462 = vpop.f32.mrf.mxu0
    %2463 = vdwg.mxu0
    %v2464 = vadd.f32 %v2456, %v1394
    %v2465 = vadd.f32 %v2461, %v1399
    %v2466 = vmul.f32 %v2464, %v1219
    %v2467 = vmul.f32 %v2465, %v1220
    %2468 = vmatprep.subr.mxu0 0.0
    %2469 = vmatpush1.msra.mxu0 0.0
    %2470 = vmatprep.subr.mxu0 0.0
    %2471 = vmatpush1.msra.mxu0 0.0
    %2472 = vmatprep.subr.mxu0 0.0
    %2473 = vmatpush1.msra.mxu0 0.0
    %2474 = vmatprep.subr.mxu0 0.0
    %2475 = vmatpush1.msra.mxu0 0.0
    %2476 = vmatprep.subr.mxu0 0.0
    %2477 = vmatpush1.msra.mxu0 0.0
    %2478 = vmatprep.subr.mxu0 0.0
    %2479 = vmatpush1.msra.mxu0 0.0
    %2480 = vmatprep.subr.mxu0 0.0
    %2481 = vmatpush1.msra.mxu0 0.0
    %2482 = vmatprep.subr.mxu0 0.0
    %2483 = vmatpush1.msra.mxu0 0.0
    %2484 = vmatprep.subr.mxu0 0.0
    %2485 = vmatpush1.msra.mxu0 0.0
    %2486 = vmatprep.subr.mxu0 0.0
    %2487 = vmatpush1.msra.mxu0 0.0
    %2488 = vmatprep.subr.mxu0 0.0
    %2489 = vmatpush1.msra.mxu0 0.0
    %2490 = vmatprep.subr.mxu0 0.0
    %2491 = vmatpush1.msra.mxu0 0.0
    %2492 = vmatprep.subr.mxu0 0.0
    %2493 = vmatpush1.msra.mxu0 0.0
    %2494 = vmatprep.subr.mxu0 0.0
    %2495 = vmatpush1.msra.mxu0 0.0
    %2496 = vmatprep.subr.mxu0 0.0
    %2497 = vmatpush1.msra.mxu0 %v2467
    %2498 = vmatprep.subr.mxu0 0.0
    %2499 = vmatpush1.msra.mxu0 %v2466
    %2500 = vmatprep.subr.mxu0 0.0
    %2501 = vmatpush2.msra.mxu0 0.0
    %2502 = vmatprep.subr.mxu0 0.0
    %2503 = vmatpush2.msra.mxu0 0.0
    %2504 = vmatprep.subr.mxu0 0.0
    %2505 = vmatpush2.msra.mxu0 0.0
    %2506 = vmatprep.subr.mxu0 0.0
    %2507 = vmatpush2.msra.mxu0 0.0
    %2508 = vmatprep.subr.mxu0 0.0
    %2509 = vmatpush2.msra.mxu0 0.0
    %2510 = vmatprep.subr.mxu0 0.0
    %2511 = vmatpush2.msra.mxu0 0.0
    %2512 = vmatprep.subr.mxu0 0.0
    %2513 = vmatpush2.msra.mxu0 0.0
    %2514 = vmatprep.subr.mxu0 0.0
    %2515 = vmatpush2.msra.mxu0 0.0
    %2516 = vmatprep.subr.mxu0 0.0
    %2517 = vmatpush2.msra.mxu0 0.0
    %2518 = vmatprep.subr.mxu0 0.0
    %2519 = vmatpush2.msra.mxu0 0.0
    %2520 = vmatprep.subr.mxu0 0.0
    %2521 = vmatpush2.msra.mxu0 0.0
    %2522 = vmatprep.subr.mxu0 0.0
    %2523 = vmatpush2.msra.mxu0 0.0
    %2524 = vmatprep.subr.mxu0 0.0
    %2525 = vmatpush2.msra.mxu0 0.0
    %2526 = vmatprep.subr.mxu0 0.0
    %2527 = vmatpush2.msra.mxu0 0.0
    %2528 = vmatprep.subr.mxu0 0.0
    %2529 = vmatpush2.msra.mxu0 0.0
    %2530 = vmatprep.subr.mxu0 0.0
    %2531 = vmatpush2.msra.mxu0 0.0
    %2532 = vmatprep.mubr.f32.mxu0 0.0
    %2533 = vmatmul.mubr.f32.gmra.mxu0 %v416
    %v2534 = vpop.f32.mrf.mxu0
    %v2535 = vadd.f32 0.0, %v2534
    %v2536 = vpop.f32.mrf.mxu0
    %2537 = vmatprep.mubr.f32.mxu0 0.0
    %2538 = vmatmul.mubr.f32.gmra.mxu0 %v419
    %v2539 = vpop.f32.mrf.mxu0
    %v2540 = vadd.f32 0.0, %v2539
    %v2541 = vpop.f32.mrf.mxu0
    %2542 = vdwg.mxu0
    %v2543 = vld [vmem:[#allocation23] sm:$0xff]
    %v2544 = vld [vmem:[#allocation23 + $0x8] sm:$0xff]
    %v2545 = vld [vmem:[#allocation23 + $0x10] sm:$0xff]
    %v2546 = vld [vmem:[#allocation23 + $0x18] sm:$0xff]
    %v2547 = vld [vmem:[#allocation24] sm:$0x1]
    %v2549 = vlaneseq
    %v2550 = vshrl.u32 %v2549, 7
    %v2551 = vsub.s32 0, %v2550
    %v2552 = vrot.slane %v2547, %v2551
    %v2555 = vsel %vm496, %v2535, 0
    %v2558 = vsel %vm496, %v2540, 0
    %2560 = vmatprep.subr.mxu0 0.0
    %2561 = vmatpush1.msra.mxu0 0.0
    %2562 = vmatprep.subr.mxu0 0.0
    %2563 = vmatpush1.msra.mxu0 0.0
    %2564 = vmatprep.subr.mxu0 0.0
    %2565 = vmatpush1.msra.mxu0 0.0
    %2566 = vmatprep.subr.mxu0 0.0
    %2567 = vmatpush1.msra.mxu0 0.0
    %2568 = vmatprep.subr.mxu0 0.0
    %2569 = vmatpush1.msra.mxu0 0.0
    %2570 = vmatprep.subr.mxu0 0.0
    %2571 = vmatpush1.msra.mxu0 0.0
    %2572 = vmatprep.subr.mxu0 0.0
    %2573 = vmatpush1.msra.mxu0 0.0
    %2574 = vmatprep.subr.mxu0 0.0
    %2575 = vmatpush1.msra.mxu0 0.0
    %2576 = vmatprep.subr.mxu0 0.0
    %2577 = vmatpush1.msra.mxu0 0.0
    %2578 = vmatprep.subr.mxu0 0.0
    %2579 = vmatpush1.msra.mxu0 0.0
    %2580 = vmatprep.subr.mxu0 0.0
    %2581 = vmatpush1.msra.mxu0 0.0
    %2582 = vmatprep.subr.mxu0 0.0
    %2583 = vmatpush1.msra.mxu0 0.0
    %2584 = vmatprep.subr.mxu0 0.0
    %2585 = vmatpush1.msra.mxu0 %v2546
    %2586 = vmatprep.subr.mxu0 0.0
    %2587 = vmatpush1.msra.mxu0 %v2545
    %2588 = vmatprep.subr.mxu0 0.0
    %2589 = vmatpush1.msra.mxu0 %v2544
    %2590 = vmatprep.subr.mxu0 0.0
    %2591 = vmatpush1.msra.mxu0 %v2543
    %2592 = vmatprep.subr.mxu0 0.0
    %2593 = vmatpush2.msra.mxu0 0.0
    %2594 = vmatprep.subr.mxu0 0.0
    %2595 = vmatpush2.msra.mxu0 0.0
    %2596 = vmatprep.subr.mxu0 0.0
    %2597 = vmatpush2.msra.mxu0 0.0
    %2598 = vmatprep.subr.mxu0 0.0
    %2599 = vmatpush2.msra.mxu0 0.0
    %2600 = vmatprep.subr.mxu0 0.0
    %2601 = vmatpush2.msra.mxu0 0.0
    %2602 = vmatprep.subr.mxu0 0.0
    %2603 = vmatpush2.msra.mxu0 0.0
    %2604 = vmatprep.subr.mxu0 0.0
    %2605 = vmatpush2.msra.mxu0 0.0
    %2606 = vmatprep.subr.mxu0 0.0
    %2607 = vmatpush2.msra.mxu0 0.0
    %2608 = vmatprep.subr.mxu0 0.0
    %2609 = vmatpush2.msra.mxu0 0.0
    %2610 = vmatprep.subr.mxu0 0.0
    %2611 = vmatpush2.msra.mxu0 0.0
    %2612 = vmatprep.subr.mxu0 0.0
    %2613 = vmatpush2.msra.mxu0 0.0
    %2614 = vmatprep.subr.mxu0 0.0
    %2615 = vmatpush2.msra.mxu0 0.0
    %2616 = vmatprep.subr.mxu0 0.0
    %2617 = vmatpush2.msra.mxu0 0.0
    %2618 = vmatprep.subr.mxu0 0.0
    %2619 = vmatpush2.msra.mxu0 0.0
    %2620 = vmatprep.subr.mxu0 0.0
    %2621 = vmatpush2.msra.mxu0 0.0
    %2622 = vmatprep.subr.mxu0 0.0
    %2623 = vmatpush2.msra.mxu0 0.0
    %2624 = vmatprep.mubr.f32.mxu0 0.0
    %2625 = vmatmul.mubr.f32.gmra.mxu0 %v2555
    %v2626 = vpop.f32.mrf.mxu0
    %v2627 = vadd.f32 %v2552, %v2626
    %v2628 = vpop.f32.mrf.mxu0
    %2629 = vmatprep.mubr.f32.mxu0 0.0
    %2630 = vmatmul.mubr.f32.gmra.mxu0 %v2558
    %v2631 = vpop.f32.mrf.mxu0
    %v2632 = vadd.f32 %v2552, %v2631
    %v2633 = vpop.f32.mrf.mxu0
    %2634 = vdwg.mxu0
    %v2635 = vadd.f32 %v2627, %v1033
    %v2636 = vadd.f32 %v2632, %v1038
    %v2637 = vmul.f32 %v2635, %v858
    %v2638 = vmul.f32 %v2636, %v859
    %2639 = vmatprep.subr.mxu0 0.0
    %2640 = vmatpush1.msra.mxu0 0.0
    %2641 = vmatprep.subr.mxu0 0.0
    %2642 = vmatpush1.msra.mxu0 0.0
    %2643 = vmatprep.subr.mxu0 0.0
    %2644 = vmatpush1.msra.mxu0 0.0
    %2645 = vmatprep.subr.mxu0 0.0
    %2646 = vmatpush1.msra.mxu0 0.0
    %2647 = vmatprep.subr.mxu0 0.0
    %2648 = vmatpush1.msra.mxu0 0.0
    %2649 = vmatprep.subr.mxu0 0.0
    %2650 = vmatpush1.msra.mxu0 0.0
    %2651 = vmatprep.subr.mxu0 0.0
    %2652 = vmatpush1.msra.mxu0 0.0
    %2653 = vmatprep.subr.mxu0 0.0
    %2654 = vmatpush1.msra.mxu0 0.0
    %2655 = vmatprep.subr.mxu0 0.0
    %2656 = vmatpush1.msra.mxu0 0.0
    %2657 = vmatprep.subr.mxu0 0.0
    %2658 = vmatpush1.msra.mxu0 0.0
    %2659 = vmatprep.subr.mxu0 0.0
    %2660 = vmatpush1.msra.mxu0 0.0
    %2661 = vmatprep.subr.mxu0 0.0
    %2662 = vmatpush1.msra.mxu0 0.0
    %2663 = vmatprep.subr.mxu0 0.0
    %2664 = vmatpush1.msra.mxu0 0.0
    %2665 = vmatprep.subr.mxu0 0.0
    %2666 = vmatpush1.msra.mxu0 0.0
    %2667 = vmatprep.subr.mxu0 0.0
    %2668 = vmatpush1.msra.mxu0 %v2638
    %2669 = vmatprep.subr.mxu0 0.0
    %2670 = vmatpush1.msra.mxu0 %v2637
    %2671 = vmatprep.subr.mxu0 0.0
    %2672 = vmatpush2.msra.mxu0 0.0
    %2673 = vmatprep.subr.mxu0 0.0
    %2674 = vmatpush2.msra.mxu0 0.0
    %2675 = vmatprep.subr.mxu0 0.0
    %2676 = vmatpush2.msra.mxu0 0.0
    %2677 = vmatprep.subr.mxu0 0.0
    %2678 = vmatpush2.msra.mxu0 0.0
    %2679 = vmatprep.subr.mxu0 0.0
    %2680 = vmatpush2.msra.mxu0 0.0
    %2681 = vmatprep.subr.mxu0 0.0
    %2682 = vmatpush2.msra.mxu0 0.0
    %2683 = vmatprep.subr.mxu0 0.0
    %2684 = vmatpush2.msra.mxu0 0.0
    %2685 = vmatprep.subr.mxu0 0.0
    %2686 = vmatpush2.msra.mxu0 0.0
    %2687 = vmatprep.subr.mxu0 0.0
    %2688 = vmatpush2.msra.mxu0 0.0
    %2689 = vmatprep.subr.mxu0 0.0
    %2690 = vmatpush2.msra.mxu0 0.0
    %2691 = vmatprep.subr.mxu0 0.0
    %2692 = vmatpush2.msra.mxu0 0.0
    %2693 = vmatprep.subr.mxu0 0.0
    %2694 = vmatpush2.msra.mxu0 0.0
    %2695 = vmatprep.subr.mxu0 0.0
    %2696 = vmatpush2.msra.mxu0 0.0
    %2697 = vmatprep.subr.mxu0 0.0
    %2698 = vmatpush2.msra.mxu0 0.0
    %2699 = vmatprep.subr.mxu0 0.0
    %2700 = vmatpush2.msra.mxu0 0.0
    %2701 = vmatprep.subr.mxu0 0.0
    %2702 = vmatpush2.msra.mxu0 0.0
    %2703 = vmatprep.mubr.f32.mxu0 0.0
    %2704 = vmatmul.mubr.f32.gmra.mxu0 %v416
    %v2705 = vpop.f32.mrf.mxu0
    %v2706 = vadd.f32 0.0, %v2705
    %v2707 = vpop.f32.mrf.mxu0
    %2708 = vmatprep.mubr.f32.mxu0 0.0
    %2709 = vmatmul.mubr.f32.gmra.mxu0 %v419
    %v2710 = vpop.f32.mrf.mxu0
    %v2711 = vadd.f32 0.0, %v2710
    %v2712 = vpop.f32.mrf.mxu0
    %2713 = vdwg.mxu0
    %v2714 = vld [vmem:[%s55] sm:$0xff]
    %v2715 = vld [vmem:[%s55 + $0x8] sm:$0xff]
    %v2716 = vld [vmem:[%s55 + $0x10] sm:$0xff]
    %v2717 = vld [vmem:[%s55 + $0x18] sm:$0xff]
    %v2718 = vld [vmem:[#allocation26] sm:$0x1]
    %v2720 = vlaneseq
    %v2721 = vshrl.u32 %v2720, 7
    %v2722 = vsub.s32 0, %v2721
    %v2723 = vrot.slane %v2718, %v2722
    %v2726 = vsel %vm496, %v2706, 0
    %v2729 = vsel %vm496, %v2711, 0
    %2731 = vmatprep.subr.mxu0 0.0
    %2732 = vmatpush1.msra.mxu0 0.0
    %2733 = vmatprep.subr.mxu0 0.0
    %2734 = vmatpush1.msra.mxu0 0.0
    %2735 = vmatprep.subr.mxu0 0.0
    %2736 = vmatpush1.msra.mxu0 0.0
    %2737 = vmatprep.subr.mxu0 0.0
    %2738 = vmatpush1.msra.mxu0 0.0
    %2739 = vmatprep.subr.mxu0 0.0
    %2740 = vmatpush1.msra.mxu0 0.0
    %2741 = vmatprep.subr.mxu0 0.0
    %2742 = vmatpush1.msra.mxu0 0.0
    %2743 = vmatprep.subr.mxu0 0.0
    %2744 = vmatpush1.msra.mxu0 0.0
    %2745 = vmatprep.subr.mxu0 0.0
    %2746 = vmatpush1.msra.mxu0 0.0
    %2747 = vmatprep.subr.mxu0 0.0
    %2748 = vmatpush1.msra.mxu0 0.0
    %2749 = vmatprep.subr.mxu0 0.0
    %2750 = vmatpush1.msra.mxu0 0.0
    %2751 = vmatprep.subr.mxu0 0.0
    %2752 = vmatpush1.msra.mxu0 0.0
    %2753 = vmatprep.subr.mxu0 0.0
    %2754 = vmatpush1.msra.mxu0 0.0
    %2755 = vmatprep.subr.mxu0 0.0
    %2756 = vmatpush1.msra.mxu0 %v2717
    %2757 = vmatprep.subr.mxu0 0.0
    %2758 = vmatpush1.msra.mxu0 %v2716
    %2759 = vmatprep.subr.mxu0 0.0
    %2760 = vmatpush1.msra.mxu0 %v2715
    %2761 = vmatprep.subr.mxu0 0.0
    %2762 = vmatpush1.msra.mxu0 %v2714
    %2763 = vmatprep.subr.mxu0 0.0
    %2764 = vmatpush2.msra.mxu0 0.0
    %2765 = vmatprep.subr.mxu0 0.0
    %2766 = vmatpush2.msra.mxu0 0.0
    %2767 = vmatprep.subr.mxu0 0.0
    %2768 = vmatpush2.msra.mxu0 0.0
    %2769 = vmatprep.subr.mxu0 0.0
    %2770 = vmatpush2.msra.mxu0 0.0
    %2771 = vmatprep.subr.mxu0 0.0
    %2772 = vmatpush2.msra.mxu0 0.0
    %2773 = vmatprep.subr.mxu0 0.0
    %2774 = vmatpush2.msra.mxu0 0.0
    %2775 = vmatprep.subr.mxu0 0.0
    %2776 = vmatpush2.msra.mxu0 0.0
    %2777 = vmatprep.subr.mxu0 0.0
    %2778 = vmatpush2.msra.mxu0 0.0
    %2779 = vmatprep.subr.mxu0 0.0
    %2780 = vmatpush2.msra.mxu0 0.0
    %2781 = vmatprep.subr.mxu0 0.0
    %2782 = vmatpush2.msra.mxu0 0.0
    %2783 = vmatprep.subr.mxu0 0.0
    %2784 = vmatpush2.msra.mxu0 0.0
    %2785 = vmatprep.subr.mxu0 0.0
    %2786 = vmatpush2.msra.mxu0 0.0
    %2787 = vmatprep.subr.mxu0 0.0
    %2788 = vmatpush2.msra.mxu0 0.0
    %2789 = vmatprep.subr.mxu0 0.0
    %2790 = vmatpush2.msra.mxu0 0.0
    %2791 = vmatprep.subr.mxu0 0.0
    %2792 = vmatpush2.msra.mxu0 0.0
    %2793 = vmatprep.subr.mxu0 0.0
    %2794 = vmatpush2.msra.mxu0 0.0
    %2795 = vmatprep.mubr.f32.mxu0 0.0
    %2796 = vmatmul.mubr.f32.gmra.mxu0 %v2726
    %v2797 = vpop.f32.mrf.mxu0
    %v2798 = vadd.f32 %v2723, %v2797
    %v2799 = vpop.f32.mrf.mxu0
    %2800 = vmatprep.mubr.f32.mxu0 0.0
    %2801 = vmatmul.mubr.f32.gmra.mxu0 %v2729
    %v2802 = vpop.f32.mrf.mxu0
    %v2803 = vadd.f32 %v2723, %v2802
    %v2804 = vpop.f32.mrf.mxu0
    %2805 = vdwg.mxu0
    %v2806 = vadd.f32 %v2798, %v667
    %v2807 = vadd.f32 %v2803, %v672
    %2808 = vmatprep.subr.mxu0 0.0
    %2809 = vmatpush1.msra.mxu0 0.0
    %2810 = vmatprep.subr.mxu0 0.0
    %2811 = vmatpush1.msra.mxu0 0.0
    %2812 = vmatprep.subr.mxu0 0.0
    %2813 = vmatpush1.msra.mxu0 0.0
    %2814 = vmatprep.subr.mxu0 0.0
    %2815 = vmatpush1.msra.mxu0 0.0
    %2816 = vmatprep.subr.mxu0 0.0
    %2817 = vmatpush1.msra.mxu0 0.0
    %2818 = vmatprep.subr.mxu0 0.0
    %2819 = vmatpush1.msra.mxu0 0.0
    %2820 = vmatprep.subr.mxu0 0.0
    %2821 = vmatpush1.msra.mxu0 0.0
    %2822 = vmatprep.subr.mxu0 0.0
    %2823 = vmatpush1.msra.mxu0 0.0
    %2824 = vmatprep.subr.mxu0 0.0
    %2825 = vmatpush1.msra.mxu0 0.0
    %2826 = vmatprep.subr.mxu0 0.0
    %2827 = vmatpush1.msra.mxu0 0.0
    %2828 = vmatprep.subr.mxu0 0.0
    %2829 = vmatpush1.msra.mxu0 0.0
    %2830 = vmatprep.subr.mxu0 0.0
    %2831 = vmatpush1.msra.mxu0 0.0
    %2832 = vmatprep.subr.mxu0 0.0
    %2833 = vmatpush1.msra.mxu0 0.0
    %2834 = vmatprep.subr.mxu0 0.0
    %2835 = vmatpush1.msra.mxu0 0.0
    %2836 = vmatprep.subr.mxu0 0.0
    %2837 = vmatpush1.msra.mxu0 %v2807
    %2838 = vmatprep.subr.mxu0 0.0
    %2839 = vmatpush1.msra.mxu0 %v2806
    %2840 = vmatprep.subr.mxu0 0.0
    %2841 = vmatpush2.msra.mxu0 0.0
    %2842 = vmatprep.subr.mxu0 0.0
    %2843 = vmatpush2.msra.mxu0 0.0
    %2844 = vmatprep.subr.mxu0 0.0
    %2845 = vmatpush2.msra.mxu0 0.0
    %2846 = vmatprep.subr.mxu0 0.0
    %2847 = vmatpush2.msra.mxu0 0.0
    %2848 = vmatprep.subr.mxu0 0.0
    %2849 = vmatpush2.msra.mxu0 0.0
    %2850 = vmatprep.subr.mxu0 0.0
    %2851 = vmatpush2.msra.mxu0 0.0
    %2852 = vmatprep.subr.mxu0 0.0
    %2853 = vmatpush2.msra.mxu0 0.0
    %2854 = vmatprep.subr.mxu0 0.0
    %2855 = vmatpush2.msra.mxu0 0.0
    %2856 = vmatprep.subr.mxu0 0.0
    %2857 = vmatpush2.msra.mxu0 0.0
    %2858 = vmatprep.subr.mxu0 0.0
    %2859 = vmatpush2.msra.mxu0 0.0
    %2860 = vmatprep.subr.mxu0 0.0
    %2861 = vmatpush2.msra.mxu0 0.0
    %2862 = vmatprep.subr.mxu0 0.0
    %2863 = vmatpush2.msra.mxu0 0.0
    %2864 = vmatprep.subr.mxu0 0.0
    %2865 = vmatpush2.msra.mxu0 0.0
    %2866 = vmatprep.subr.mxu0 0.0
    %2867 = vmatpush2.msra.mxu0 0.0
    %2868 = vmatprep.subr.mxu0 0.0
    %2869 = vmatpush2.msra.mxu0 0.0
    %2870 = vmatprep.subr.mxu0 0.0
    %2871 = vmatpush2.msra.mxu0 0.0
    %2872 = vmatprep.mubr.f32.mxu0 0.0
    %2873 = vmatmul.mubr.f32.gmra.mxu0 %v416
    %v2874 = vpop.f32.mrf.mxu0
    %v2875 = vadd.f32 0.0, %v2874
    %v2876 = vpop.f32.mrf.mxu0
    %2877 = vmatprep.mubr.f32.mxu0 0.0
    %2878 = vmatmul.mubr.f32.gmra.mxu0 %v419
    %v2879 = vpop.f32.mrf.mxu0
    %v2880 = vadd.f32 0.0, %v2879
    %v2881 = vpop.f32.mrf.mxu0
    %2882 = vdwg.mxu0
    %v2883 = vld [vmem:[#allocation27] sm:$0xff]
    %v2884 = vld [vmem:[#allocation27 + $0x8] sm:$0xff]
    %v2885 = vld [vmem:[#allocation27 + $0x10] sm:$0xff]
    %v2886 = vld [vmem:[#allocation27 + $0x18] sm:$0xff]
    %v2887 = vld [vmem:[#allocation29] sm:$0xff]
    %v2888 = vld [vmem:[#allocation29 + $0x8] sm:$0xff]
    %v2889 = vld [vmem:[#allocation29 + $0x10] sm:$0xff]
    %v2890 = vld [vmem:[#allocation29 + $0x18] sm:$0xff]
    %2891 = vmatprep.subr.mxu0 0.0
    %2892 = vmatpush1.msra.mxu0 0.0
    %2893 = vmatprep.subr.mxu0 0.0
    %2894 = vmatpush1.msra.mxu0 0.0
    %2895 = vmatprep.subr.mxu0 0.0
    %2896 = vmatpush1.msra.mxu0 0.0
    %2897 = vmatprep.subr.mxu0 0.0
    %2898 = vmatpush1.msra.mxu0 0.0
    %2899 = vmatprep.subr.mxu0 0.0
    %2900 = vmatpush1.msra.mxu0 0.0
    %2901 = vmatprep.subr.mxu0 0.0
    %2902 = vmatpush1.msra.mxu0 0.0
    %2903 = vmatprep.subr.mxu0 0.0
    %2904 = vmatpush1.msra.mxu0 0.0
    %2905 = vmatprep.subr.mxu0 0.0
    %2906 = vmatpush1.msra.mxu0 0.0
    %2907 = vmatprep.subr.mxu0 0.0
    %2908 = vmatpush1.msra.mxu0 0.0
    %2909 = vmatprep.subr.mxu0 0.0
    %2910 = vmatpush1.msra.mxu0 0.0
    %2911 = vmatprep.subr.mxu0 0.0
    %2912 = vmatpush1.msra.mxu0 0.0
    %2913 = vmatprep.subr.mxu0 0.0
    %2914 = vmatpush1.msra.mxu0 0.0
    %2915 = vmatprep.subr.mxu0 0.0
    %2916 = vmatpush1.msra.mxu0 %v2890
    %2917 = vmatprep.subr.mxu0 0.0
    %2918 = vmatpush1.msra.mxu0 %v2889
    %2919 = vmatprep.subr.mxu0 0.0
    %2920 = vmatpush1.msra.mxu0 %v2888
    %2921 = vmatprep.subr.mxu0 0.0
    %2922 = vmatpush1.msra.mxu0 %v2887
    %2923 = vmatprep.subr.mxu0 0.0
    %2924 = vmatpush2.msra.mxu0 0.0
    %2925 = vmatprep.subr.mxu0 0.0
    %2926 = vmatpush2.msra.mxu0 0.0
    %2927 = vmatprep.subr.mxu0 0.0
    %2928 = vmatpush2.msra.mxu0 0.0
    %2929 = vmatprep.subr.mxu0 0.0
    %2930 = vmatpush2.msra.mxu0 0.0
    %2931 = vmatprep.subr.mxu0 0.0
    %2932 = vmatpush2.msra.mxu0 0.0
    %2933 = vmatprep.subr.mxu0 0.0
    %2934 = vmatpush2.msra.mxu0 0.0
    %2935 = vmatprep.subr.mxu0 0.0
    %2936 = vmatpush2.msra.mxu0 0.0
    %2937 = vmatprep.subr.mxu0 0.0
    %2938 = vmatpush2.msra.mxu0 0.0
    %2939 = vmatprep.subr.mxu0 0.0
    %2940 = vmatpush2.msra.mxu0 0.0
    %2941 = vmatprep.subr.mxu0 0.0
    %2942 = vmatpush2.msra.mxu0 0.0
    %2943 = vmatprep.subr.mxu0 0.0
    %2944 = vmatpush2.msra.mxu0 0.0
    %2945 = vmatprep.subr.mxu0 0.0
    %2946 = vmatpush2.msra.mxu0 0.0
    %2947 = vmatprep.subr.mxu0 0.0
    %2948 = vmatpush2.msra.mxu0 0.0
    %2949 = vmatprep.subr.mxu0 0.0
    %2950 = vmatpush2.msra.mxu0 0.0
    %2951 = vmatprep.subr.mxu0 0.0
    %2952 = vmatpush2.msra.mxu0 0.0
    %2953 = vmatprep.subr.mxu0 0.0
    %2954 = vmatpush2.msra.mxu0 0.0
    %2955 = vmatprep.mubr.f32.mxu0 0.0
    %2956 = vmatmul.mubr.f32.gmra.mxu0 %v595
    %v2957 = vpop.f32.mrf.mxu0
    %v2958 = vadd.f32 0.0, %v2957
    %v2959 = vpop.f32.mrf.mxu0
    %2960 = vmatprep.mubr.f32.mxu0 0.0
    %2961 = vmatmul.mubr.f32.gmra.mxu0 %v598
    %v2962 = vpop.f32.mrf.mxu0
    %v2963 = vadd.f32 0.0, %v2962
    %v2964 = vpop.f32.mrf.mxu0
    %2965 = vdwg.mxu0
    %v2967 = vsel %vm496, %v2875, 0
    %v2970 = vsel %vm496, %v2880, 0
    %2972 = vmatprep.subr.mxu0 0.0
    %2973 = vmatpush1.msra.mxu0 0.0
    %2974 = vmatprep.subr.mxu0 0.0
    %2975 = vmatpush1.msra.mxu0 0.0
    %2976 = vmatprep.subr.mxu0 0.0
    %2977 = vmatpush1.msra.mxu0 0.0
    %2978 = vmatprep.subr.mxu0 0.0
    %2979 = vmatpush1.msra.mxu0 0.0
    %2980 = vmatprep.subr.mxu0 0.0
    %2981 = vmatpush1.msra.mxu0 0.0
    %2982 = vmatprep.subr.mxu0 0.0
    %2983 = vmatpush1.msra.mxu0 0.0
    %2984 = vmatprep.subr.mxu0 0.0
    %2985 = vmatpush1.msra.mxu0 0.0
    %2986 = vmatprep.subr.mxu0 0.0
    %2987 = vmatpush1.msra.mxu0 0.0
    %2988 = vmatprep.subr.mxu0 0.0
    %2989 = vmatpush1.msra.mxu0 0.0
    %2990 = vmatprep.subr.mxu0 0.0
    %2991 = vmatpush1.msra.mxu0 0.0
    %2992 = vmatprep.subr.mxu0 0.0
    %2993 = vmatpush1.msra.mxu0 0.0
    %2994 = vmatprep.subr.mxu0 0.0
    %2995 = vmatpush1.msra.mxu0 0.0
    %2996 = vmatprep.subr.mxu0 0.0
    %2997 = vmatpush1.msra.mxu0 %v2886
    %2998 = vmatprep.subr.mxu0 0.0
    %2999 = vmatpush1.msra.mxu0 %v2885
    %3000 = vmatprep.subr.mxu0 0.0
    %3001 = vmatpush1.msra.mxu0 %v2884
    %3002 = vmatprep.subr.mxu0 0.0
    %3003 = vmatpush1.msra.mxu0 %v2883
    %3004 = vmatprep.subr.mxu0 0.0
    %3005 = vmatpush2.msra.mxu0 0.0
    %3006 = vmatprep.subr.mxu0 0.0
    %3007 = vmatpush2.msra.mxu0 0.0
    %3008 = vmatprep.subr.mxu0 0.0
    %3009 = vmatpush2.msra.mxu0 0.0
    %3010 = vmatprep.subr.mxu0 0.0
    %3011 = vmatpush2.msra.mxu0 0.0
    %3012 = vmatprep.subr.mxu0 0.0
    %3013 = vmatpush2.msra.mxu0 0.0
    %3014 = vmatprep.subr.mxu0 0.0
    %3015 = vmatpush2.msra.mxu0 0.0
    %3016 = vmatprep.subr.mxu0 0.0
    %3017 = vmatpush2.msra.mxu0 0.0
    %3018 = vmatprep.subr.mxu0 0.0
    %3019 = vmatpush2.msra.mxu0 0.0
    %3020 = vmatprep.subr.mxu0 0.0
    %3021 = vmatpush2.msra.mxu0 0.0
    %3022 = vmatprep.subr.mxu0 0.0
    %3023 = vmatpush2.msra.mxu0 0.0
    %3024 = vmatprep.subr.mxu0 0.0
    %3025 = vmatpush2.msra.mxu0 0.0
    %3026 = vmatprep.subr.mxu0 0.0
    %3027 = vmatpush2.msra.mxu0 0.0
    %3028 = vmatprep.subr.mxu0 0.0
    %3029 = vmatpush2.msra.mxu0 0.0
    %3030 = vmatprep.subr.mxu0 0.0
    %3031 = vmatpush2.msra.mxu0 0.0
    %3032 = vmatprep.subr.mxu0 0.0
    %3033 = vmatpush2.msra.mxu0 0.0
    %3034 = vmatprep.subr.mxu0 0.0
    %3035 = vmatpush2.msra.mxu0 0.0
    %3036 = vmatprep.mubr.f32.mxu0 0.0
    %3037 = vmatmul.mubr.f32.gmra.mxu0 %v2967
    %v3038 = vpop.f32.mrf.mxu0
    %v3039 = vadd.f32 %v2958, %v3038
    %v3040 = vpop.f32.mrf.mxu0
    %3041 = vmatprep.mubr.f32.mxu0 0.0
    %3042 = vmatmul.mubr.f32.gmra.mxu0 %v2970
    %v3043 = vpop.f32.mrf.mxu0
    %v3044 = vadd.f32 %v2963, %v3043
    %v3045 = vpop.f32.mrf.mxu0
    %3046 = vdwg.mxu0
    %v3047 = vld [vmem:[#allocation30] sm:$0x1]
    %v3049 = vlaneseq
    %v3050 = vshrl.u32 %v3049, 7
    %v3051 = vsub.s32 0, %v3050
    %v3052 = vrot.slane %v3047, %v3051
    %v3054 = vadd.f32 %v3039, %v3052
    %v3055 = vadd.f32 %v3044, %v3052
    %3056 = vst.msk [vmem:[%s67] sm:$0xff] %vm496, %v3054
    %3057 = vst.msk [vmem:[%s67 + $0x8] sm:$0xff] %vm496, %v3055
    // Predicated region
    $region194: #{agsr_net_forward.2} parent=1 // pred_check
      _
    $region195: #{agsr_net_forward.2} parent=1 // pred_check_branch
      %3059 = sbr.rel (0) target = $region197
    $region196: #{agsr_net_forward.2} parent=1 // pred_region
      _
    $region197: #{agsr_net_forward.2} parent=1 // pred_fallthru
      _
    // Predicated region
    $region198: #{agsr_net_forward.2} parent=1 // pred_check
      _
    $region199: #{agsr_net_forward.2} parent=1 // pred_check_branch
      %3061 = sbr.rel (0) target = $region201
    $region200: #{agsr_net_forward.2} parent=1 // pred_region
      _
    $region201: #{agsr_net_forward.2} parent=1 // pred_fallthru
      _
    // Predicated region
    $region202: #{agsr_net_forward.2} parent=1 // pred_check
      _
    $region203: #{agsr_net_forward.2} parent=1 // pred_check_branch
      %3063 = sbr.rel (0) target = $region205
    $region204: #{agsr_net_forward.2} parent=1 // pred_region
      %s3065 = ssub.s32 256, 256
      %3066 = vsyncadd [#allocation8], %s3065
      %s3067 = sshll.u32 [#allocation32], 4
      %s3068 = int_to_ptr.vmem [resolvable:$true] %s3067
      %3073 = dma.vmem_to_hbm [thread:$0]  %s3068, 256, %s69, [#allocation8], 128, 128, 8
    $region205: #{agsr_net_forward.2} parent=1 // pred_fallthru
      _
    // Predicated region
    $region206: #{agsr_net_forward.2} parent=1 // pred_check
      _
    $region207: #{agsr_net_forward.2} parent=1 // pred_check_branch
      %3075 = sbr.rel (0) target = $region209
    $region208: #{agsr_net_forward.2} parent=1 // pred_region
      _
    $region209: #{agsr_net_forward.2} parent=1 // pred_fallthru
      _
    // Predicated region
    $region210: #{agsr_net_forward.2} parent=1 // pred_check
      _
    $region211: #{agsr_net_forward.2} parent=1 // pred_check_branch
      %3077 = sbr.rel (0) target = $region213
    $region212: #{agsr_net_forward.2} parent=1 // pred_region
      _
    $region213: #{agsr_net_forward.2} parent=1 // pred_fallthru
      _
    // Predicated region
    $region214: #{agsr_net_forward.2} parent=1 // pred_check
      _
    $region215: #{agsr_net_forward.2} parent=1 // pred_check_branch
      %3079 = sbr.rel (0) target = $region217
    $region216: #{agsr_net_forward.2} parent=1 // pred_region
      %3080 = dma.done [#allocation8], 256
    $region217: #{agsr_net_forward.2} parent=1 // pred_fallthru
      _
    %3081 = vsyncpa [#allocation7], 1
    %3082 = vsyncpa [#allocation10], 1
    %3083 = vsyncpa [#allocation13], 1
    %3084 = vsyncpa [#allocation16], 1
    %3085 = vsyncpa [#allocation19], 1
    %3086 = vsyncpa [#allocation22], 1
    %3087 = vsyncpa [#allocation25], 1
    %3088 = vsyncpa [#allocation28], 1
    %3089 = vsyncpa [#allocation31], 1
    %3090 = vsyncpa [#allocation8], 1

</llo_original>
